<compile_context>
chip_gen: v7x
topology: tpu7x:2x2x1
jax: 0.10.0
libtpu: 0.0.40
codegen_flags: <defaults>
</compile_context>

<pallas_src>
import functools

import jax
import jax.numpy as jnp
from jax.experimental import pallas as pl
from jax.experimental.pallas import tpu as pltpu

LANE = 128
NEG_SLOPE = 0.2                        # LeakyReLU(0.2)
BN_EPS = 1e-5
TM_MAX = 4096                          # hard cap on rows (N*OH*OW) per tile
VMEM_TILE_BUDGET = 24 * 1024 * 1024    # double-buffered working-set target (all gens)


def _round_up(x, m):
    return (x + m - 1) // m * m


def _choose_tm(M, Kp, Cp, out_bytes):
    """Pick the M tile from the VMEM budget.

    Working set ~ 2x patch tile + 2x resident weight + 2x output tile + f32 acc.
    Returns (tm, mp): tm is a multiple of 8 (or the full padded extent), mp >= M.
    Keeps >= 2 grid blocks when M is large (2-TensorCore sharding on v7x) and keeps
    row-padding waste small (no power-of-two balloon)."""
    weight = 2 * Kp * Cp * 2                                    # bf16, double-buffered
    per_row = 2 * Kp * 2 + 2 * Cp * out_bytes + 2 * Cp * 4      # patches + out + f32 acc
    cap = max(8, min((VMEM_TILE_BUDGET - weight) // per_row, TM_MAX) // 8 * 8)
    m8 = _round_up(M, 8)
    if m8 <= min(cap, 1024):            # small problem: one full-extent block, no waste
        return m8, m8
    nblk = max(2, -(-m8 // cap))        # at least 2 blocks for the parallel M axis
    tm = _round_up(-(-M // nblk), 8)
    return tm, tm * nblk


def _vmem_limit(footprint):
    """Explicit scoped-VMEM limit: generous headroom, capped for v7x (64 MiB phys)."""
    return int(min(48 << 20, max(2 * footprint + (8 << 20), 32 << 20)))


def _conv_cost(mp, Kp, Cp, out_bytes):
    return pl.CostEstimate(
        flops=2 * mp * Kp * Cp,
        transcendentals=0,
        bytes_accessed=mp * Kp * 2 + Kp * Cp * 2 + mp * Cp * out_bytes)


# ----------------------------------------------------------------------------
# Pallas kernels
# ----------------------------------------------------------------------------
def _conv_bias_act_kernel(x_ref, w_ref, b_ref, o_ref, *, apply_relu):
    """o = [leaky_relu]( x @ w + bias );  bf16 operands, f32 MXU accumulation."""
    acc = jnp.dot(x_ref[...], w_ref[...], preferred_element_type=jnp.float32)
    y = acc + b_ref[...]
    if apply_relu:
        y = jnp.maximum(y, NEG_SLOPE * y)       # LeakyReLU as a single VPU op
    o_ref[...] = y.astype(o_ref.dtype)


def _conv_stats_kernel(x_ref, w_ref, o_ref, sum_ref, sq_ref):
    """o = x @ w (bf16 out) with fused per-channel sum / sum-of-squares written to
    row 0 of the per-block stats outputs (partial, reduced over blocks on the host)."""
    acc = jnp.dot(x_ref[...], w_ref[...], preferred_element_type=jnp.float32)
    o_ref[...] = acc.astype(o_ref.dtype)
    sum_ref[0:1, :] = jnp.sum(acc, axis=0, keepdims=True)         # (1, Cp)
    sq_ref[0:1, :] = jnp.sum(acc * acc, axis=0, keepdims=True)    # (1, Cp)


# ----------------------------------------------------------------------------
# Pallas wrappers
# ----------------------------------------------------------------------------
def pallas_conv_bias_act(patches, wmat, bias_row, out_dtype, apply_relu):
    """patches:(M,Kp) bf16 @ wmat:(Kp,Cp) bf16 + bias -> (Mp,Cp) out_dtype (padded)."""
    M, Kp = patches.shape
    Cp = wmat.shape[1]
    ob = jnp.dtype(out_dtype).itemsize
    tm, mp = _choose_tm(M, Kp, Cp, ob)
    if mp != M:
        patches = jnp.pad(patches, ((0, mp - M), (0, 0)))
    footprint = 2 * Kp * Cp * 2 + tm * (2 * Kp * 2 + 2 * Cp * ob + 2 * Cp * 4)
    return pl.pallas_call(
        functools.partial(_conv_bias_act_kernel, apply_relu=apply_relu),
        out_shape=jax.ShapeDtypeStruct((mp, Cp), out_dtype),
        grid_spec=pltpu.PrefetchScalarGridSpec(
            num_scalar_prefetch=0,
            grid=(mp // tm,),
            in_specs=[
                pl.BlockSpec((tm, Kp), lambda i: (i, 0)),
                pl.BlockSpec((Kp, Cp), lambda i: (0, 0)),    # resident weight
                pl.BlockSpec((1, Cp), lambda i: (0, 0)),     # resident bias row
            ],
            out_specs=pl.BlockSpec((tm, Cp), lambda i: (i, 0)),
        ),
        compiler_params=pltpu.CompilerParams(
            dimension_semantics=("parallel",),
            vmem_limit_bytes=_vmem_limit(footprint)),
        cost_estimate=_conv_cost(mp, Kp, Cp, ob),
    )(patches, wmat, bias_row)


def pallas_conv_stats(patches, wmat):
    """Conv matmul with fused per-channel sum / sum-of-squares partial outputs.
    Returns padded y (Mp,Cp) bf16 and full-Cp sum / sumsq f32 vectors."""
    M, Kp = patches.shape
    Cp = wmat.shape[1]
    tm, mp = _choose_tm(M, Kp, Cp, 2)
    if mp != M:
        patches = jnp.pad(patches, ((0, mp - M), (0, 0)))   # zero rows: 0 contribution
    nblk = mp // tm
    footprint = 2 * Kp * Cp * 2 + tm * (2 * Kp * 2 + 2 * Cp * 2 + 2 * Cp * 4)
    y, ssum, ssq = pl.pallas_call(
        _conv_stats_kernel,
        out_shape=(jax.ShapeDtypeStruct((mp, Cp), jnp.bfloat16),
                   jax.ShapeDtypeStruct((nblk * 8, Cp), jnp.float32),
                   jax.ShapeDtypeStruct((nblk * 8, Cp), jnp.float32)),
        grid_spec=pltpu.PrefetchScalarGridSpec(
            num_scalar_prefetch=0,
            grid=(nblk,),
            in_specs=[
                pl.BlockSpec((tm, Kp), lambda i: (i, 0)),
                pl.BlockSpec((Kp, Cp), lambda i: (0, 0)),    # resident weight
            ],
            out_specs=[
                pl.BlockSpec((tm, Cp), lambda i: (i, 0)),
                pl.BlockSpec((8, Cp), lambda i: (i, 0)),
                pl.BlockSpec((8, Cp), lambda i: (i, 0)),
            ],
        ),
        compiler_params=pltpu.CompilerParams(
            dimension_semantics=("parallel",),
            vmem_limit_bytes=_vmem_limit(footprint)),
        cost_estimate=_conv_cost(mp, Kp, Cp, 2),
    )(patches, wmat)
    sum_c = ssum.reshape(nblk, 8, Cp)[:, 0, :].sum(axis=0)   # only row 0 was written
    sq_c = ssq.reshape(nblk, 8, Cp)[:, 0, :].sum(axis=0)
    return y, sum_c, sq_c


# ----------------------------------------------------------------------------
# JAX glue: deferred BN apply, channels-last im2col, spectral norm, layers
# ----------------------------------------------------------------------------
def _as_nhwc(src):
    """Materialize (lazily, under jit) the NHWC bf16 activation for the next conv.

    `src` is either a plain NHWC array, or a deferred (y_pad, scale, shift, meta)
    tuple from a BN layer.  The folded BatchNorm affine + LeakyReLU are applied
    here so XLA fuses them with the consumer's im2col gather — no standalone HBM
    pass over the activation."""
    if not isinstance(src, tuple):
        return src
    y_pad, scale, shift, (N, OH, OW, C) = src
    y = y_pad[: N * OH * OW, :C].astype(jnp.float32) * scale + shift
    y = jnp.maximum(y, NEG_SLOPE * y)
    return y.astype(jnp.bfloat16).reshape(N, OH, OW, C)


def _im2col(src, kh, kw, stride, pad):
    """NHWC activation -> patches (N*OH*OW, C*KH*KW).  K ordering is (C-major,
    tap-minor), matching PyTorch's Conv2d weight flatten.  No channel padding.
    TODO(synk): this gather still materializes patches in HBM via XLA; an in-kernel
    row-band gather (16 per-tap matmuls) would avoid the ~4x traffic blowup."""
    x = _as_nhwc(src)
    N, H, W, C = x.shape
    if pad:
        x = jnp.pad(x, ((0, 0), (pad, pad), (pad, pad), (0, 0)))
    OH = (H + 2 * pad - kh) // stride + 1
    OW = (W + 2 * pad - kw) // stride + 1
    cols = [x[:, i:i + stride * OH:stride, j:j + stride * OW:stride, :]
            for i in range(kh) for j in range(kw)]
    patches = jnp.stack(cols, axis=-1)                 # (N, OH, OW, C, KH*KW)
    return patches.reshape(N * OH * OW, C * kh * kw), N, OH, OW


def spectral_normalize(w, n_iter=30, eps=1e-12):
    """W / sigma_max(W), power iteration on the (Cout, -1) reshape.
    PyTorch's spectral_norm is stateful (1 iteration per forward); here we iterate
    to convergence from a deterministic start — acknowledged semantic difference."""
    # TODO(synk): power iteration is tiny weight-side math; kept in XLA, not Pallas.
    cout = w.shape[0]
    wm = w.reshape(cout, -1)

    def _norm(v):
        return v / (jnp.linalg.norm(v) + eps)

    u = _norm(jnp.ones((cout,), jnp.float32))
    v = _norm(wm.T @ u)
    for _ in range(n_iter):
        v = _norm(wm.T @ u)
        u = _norm(wm @ v)
    sigma = u @ (wm @ v)
    return w / sigma


def _pack_weight(w):
    """(Cout, Cin, KH, KW) f32 -> (K, Cp) bf16 matmul matrix.
    K = Cin*KH*KW exactly (always a multiple of 16; no Cin padding — important for
    layer 1 where Cin=3 -> K=48), Cout zero-padded to the 128-lane dim."""
    cout, cin, kh, kw = w.shape
    cout_p = _round_up(cout, LANE)
    wmat = w.reshape(cout, cin * kh * kw).T                      # (K, Cout)
    return (jnp.zeros((cin * kh * kw, cout_p), jnp.float32)
            .at[:, :cout].set(wmat).astype(jnp.bfloat16))


def conv_bias_layer(src, w, b, stride, pad, apply_relu, out_dtype):
    """spectral_norm(Conv2d, bias=True) [+ LeakyReLU as in-kernel epilogue]."""
    Cp = w.shape[1]
    cout = b.shape[0]
    patches, N, OH, OW = _im2col(src, 4, 4, stride, pad)
    b_row = jnp.zeros((1, Cp), jnp.float32).at[0, :cout].set(b)
    y_pad = pallas_conv_bias_act(patches, w, b_row, out_dtype, apply_relu)
    return y_pad[: N * OH * OW, :cout].reshape(N, OH, OW, cout)


def conv_bn_lrelu_layer(src, w, gamma, beta, stride, pad):
    """spectral_norm(Conv2d, bias=False) -> BatchNorm2d (batch statistics, training
    semantics) -> LeakyReLU(0.2).  The conv kernel fuses the per-channel sums for
    the batch stats; the normalization + LeakyReLU themselves are deferred to the
    next layer's patch producer (see _as_nhwc), so no extra HBM pass is made."""
    cout = gamma.shape[0]
    patches, N, OH, OW = _im2col(src, 4, 4, stride, pad)
    M = N * OH * OW
    y_pad, sum_c, sq_c = pallas_conv_stats(patches, w)
    mean = sum_c[:cout] / M
    # single-pass E[x^2]-E[x]^2 (clamped); biased variance as in PyTorch's forward
    var = jnp.maximum(sq_c[:cout] / M - mean * mean, 0.0)
    scale = gamma * jax.lax.rsqrt(var + BN_EPS)
    shift = beta - mean * scale
    return (y_pad, scale, shift, (N, OH, OW, cout))


def dcgan_discriminator(x_nchw, params):
    """Input x: (N, img_channels, 64, 64) NCHW.  Output: (N, 1, 1, 1) NCHW."""
    h = jnp.transpose(x_nchw, (0, 2, 3, 1)).astype(jnp.bfloat16)   # NHWC internal
    # block 1: SN-conv (bias) + LeakyReLU (in-kernel epilogue)
    h = conv_bias_layer(h, params["w1"], params["b1"], 2, 1,
                        apply_relu=True, out_dtype=jnp.bfloat16)
    # blocks 2-4: SN-conv (no bias) + BN + LeakyReLU (BN apply deferred/fused)
    for i in (2, 3, 4):
        h = conv_bn_lrelu_layer(h, params[f"w{i}"], params[f"g{i}"],
                                params[f"be{i}"], 2, 1)
    # block 5: SN-conv (bias), k4 s2 p0, no activation
    y = conv_bias_layer(h, params["w5"], params["b5"], 2, 0,
                        apply_relu=False, out_dtype=jnp.float32)
    return jnp.transpose(y, (0, 3, 1, 2))


def init_params(key, img_channels, features_disc):
    ks = jax.random.split(key, 12)
    fd = features_disc

    def conv_w(k, cout, cin, ksz):
        return 0.02 * jax.random.normal(k, (cout, cin, ksz, ksz), jnp.float32)

    p = {}
    p["w1"] = _pack_weight(spectral_normalize(conv_w(ks[0], fd, img_channels, 4)))
    p["b1"] = 0.02 * jax.random.normal(ks[1], (fd,), jnp.float32)
    chans = [fd, fd * 2, fd * 4, fd * 8]
    for i, (cin, cout) in enumerate(zip(chans[:-1], chans[1:]), start=2):
        p[f"w{i}"] = _pack_weight(spectral_normalize(conv_w(ks[2 * i], cout, cin, 4)))
        p[f"g{i}"] = jnp.ones((cout,), jnp.float32)     # BN gamma init
        p[f"be{i}"] = jnp.zeros((cout,), jnp.float32)   # BN beta init
    p["w5"] = _pack_weight(spectral_normalize(conv_w(ks[10], 1, fd * 8, 4)))
    p["b5"] = 0.02 * jax.random.normal(ks[11], (1,), jnp.float32)
    return p


if __name__ == "__main__":
    key = jax.random.PRNGKey(0)
    k_x, k_p = jax.random.split(key)

    # The 5 stride-2 convs (the last one with padding=0) require a 64x64 input to
    # reach a 1x1 output; keep batch / feature widths small instead.
    batch, img_channels, features_disc = 2, 3, 8
    x = jax.random.normal(k_x, (batch, img_channels, 64, 64), jnp.float32)
    params = init_params(k_p, img_channels, features_disc)

    fwd = jax.jit(dcgan_discriminator)
    out = jax.block_until_ready(fwd(x, params))
    assert out.shape == (batch, 1, 1, 1), out.shape
    assert bool(jnp.all(jnp.isfinite(out)))
    print("KERNEL_OK")
</pallas_src>

<mosaic_0001>
module attributes {stable_mosaic.version = 11 : i64} {
  func.func @_conv_bias_act_kernel(%arg0: i32, %arg1: memref<1024x48xbf16, #tpu.memory_space<vmem>>, %arg2: memref<48x128xbf16, #tpu.memory_space<vmem>>, %arg3: memref<1x128xf32, #tpu.memory_space<vmem>>, %arg4: memref<1024x128xbf16, #tpu.memory_space<vmem>>) attributes {dimension_semantics = [#tpu.dimension_semantics<parallel>], iteration_bounds = array<i64: 2>, scalar_prefetch = 0 : i64, scratch_operands = 0 : i64, tpu.core_type = #tpu.core_type<tc>, window_params = [{transform_indices = @transform_0, window_bounds = array<i64: 1024, 48>}, {pipeline_mode = #tpu.pipeline_mode<synchronous>, transform_indices = @transform_1, window_bounds = array<i64: 48, 128>}, {pipeline_mode = #tpu.pipeline_mode<synchronous>, transform_indices = @transform_2, window_bounds = array<i64: 1, 128>}, {transform_indices = @transform_3, window_bounds = array<i64: 1024, 128>}]} {
    %c0 = arith.constant 0 : index
    %c0_0 = arith.constant 0 : index
    %0 = vector.load %arg1[%c0, %c0_0] : memref<1024x48xbf16, #tpu.memory_space<vmem>>, vector<1024x48xbf16>
    %c0_1 = arith.constant 0 : index
    %c0_2 = arith.constant 0 : index
    %1 = vector.load %arg2[%c0_1, %c0_2] : memref<48x128xbf16, #tpu.memory_space<vmem>>, vector<48x128xbf16>
    %cst = arith.constant dense<0.000000e+00> : vector<1024x128xf32>
    %2 = tpu.matmul %0, %1, %cst {dimension_numbers = #tpu.dot_dimension_numbers<[1], [0], [0], [1], [0, 0, 1, 1], [], []>} : vector<1024x48xbf16>, vector<48x128xbf16>, vector<1024x128xf32> -> vector<1024x128xf32>
    %c0_3 = arith.constant 0 : index
    %c0_4 = arith.constant 0 : index
    %3 = vector.load %arg3[%c0_3, %c0_4] : memref<1x128xf32, #tpu.memory_space<vmem>>, vector<1x128xf32>
    %4 = vector.broadcast %3 : vector<1x128xf32> to vector<1024x128xf32>
    %5 = arith.addf %2, %4 : vector<1024x128xf32>
    %cst_5 = arith.constant 2.000000e-01 : f32
    %6 = vector.broadcast %cst_5 : f32 to vector<1024x128xf32>
    %7 = arith.mulf %6, %5 : vector<1024x128xf32>
    %8 = arith.maximumf %5, %7 : vector<1024x128xf32>
    %9 = arith.truncf %8 : vector<1024x128xf32> to vector<1024x128xbf16>
    %c0_6 = arith.constant 0 : index
    %c0_7 = arith.constant 0 : index
    %10 = vector.load %arg4[%c0_6, %c0_7] : memref<1024x128xbf16, #tpu.memory_space<vmem>>, vector<1024x128xbf16>
    tpu.vector_store %arg4[%c0_6, %c0_7], %9 {strides = array<i32>} : memref<1024x128xbf16, #tpu.memory_space<vmem>>, vector<1024x128xbf16>,
    return
  }
  func.func @transform_0(%arg0: i32) -> (i32, i32) {
    %c0_i32 = arith.constant 0 : i32
    %c0_i32_0 = arith.constant 0 : i32
    return %arg0, %c0_i32 : i32, i32
  }
  func.func @transform_1(%arg0: i32) -> (i32, i32) {
    %c0_i32 = arith.constant 0 : i32
    %c0_i32_0 = arith.constant 0 : i32
    %c0_i32_1 = arith.constant 0 : i32
    return %c0_i32, %c0_i32_0 : i32, i32
  }
  func.func @transform_2(%arg0: i32) -> (i32, i32) {
    %c0_i32 = arith.constant 0 : i32
    %c0_i32_0 = arith.constant 0 : i32
    %c0_i32_1 = arith.constant 0 : i32
    return %c0_i32, %c0_i32_0 : i32, i32
  }
  func.func @transform_3(%arg0: i32) -> (i32, i32) {
    %c0_i32 = arith.constant 0 : i32
    %c0_i32_0 = arith.constant 0 : i32
    return %arg0, %c0_i32 : i32, i32
  }
}

module attributes {stable_mosaic.version = 11 : i64} {
  func.func @_conv_stats_kernel(%arg0: i32, %arg1: memref<512x128xbf16, #tpu.memory_space<vmem>>, %arg2: memref<128x128xbf16, #tpu.memory_space<vmem>>, %arg3: memref<512x128xbf16, #tpu.memory_space<vmem>>, %arg4: memref<8x128xf32, #tpu.memory_space<vmem>>, %arg5: memref<8x128xf32, #tpu.memory_space<vmem>>) attributes {dimension_semantics = [#tpu.dimension_semantics<parallel>], iteration_bounds = array<i64: 1>, scalar_prefetch = 0 : i64, scratch_operands = 0 : i64, tpu.core_type = #tpu.core_type<tc>, window_params = [{transform_indices = @transform_0, window_bounds = array<i64: 512, 128>}, {pipeline_mode = #tpu.pipeline_mode<synchronous>, transform_indices = @transform_1, window_bounds = array<i64: 128, 128>}, {transform_indices = @transform_2, window_bounds = array<i64: 512, 128>}, {transform_indices = @transform_3, window_bounds = array<i64: 8, 128>}, {transform_indices = @transform_4, window_bounds = array<i64: 8, 128>}]} {
    %c0 = arith.constant 0 : index
    %c0_0 = arith.constant 0 : index
    %0 = vector.load %arg1[%c0, %c0_0] : memref<512x128xbf16, #tpu.memory_space<vmem>>, vector<512x128xbf16>
    %c0_1 = arith.constant 0 : index
    %c0_2 = arith.constant 0 : index
    %1 = vector.load %arg2[%c0_1, %c0_2] : memref<128x128xbf16, #tpu.memory_space<vmem>>, vector<128x128xbf16>
    %cst = arith.constant dense<0.000000e+00> : vector<512x128xf32>
    %2 = tpu.matmul %0, %1, %cst {dimension_numbers = #tpu.dot_dimension_numbers<[1], [0], [0], [1], [0, 0, 1, 1], [], []>} : vector<512x128xbf16>, vector<128x128xbf16>, vector<512x128xf32> -> vector<512x128xf32>
    %3 = arith.truncf %2 : vector<512x128xf32> to vector<512x128xbf16>
    %c0_3 = arith.constant 0 : index
    %c0_4 = arith.constant 0 : index
    %4 = vector.load %arg3[%c0_3, %c0_4] : memref<512x128xbf16, #tpu.memory_space<vmem>>, vector<512x128xbf16>
    tpu.vector_store %arg3[%c0_3, %c0_4], %3 {strides = array<i32>} : memref<512x128xbf16, #tpu.memory_space<vmem>>, vector<512x128xbf16>,
    %cst_5 = arith.constant dense<0.000000e+00> : vector<128xf32>
    %5 = vector.multi_reduction <add>, %2, %cst_5 [0] : vector<512x128xf32> to vector<128xf32>
    %6 = vector.shape_cast %5 : vector<128xf32> to vector<1x128xf32>
    %c0_6 = arith.constant 0 : index
    %c0_7 = arith.constant 0 : index
    %7 = vector.load %arg4[%c0_6, %c0_7] : memref<8x128xf32, #tpu.memory_space<vmem>>, vector<1x128xf32>
    tpu.vector_store %arg4[%c0_6, %c0_7], %6 {strides = array<i32>} : memref<8x128xf32, #tpu.memory_space<vmem>>, vector<1x128xf32>,
    %8 = arith.mulf %2, %2 : vector<512x128xf32>
    %cst_8 = arith.constant dense<0.000000e+00> : vector<128xf32>
    %9 = vector.multi_reduction <add>, %8, %cst_8 [0] : vector<512x128xf32> to vector<128xf32>
    %10 = vector.shape_cast %9 : vector<128xf32> to vector<1x128xf32>
    %c0_9 = arith.constant 0 : index
    %c0_10 = arith.constant 0 : index
    %11 = vector.load %arg5[%c0_9, %c0_10] : memref<8x128xf32, #tpu.memory_space<vmem>>, vector<1x128xf32>
    tpu.vector_store %arg5[%c0_9, %c0_10], %10 {strides = array<i32>} : memref<8x128xf32, #tpu.memory_space<vmem>>, vector<1x128xf32>,
    return
  }
  func.func @transform_0(%arg0: i32) -> (i32, i32) {
    %c0_i32 = arith.constant 0 : i32
    %c0_i32_0 = arith.constant 0 : i32
    return %arg0, %c0_i32 : i32, i32
  }
  func.func @transform_1(%arg0: i32) -> (i32, i32) {
    %c0_i32 = arith.constant 0 : i32
    %c0_i32_0 = arith.constant 0 : i32
    %c0_i32_1 = arith.constant 0 : i32
    return %c0_i32, %c0_i32_0 : i32, i32
  }
  func.func @transform_2(%arg0: i32) -> (i32, i32) {
    %c0_i32 = arith.constant 0 : i32
    %c0_i32_0 = arith.constant 0 : i32
    return %arg0, %c0_i32 : i32, i32
  }
  func.func @transform_3(%arg0: i32) -> (i32, i32) {
    %c0_i32 = arith.constant 0 : i32
    %c0_i32_0 = arith.constant 0 : i32
    return %arg0, %c0_i32 : i32, i32
  }
  func.func @transform_4(%arg0: i32) -> (i32, i32) {
    %c0_i32 = arith.constant 0 : i32
    %c0_i32_0 = arith.constant 0 : i32
    return %arg0, %c0_i32 : i32, i32
  }
}

module attributes {stable_mosaic.version = 11 : i64} {
  func.func @_conv_stats_kernel(%arg0: i32, %arg1: memref<128x256xbf16, #tpu.memory_space<vmem>>, %arg2: memref<256x128xbf16, #tpu.memory_space<vmem>>, %arg3: memref<128x128xbf16, #tpu.memory_space<vmem>>, %arg4: memref<8x128xf32, #tpu.memory_space<vmem>>, %arg5: memref<8x128xf32, #tpu.memory_space<vmem>>) attributes {dimension_semantics = [#tpu.dimension_semantics<parallel>], iteration_bounds = array<i64: 1>, scalar_prefetch = 0 : i64, scratch_operands = 0 : i64, tpu.core_type = #tpu.core_type<tc>, window_params = [{transform_indices = @transform_0, window_bounds = array<i64: 128, 256>}, {pipeline_mode = #tpu.pipeline_mode<synchronous>, transform_indices = @transform_1, window_bounds = array<i64: 256, 128>}, {transform_indices = @transform_2, window_bounds = array<i64: 128, 128>}, {transform_indices = @transform_3, window_bounds = array<i64: 8, 128>}, {transform_indices = @transform_4, window_bounds = array<i64: 8, 128>}]} {
    %c0 = arith.constant 0 : index
    %c0_0 = arith.constant 0 : index
    %0 = vector.load %arg1[%c0, %c0_0] : memref<128x256xbf16, #tpu.memory_space<vmem>>, vector<128x256xbf16>
    %c0_1 = arith.constant 0 : index
    %c0_2 = arith.constant 0 : index
    %1 = vector.load %arg2[%c0_1, %c0_2] : memref<256x128xbf16, #tpu.memory_space<vmem>>, vector<256x128xbf16>
    %cst = arith.constant dense<0.000000e+00> : vector<128x128xf32>
    %2 = tpu.matmul %0, %1, %cst {dimension_numbers = #tpu.dot_dimension_numbers<[1], [0], [0], [1], [0, 0, 1, 1], [], []>} : vector<128x256xbf16>, vector<256x128xbf16>, vector<128x128xf32> -> vector<128x128xf32>
    %3 = arith.truncf %2 : vector<128x128xf32> to vector<128x128xbf16>
    %c0_3 = arith.constant 0 : index
    %c0_4 = arith.constant 0 : index
    %4 = vector.load %arg3[%c0_3, %c0_4] : memref<128x128xbf16, #tpu.memory_space<vmem>>, vector<128x128xbf16>
    tpu.vector_store %arg3[%c0_3, %c0_4], %3 {strides = array<i32>} : memref<128x128xbf16, #tpu.memory_space<vmem>>, vector<128x128xbf16>,
    %cst_5 = arith.constant dense<0.000000e+00> : vector<128xf32>
    %5 = vector.multi_reduction <add>, %2, %cst_5 [0] : vector<128x128xf32> to vector<128xf32>
    %6 = vector.shape_cast %5 : vector<128xf32> to vector<1x128xf32>
    %c0_6 = arith.constant 0 : index
    %c0_7 = arith.constant 0 : index
    %7 = vector.load %arg4[%c0_6, %c0_7] : memref<8x128xf32, #tpu.memory_space<vmem>>, vector<1x128xf32>
    tpu.vector_store %arg4[%c0_6, %c0_7], %6 {strides = array<i32>} : memref<8x128xf32, #tpu.memory_space<vmem>>, vector<1x128xf32>,
    %8 = arith.mulf %2, %2 : vector<128x128xf32>
    %cst_8 = arith.constant dense<0.000000e+00> : vector<128xf32>
    %9 = vector.multi_reduction <add>, %8, %cst_8 [0] : vector<128x128xf32> to vector<128xf32>
    %10 = vector.shape_cast %9 : vector<128xf32> to vector<1x128xf32>
    %c0_9 = arith.constant 0 : index
    %c0_10 = arith.constant 0 : index
    %11 = vector.load %arg5[%c0_9, %c0_10] : memref<8x128xf32, #tpu.memory_space<vmem>>, vector<1x128xf32>
    tpu.vector_store %arg5[%c0_9, %c0_10], %10 {strides = array<i32>} : memref<8x128xf32, #tpu.memory_space<vmem>>, vector<1x128xf32>,
    return
  }
  func.func @transform_0(%arg0: i32) -> (i32, i32) {
    %c0_i32 = arith.constant 0 : i32
    %c0_i32_0 = arith.constant 0 : i32
    return %arg0, %c0_i32 : i32, i32
  }
  func.func @transform_1(%arg0: i32) -> (i32, i32) {
    %c0_i32 = arith.constant 0 : i32
    %c0_i32_0 = arith.constant 0 : i32
    %c0_i32_1 = arith.constant 0 : i32
    return %c0_i32, %c0_i32_0 : i32, i32
  }
  func.func @transform_2(%arg0: i32) -> (i32, i32) {
    %c0_i32 = arith.constant 0 : i32
    %c0_i32_0 = arith.constant 0 : i32
    return %arg0, %c0_i32 : i32, i32
  }
  func.func @transform_3(%arg0: i32) -> (i32, i32) {
    %c0_i32 = arith.constant 0 : i32
    %c0_i32_0 = arith.constant 0 : i32
    return %arg0, %c0_i32 : i32, i32
  }
  func.func @transform_4(%arg0: i32) -> (i32, i32) {
    %c0_i32 = arith.constant 0 : i32
    %c0_i32_0 = arith.constant 0 : i32
    return %arg0, %c0_i32 : i32, i32
  }
}

module attributes {stable_mosaic.version = 11 : i64} {
  func.func @_conv_stats_kernel(%arg0: i32, %arg1: memref<32x512xbf16, #tpu.memory_space<vmem>>, %arg2: memref<512x128xbf16, #tpu.memory_space<vmem>>, %arg3: memref<32x128xbf16, #tpu.memory_space<vmem>>, %arg4: memref<8x128xf32, #tpu.memory_space<vmem>>, %arg5: memref<8x128xf32, #tpu.memory_space<vmem>>) attributes {dimension_semantics = [#tpu.dimension_semantics<parallel>], iteration_bounds = array<i64: 1>, scalar_prefetch = 0 : i64, scratch_operands = 0 : i64, tpu.core_type = #tpu.core_type<tc>, window_params = [{transform_indices = @transform_0, window_bounds = array<i64: 32, 512>}, {pipeline_mode = #tpu.pipeline_mode<synchronous>, transform_indices = @transform_1, window_bounds = array<i64: 512, 128>}, {transform_indices = @transform_2, window_bounds = array<i64: 32, 128>}, {transform_indices = @transform_3, window_bounds = array<i64: 8, 128>}, {transform_indices = @transform_4, window_bounds = array<i64: 8, 128>}]} {
    %c0 = arith.constant 0 : index
    %c0_0 = arith.constant 0 : index
    %0 = vector.load %arg1[%c0, %c0_0] : memref<32x512xbf16, #tpu.memory_space<vmem>>, vector<32x512xbf16>
    %c0_1 = arith.constant 0 : index
    %c0_2 = arith.constant 0 : index
    %1 = vector.load %arg2[%c0_1, %c0_2] : memref<512x128xbf16, #tpu.memory_space<vmem>>, vector<512x128xbf16>
    %cst = arith.constant dense<0.000000e+00> : vector<32x128xf32>
    %2 = tpu.matmul %0, %1, %cst {dimension_numbers = #tpu.dot_dimension_numbers<[1], [0], [0], [1], [0, 0, 1, 1], [], []>} : vector<32x512xbf16>, vector<512x128xbf16>, vector<32x128xf32> -> vector<32x128xf32>
    %3 = arith.truncf %2 : vector<32x128xf32> to vector<32x128xbf16>
    %c0_3 = arith.constant 0 : index
    %c0_4 = arith.constant 0 : index
    %4 = vector.load %arg3[%c0_3, %c0_4] : memref<32x128xbf16, #tpu.memory_space<vmem>>, vector<32x128xbf16>
    tpu.vector_store %arg3[%c0_3, %c0_4], %3 {strides = array<i32>} : memref<32x128xbf16, #tpu.memory_space<vmem>>, vector<32x128xbf16>,
    %cst_5 = arith.constant dense<0.000000e+00> : vector<128xf32>
    %5 = vector.multi_reduction <add>, %2, %cst_5 [0] : vector<32x128xf32> to vector<128xf32>
    %6 = vector.shape_cast %5 : vector<128xf32> to vector<1x128xf32>
    %c0_6 = arith.constant 0 : index
    %c0_7 = arith.constant 0 : index
    %7 = vector.load %arg4[%c0_6, %c0_7] : memref<8x128xf32, #tpu.memory_space<vmem>>, vector<1x128xf32>
    tpu.vector_store %arg4[%c0_6, %c0_7], %6 {strides = array<i32>} : memref<8x128xf32, #tpu.memory_space<vmem>>, vector<1x128xf32>,
    %8 = arith.mulf %2, %2 : vector<32x128xf32>
    %cst_8 = arith.constant dense<0.000000e+00> : vector<128xf32>
    %9 = vector.multi_reduction <add>, %8, %cst_8 [0] : vector<32x128xf32> to vector<128xf32>
    %10 = vector.shape_cast %9 : vector<128xf32> to vector<1x128xf32>
    %c0_9 = arith.constant 0 : index
    %c0_10 = arith.constant 0 : index
    %11 = vector.load %arg5[%c0_9, %c0_10] : memref<8x128xf32, #tpu.memory_space<vmem>>, vector<1x128xf32>
    tpu.vector_store %arg5[%c0_9, %c0_10], %10 {strides = array<i32>} : memref<8x128xf32, #tpu.memory_space<vmem>>, vector<1x128xf32>,
    return
  }
  func.func @transform_0(%arg0: i32) -> (i32, i32) {
    %c0_i32 = arith.constant 0 : i32
    %c0_i32_0 = arith.constant 0 : i32
    return %arg0, %c0_i32 : i32, i32
  }
  func.func @transform_1(%arg0: i32) -> (i32, i32) {
    %c0_i32 = arith.constant 0 : i32
    %c0_i32_0 = arith.constant 0 : i32
    %c0_i32_1 = arith.constant 0 : i32
    return %c0_i32, %c0_i32_0 : i32, i32
  }
  func.func @transform_2(%arg0: i32) -> (i32, i32) {
    %c0_i32 = arith.constant 0 : i32
    %c0_i32_0 = arith.constant 0 : i32
    return %arg0, %c0_i32 : i32, i32
  }
  func.func @transform_3(%arg0: i32) -> (i32, i32) {
    %c0_i32 = arith.constant 0 : i32
    %c0_i32_0 = arith.constant 0 : i32
    return %arg0, %c0_i32 : i32, i32
  }
  func.func @transform_4(%arg0: i32) -> (i32, i32) {
    %c0_i32 = arith.constant 0 : i32
    %c0_i32_0 = arith.constant 0 : i32
    return %arg0, %c0_i32 : i32, i32
  }
}

module attributes {stable_mosaic.version = 11 : i64} {
  func.func @_conv_bias_act_kernel(%arg0: i32, %arg1: memref<8x1024xbf16, #tpu.memory_space<vmem>>, %arg2: memref<1024x128xbf16, #tpu.memory_space<vmem>>, %arg3: memref<1x128xf32, #tpu.memory_space<vmem>>, %arg4: memref<8x128xf32, #tpu.memory_space<vmem>>) attributes {dimension_semantics = [#tpu.dimension_semantics<parallel>], iteration_bounds = array<i64: 1>, scalar_prefetch = 0 : i64, scratch_operands = 0 : i64, tpu.core_type = #tpu.core_type<tc>, window_params = [{transform_indices = @transform_0, window_bounds = array<i64: 8, 1024>}, {pipeline_mode = #tpu.pipeline_mode<synchronous>, transform_indices = @transform_1, window_bounds = array<i64: 1024, 128>}, {pipeline_mode = #tpu.pipeline_mode<synchronous>, transform_indices = @transform_2, window_bounds = array<i64: 1, 128>}, {transform_indices = @transform_3, window_bounds = array<i64: 8, 128>}]} {
    %c0 = arith.constant 0 : index
    %c0_0 = arith.constant 0 : index
    %0 = vector.load %arg1[%c0, %c0_0] : memref<8x1024xbf16, #tpu.memory_space<vmem>>, vector<8x1024xbf16>
    %c0_1 = arith.constant 0 : index
    %c0_2 = arith.constant 0 : index
    %1 = vector.load %arg2[%c0_1, %c0_2] : memref<1024x128xbf16, #tpu.memory_space<vmem>>, vector<1024x128xbf16>
    %cst = arith.constant dense<0.000000e+00> : vector<8x128xf32>
    %2 = tpu.matmul %0, %1, %cst {dimension_numbers = #tpu.dot_dimension_numbers<[1], [0], [0], [1], [0, 0, 1, 1], [], []>} : vector<8x1024xbf16>, vector<1024x128xbf16>, vector<8x128xf32> -> vector<8x128xf32>
    %c0_3 = arith.constant 0 : index
    %c0_4 = arith.constant 0 : index
    %3 = vector.load %arg3[%c0_3, %c0_4] : memref<1x128xf32, #tpu.memory_space<vmem>>, vector<1x128xf32>
    %4 = vector.broadcast %3 : vector<1x128xf32> to vector<8x128xf32>
    %5 = arith.addf %2, %4 : vector<8x128xf32>
    %c0_5 = arith.constant 0 : index
    %c0_6 = arith.constant 0 : index
    %6 = vector.load %arg4[%c0_5, %c0_6] : memref<8x128xf32, #tpu.memory_space<vmem>>, vector<8x128xf32>
    tpu.vector_store %arg4[%c0_5, %c0_6], %5 {strides = array<i32>} : memref<8x128xf32, #tpu.memory_space<vmem>>, vector<8x128xf32>,
    return
  }
  func.func @transform_0(%arg0: i32) -> (i32, i32) {
    %c0_i32 = arith.constant 0 : i32
    %c0_i32_0 = arith.constant 0 : i32
    return %arg0, %c0_i32 : i32, i32
  }
  func.func @transform_1(%arg0: i32) -> (i32, i32) {
    %c0_i32 = arith.constant 0 : i32
    %c0_i32_0 = arith.constant 0 : i32
    %c0_i32_1 = arith.constant 0 : i32
    return %c0_i32, %c0_i32_0 : i32, i32
  }
  func.func @transform_2(%arg0: i32) -> (i32, i32) {
    %c0_i32 = arith.constant 0 : i32
    %c0_i32_0 = arith.constant 0 : i32
    %c0_i32_1 = arith.constant 0 : i32
    return %c0_i32, %c0_i32_0 : i32, i32
  }
  func.func @transform_3(%arg0: i32) -> (i32, i32) {
    %c0_i32 = arith.constant 0 : i32
    %c0_i32_0 = arith.constant 0 : i32
    return %arg0, %c0_i32 : i32, i32
  }
}

</mosaic_0001>

<llo_original>
// kernel: dcgan_discriminator.5
$region0: #{dcgan_discriminator.5}
  #allocation0 [shape = 'u32[]', space=smem, size = 0x4, offset = 0x4, fixed_abs, tag = 'smem constant byte address 0x4 - core index']
  #allocation1 [shape = 'u32[144,128]{1,0:T(1,128)}', space=vmem, size = 0x12000, scoped, tag = 'internal scratch']
  %s0 = inlined_call_operand.vmem [shape: bf16[2048,48], index: 0, kind: input, shape index: {}]
  %s1 = inlined_call_operand.vmem [shape: bf16[48,128], index: 1, kind: input, shape index: {}]
  %s2 = inlined_call_operand.vmem [shape: f32[1,128], index: 2, kind: input, shape index: {}]
  %s3 = inlined_call_operand.vmem [shape: bf16[2048,128], index: 3, kind: output, shape index: {}]
  %s4 = sld [smem:[#allocation0]]
  $region45: #{dcgan_discriminator.5} parent=0
    _
  %s6 = ssub.s32 1, %s4
  %s7 = scalar_select 0, %s6, %s4
  loop: start=0, step=1, limit=4
  $region2: #{dcgan_discriminator.5} parent=0 // loop_pre_header
    _
  $region3: #{dcgan_discriminator.5} parent=0 // loop_header
    %s9 = sphi 0, %s13
    %p10 = scmp.ge.s32.totalorder %s9, 4
    %s19 = sphi 0, %s21
    %s22 = sphi 0, %s19
    %s23 = sphi 0, %s22
    %s39 = sphi 0, %s23
    %s43 = sphi 0, %s43
    %s45 = sphi 0, %s43
    %s46 = sphi 0, %s45
    %s60 = sphi 0, %s46
    %s64 = sphi 0, %s64
    %s66 = sphi 0, %s64
    %s67 = sphi 0, %s66
    %s81 = sphi 0, %s67
    %s87 = sphi 0, %s89
    %s90 = sphi 0, %s87
    %s91 = sphi 0, %s90
    %s107 = sphi 0, %s91
  $region4: #{dcgan_discriminator.5} parent=0 // loop_header_branch
    %12 = sbr.rel (%p10) target = $region8
  $region5: #{dcgan_discriminator.5} parent=0 // loop_body
    %s14 = ssub.s32 %s9, 1
    %s15 = ssub.s32 %s9, 2
    %s16 = sadd.s32 %s9, 1
    %s17 = ssub.s32 %s9, %s16
    %p18 = scmp.eq.s32.totalorder %s17, 0
    %s20 = sadd.s32 %s19, 1
    %s21 = scalar_select %p18, %s19, %s20
    %p24 = pneg %p18
    %p25 = scmp.eq.s32.totalorder %s9, 1
    %p26 = por %p24, %p25
    %p27 = scmp.ne.s32.totalorder %s19, %s22
    %p28 = scmp.eq.s32.totalorder %s9, 0
    %p29 = por %p27, %p28
    %p30 = scmp.ne.s32.totalorder %s19, %s22
    %p31 = scmp.eq.s32.totalorder %s14, 1
    %p32 = por %p30, %p31
    %p33 = scmp.ne.s32.totalorder %s22, %s23
    %p34 = scmp.eq.s32.totalorder %s14, 0
    %p35 = por %p33, %p34
    %p36 = scmp.ne.s32.totalorder %s22, %s23
    %p37 = scmp.eq.s32.totalorder %s15, 1
    %p38 = por %p36, %p37
    %p40 = scmp.ne.s32.totalorder %s23, %s39
    %p41 = scmp.eq.s32.totalorder %s15, 0
    %p42 = por %p40, %p41
    %s44 = sadd.s32 %s43, 1
    %p47 = scmp.eq.s32.totalorder %s9, 1
    %p48 = scmp.ne.s32.totalorder %s43, %s45
    %p49 = scmp.eq.s32.totalorder %s9, 0
    %p50 = por %p48, %p49
    %p51 = scmp.ne.s32.totalorder %s43, %s45
    %p52 = scmp.eq.s32.totalorder %s14, 1
    %p53 = por %p51, %p52
    %p54 = scmp.ne.s32.totalorder %s45, %s46
    %p55 = scmp.eq.s32.totalorder %s14, 0
    %p56 = por %p54, %p55
    %p57 = scmp.ne.s32.totalorder %s45, %s46
    %p58 = scmp.eq.s32.totalorder %s15, 1
    %p59 = por %p57, %p58
    %p61 = scmp.ne.s32.totalorder %s46, %s60
    %p62 = scmp.eq.s32.totalorder %s15, 0
    %p63 = por %p61, %p62
    %s65 = sadd.s32 %s64, 1
    %p68 = scmp.eq.s32.totalorder %s9, 1
    %p69 = scmp.ne.s32.totalorder %s64, %s66
    %p70 = scmp.eq.s32.totalorder %s9, 0
    %p71 = por %p69, %p70
    %p72 = scmp.ne.s32.totalorder %s64, %s66
    %p73 = scmp.eq.s32.totalorder %s14, 1
    %p74 = por %p72, %p73
    %p75 = scmp.ne.s32.totalorder %s66, %s67
    %p76 = scmp.eq.s32.totalorder %s14, 0
    %p77 = por %p75, %p76
    %p78 = scmp.ne.s32.totalorder %s66, %s67
    %p79 = scmp.eq.s32.totalorder %s15, 1
    %p80 = por %p78, %p79
    %p82 = scmp.ne.s32.totalorder %s67, %s81
    %p83 = scmp.eq.s32.totalorder %s15, 0
    %p84 = por %p82, %p83
    %s85 = ssub.s32 %s9, %s16
    %p86 = scmp.eq.s32.totalorder %s85, 0
    %s88 = sadd.s32 %s87, 1
    %s89 = scalar_select %p86, %s87, %s88
    %p92 = pneg %p86
    %p93 = scmp.eq.s32.totalorder %s9, 1
    %p94 = por %p92, %p93
    %p95 = scmp.ne.s32.totalorder %s87, %s90
    %p96 = scmp.eq.s32.totalorder %s9, 0
    %p97 = por %p95, %p96
    %p98 = scmp.ne.s32.totalorder %s87, %s90
    %p99 = scmp.eq.s32.totalorder %s14, 1
    %p100 = por %p98, %p99
    %p101 = scmp.ne.s32.totalorder %s90, %s91
    %p102 = scmp.eq.s32.totalorder %s14, 0
    %p103 = por %p101, %p102
    %p104 = scmp.ne.s32.totalorder %s90, %s91
    %p105 = scmp.eq.s32.totalorder %s15, 1
    %p106 = por %p104, %p105
    %p108 = scmp.ne.s32.totalorder %s91, %s107
    %p109 = scmp.eq.s32.totalorder %s15, 0
    %p110 = por %p108, %p109
    %p111 = scmp.le.s32.totalorder 1, %s9
    %p112 = scmp.lt.s32.totalorder %s9, 3
    %p113 = pnand %p111, %p112
    %p114 = pneg %p113
    // Predicated region
    $region9: #{dcgan_discriminator.5} parent=5 // pred_check
      _
    $region10: #{dcgan_discriminator.5} parent=5 // pred_check_branch
      %116 = sbr.rel (%p113) target = $region12
    $region11: #{dcgan_discriminator.5} parent=5 // pred_region
      %s117 = ssub.s32 %s9, 1
      // Predicated region
      $region13: #{dcgan_discriminator.5} parent=11 // pred_check
        %p118 = pneg %p56
      $region14: #{dcgan_discriminator.5} parent=11 // pred_check_branch
        %120 = sbr.rel (%p118) target = $region16
      $region15: #{dcgan_discriminator.5} parent=11 // pred_region
        _
      $region16: #{dcgan_discriminator.5} parent=11 // pred_fallthru
        _
      // Predicated region
      $region17: #{dcgan_discriminator.5} parent=11 // pred_check
        %p121 = pneg %p77
      $region18: #{dcgan_discriminator.5} parent=11 // pred_check_branch
        %123 = sbr.rel (%p121) target = $region20
      $region19: #{dcgan_discriminator.5} parent=11 // pred_region
        _
      $region20: #{dcgan_discriminator.5} parent=11 // pred_fallthru
        _
    $region12: #{dcgan_discriminator.5} parent=5 // pred_fallthru
      _
    %p124 = scmp.lt.s32.totalorder %s9, 2
    // Predicated region
    $region21: #{dcgan_discriminator.5} parent=5 // pred_check
      %p125 = pneg %p124
    $region22: #{dcgan_discriminator.5} parent=5 // pred_check_branch
      %127 = sbr.rel (%p125) target = $region24
    $region23: #{dcgan_discriminator.5} parent=5 // pred_region
      // Predicated region
      $region25: #{dcgan_discriminator.5} parent=23 // pred_check
        %p128 = pneg %p29
      $region26: #{dcgan_discriminator.5} parent=23 // pred_check_branch
        %130 = sbr.rel (%p128) target = $region28
      $region27: #{dcgan_discriminator.5} parent=23 // pred_region
        %s131 = smul.u32 128, %s9
        %p132 = scmp.lt.s32.totalorder %s131, 255
        %s133 = scalar_select %p132, %s131, 255
        %s134 = smul.addr %s133, 4
        %s135 = scalar_lea.vmem %s0, %s134
        %s136 = smul.u32 128, %s9
      $region28: #{dcgan_discriminator.5} parent=23 // pred_fallthru
        _
    $region24: #{dcgan_discriminator.5} parent=5 // pred_fallthru
      _
    %p137 = scmp.le.s32.totalorder 1, %s9
    %p138 = scmp.lt.s32.totalorder %s9, 3
    %p139 = pnand %p137, %p138
    %p140 = pneg %p139
    // Predicated region
    $region29: #{dcgan_discriminator.5} parent=5 // pred_check
      _
    $region30: #{dcgan_discriminator.5} parent=5 // pred_check_branch
      %142 = sbr.rel (%p139) target = $region32
    $region31: #{dcgan_discriminator.5} parent=5 // pred_region
      %s143 = ssub.s32 %s9, 1
      %s144 = smul.u32 128, %s14
      %p145 = scmp.lt.s32.totalorder %s144, 255
      %s146 = scalar_select %p145, %s144, 255
      %s147 = smul.addr %s146, 4
      %s148 = scalar_lea.vmem %s0, %s147
      %p149 = pneg %p35
      %p150 = pneg %p32
      %p151 = pneg %p56
      %p152 = pneg %p53
      %p153 = pneg %p77
      %p154 = pneg %p74
      %p155 = pneg %p103
      %p156 = pneg %p100
      %s157 = smul.u32 128, %s14
      %p158 = scmp.lt.s32.totalorder %s157, 255
      %s159 = scalar_select %p158, %s157, 255
      %s160 = smul.addr %s159, 4
      %s161 = scalar_lea.vmem %s3, %s160
      %s162 = smul.u32 128, %s14
      %p163 = scmp.lt.s32.totalorder %s162, 255
      %s164 = scalar_select %p163, %s162, 255
      %s165 = smul.addr %s164, 4
      %s166 = scalar_lea.vmem %s0, %s165
      %s167 = smul.u32 128, %s14
      %s168 = smul.u32 128, %s14
      %p169 = scmp.lt.s32.totalorder %s168, 255
      %s170 = scalar_select %p169, %s168, 255
      %s171 = smul.addr %s170, 4
      %s172 = scalar_lea.vmem %s3, %s171
      %s173 = smul.u32 128, %s14
      %v175 = vld [vmem:[%s166] sm:$0xf]
      %v176 = vld [vmem:[%s166 + $0x4] sm:$0xf]
      %v177 = vld [vmem:[%s166 + $0x8] sm:$0xf]
      %v178 = vld [vmem:[%s166 + $0xc] sm:$0xf]
      %v179 = vld [vmem:[%s166 + $0x10] sm:$0xf]
      %v180 = vld [vmem:[%s166 + $0x14] sm:$0xf]
      %v181 = vld [vmem:[%s166 + $0x18] sm:$0xf]
      %v182 = vld [vmem:[%s166 + $0x1c] sm:$0xf]
      %v183 = vld [vmem:[%s166 + $0x20] sm:$0xf]
      %v184 = vld [vmem:[%s166 + $0x24] sm:$0xf]
      %v185 = vld [vmem:[%s166 + $0x28] sm:$0xf]
      %v186 = vld [vmem:[%s166 + $0x2c] sm:$0xf]
      %v187 = vld [vmem:[%s166 + $0x30] sm:$0xf]
      %v188 = vld [vmem:[%s166 + $0x34] sm:$0xf]
      %v189 = vld [vmem:[%s166 + $0x38] sm:$0xf]
      %v190 = vld [vmem:[%s166 + $0x3c] sm:$0xf]
      %v191 = vld [vmem:[%s166 + $0x40] sm:$0xf]
      %v192 = vld [vmem:[%s166 + $0x44] sm:$0xf]
      %v193 = vld [vmem:[%s166 + $0x48] sm:$0xf]
      %v194 = vld [vmem:[%s166 + $0x4c] sm:$0xf]
      %v195 = vld [vmem:[%s166 + $0x50] sm:$0xf]
      %v196 = vld [vmem:[%s166 + $0x54] sm:$0xf]
      %v197 = vld [vmem:[%s166 + $0x58] sm:$0xf]
      %v198 = vld [vmem:[%s166 + $0x5c] sm:$0xf]
      %v199 = vld [vmem:[%s166 + $0x60] sm:$0xf]
      %v200 = vld [vmem:[%s166 + $0x64] sm:$0xf]
      %v201 = vld [vmem:[%s166 + $0x68] sm:$0xf]
      %v202 = vld [vmem:[%s166 + $0x6c] sm:$0xf]
      %v203 = vld [vmem:[%s166 + $0x70] sm:$0xf]
      %v204 = vld [vmem:[%s166 + $0x74] sm:$0xf]
      %v205 = vld [vmem:[%s166 + $0x78] sm:$0xf]
      %v206 = vld [vmem:[%s166 + $0x7c] sm:$0xf]
      %v207 = vld [vmem:[%s166 + $0x80] sm:$0xf]
      %v208 = vld [vmem:[%s166 + $0x84] sm:$0xf]
      %v209 = vld [vmem:[%s166 + $0x88] sm:$0xf]
      %v210 = vld [vmem:[%s166 + $0x8c] sm:$0xf]
      %v211 = vld [vmem:[%s166 + $0x90] sm:$0xf]
      %v212 = vld [vmem:[%s166 + $0x94] sm:$0xf]
      %v213 = vld [vmem:[%s166 + $0x98] sm:$0xf]
      %v214 = vld [vmem:[%s166 + $0x9c] sm:$0xf]
      %v215 = vld [vmem:[%s166 + $0xa0] sm:$0xf]
      %v216 = vld [vmem:[%s166 + $0xa4] sm:$0xf]
      %v217 = vld [vmem:[%s166 + $0xa8] sm:$0xf]
      %v218 = vld [vmem:[%s166 + $0xac] sm:$0xf]
      %v219 = vld [vmem:[%s166 + $0xb0] sm:$0xf]
      %v220 = vld [vmem:[%s166 + $0xb4] sm:$0xf]
      %v221 = vld [vmem:[%s166 + $0xb8] sm:$0xf]
      %v222 = vld [vmem:[%s166 + $0xbc] sm:$0xf]
      %v223 = vld [vmem:[%s166 + $0xc0] sm:$0xf]
      %v224 = vld [vmem:[%s166 + $0xc4] sm:$0xf]
      %v225 = vld [vmem:[%s166 + $0xc8] sm:$0xf]
      %v226 = vld [vmem:[%s166 + $0xcc] sm:$0xf]
      %v227 = vld [vmem:[%s166 + $0xd0] sm:$0xf]
      %v228 = vld [vmem:[%s166 + $0xd4] sm:$0xf]
      %v229 = vld [vmem:[%s166 + $0xd8] sm:$0xf]
      %v230 = vld [vmem:[%s166 + $0xdc] sm:$0xf]
      %v231 = vld [vmem:[%s166 + $0xe0] sm:$0xf]
      %v232 = vld [vmem:[%s166 + $0xe4] sm:$0xf]
      %v233 = vld [vmem:[%s166 + $0xe8] sm:$0xf]
      %v234 = vld [vmem:[%s166 + $0xec] sm:$0xf]
      %v235 = vld [vmem:[%s166 + $0xf0] sm:$0xf]
      %v236 = vld [vmem:[%s166 + $0xf4] sm:$0xf]
      %v237 = vld [vmem:[%s166 + $0xf8] sm:$0xf]
      %v238 = vld [vmem:[%s166 + $0xfc] sm:$0xf]
      %v239 = vld [vmem:[%s166 + $0x100] sm:$0xf]
      %v240 = vld [vmem:[%s166 + $0x104] sm:$0xf]
      %v241 = vld [vmem:[%s166 + $0x108] sm:$0xf]
      %v242 = vld [vmem:[%s166 + $0x10c] sm:$0xf]
      %v243 = vld [vmem:[%s166 + $0x110] sm:$0xf]
      %v244 = vld [vmem:[%s166 + $0x114] sm:$0xf]
      %v245 = vld [vmem:[%s166 + $0x118] sm:$0xf]
      %v246 = vld [vmem:[%s166 + $0x11c] sm:$0xf]
      %v247 = vld [vmem:[%s166 + $0x120] sm:$0xf]
      %v248 = vld [vmem:[%s166 + $0x124] sm:$0xf]
      %v249 = vld [vmem:[%s166 + $0x128] sm:$0xf]
      %v250 = vld [vmem:[%s166 + $0x12c] sm:$0xf]
      %v251 = vld [vmem:[%s166 + $0x130] sm:$0xf]
      %v252 = vld [vmem:[%s166 + $0x134] sm:$0xf]
      %v253 = vld [vmem:[%s166 + $0x138] sm:$0xf]
      %v254 = vld [vmem:[%s166 + $0x13c] sm:$0xf]
      %v255 = vld [vmem:[%s166 + $0x140] sm:$0xf]
      %v256 = vld [vmem:[%s166 + $0x144] sm:$0xf]
      %v257 = vld [vmem:[%s166 + $0x148] sm:$0xf]
      %v258 = vld [vmem:[%s166 + $0x14c] sm:$0xf]
      %v259 = vld [vmem:[%s166 + $0x150] sm:$0xf]
      %v260 = vld [vmem:[%s166 + $0x154] sm:$0xf]
      %v261 = vld [vmem:[%s166 + $0x158] sm:$0xf]
      %v262 = vld [vmem:[%s166 + $0x15c] sm:$0xf]
      %v263 = vld [vmem:[%s166 + $0x160] sm:$0xf]
      %v264 = vld [vmem:[%s166 + $0x164] sm:$0xf]
      %v265 = vld [vmem:[%s166 + $0x168] sm:$0xf]
      %v266 = vld [vmem:[%s166 + $0x16c] sm:$0xf]
      %v267 = vld [vmem:[%s166 + $0x170] sm:$0xf]
      %v268 = vld [vmem:[%s166 + $0x174] sm:$0xf]
      %v269 = vld [vmem:[%s166 + $0x178] sm:$0xf]
      %v270 = vld [vmem:[%s166 + $0x17c] sm:$0xf]
      %v271 = vld [vmem:[%s166 + $0x180] sm:$0xf]
      %v272 = vld [vmem:[%s166 + $0x184] sm:$0xf]
      %v273 = vld [vmem:[%s166 + $0x188] sm:$0xf]
      %v274 = vld [vmem:[%s166 + $0x18c] sm:$0xf]
      %v275 = vld [vmem:[%s166 + $0x190] sm:$0xf]
      %v276 = vld [vmem:[%s166 + $0x194] sm:$0xf]
      %v277 = vld [vmem:[%s166 + $0x198] sm:$0xf]
      %v278 = vld [vmem:[%s166 + $0x19c] sm:$0xf]
      %v279 = vld [vmem:[%s166 + $0x1a0] sm:$0xf]
      %v280 = vld [vmem:[%s166 + $0x1a4] sm:$0xf]
      %v281 = vld [vmem:[%s166 + $0x1a8] sm:$0xf]
      %v282 = vld [vmem:[%s166 + $0x1ac] sm:$0xf]
      %v283 = vld [vmem:[%s166 + $0x1b0] sm:$0xf]
      %v284 = vld [vmem:[%s166 + $0x1b4] sm:$0xf]
      %v285 = vld [vmem:[%s166 + $0x1b8] sm:$0xf]
      %v286 = vld [vmem:[%s166 + $0x1bc] sm:$0xf]
      %v287 = vld [vmem:[%s166 + $0x1c0] sm:$0xf]
      %v288 = vld [vmem:[%s166 + $0x1c4] sm:$0xf]
      %v289 = vld [vmem:[%s166 + $0x1c8] sm:$0xf]
      %v290 = vld [vmem:[%s166 + $0x1cc] sm:$0xf]
      %v291 = vld [vmem:[%s166 + $0x1d0] sm:$0xf]
      %v292 = vld [vmem:[%s166 + $0x1d4] sm:$0xf]
      %v293 = vld [vmem:[%s166 + $0x1d8] sm:$0xf]
      %v294 = vld [vmem:[%s166 + $0x1dc] sm:$0xf]
      %v295 = vld [vmem:[%s166 + $0x1e0] sm:$0xf]
      %v296 = vld [vmem:[%s166 + $0x1e4] sm:$0xf]
      %v297 = vld [vmem:[%s166 + $0x1e8] sm:$0xf]
      %v298 = vld [vmem:[%s166 + $0x1ec] sm:$0xf]
      %v299 = vld [vmem:[%s166 + $0x1f0] sm:$0xf]
      %v300 = vld [vmem:[%s166 + $0x1f4] sm:$0xf]
      %v301 = vld [vmem:[%s166 + $0x1f8] sm:$0xf]
      %v302 = vld [vmem:[%s166 + $0x1fc] sm:$0xf]
      %v303 = vld [vmem:[%s1] sm:$0xf]
      %v304 = vld [vmem:[%s1 + $0x4] sm:$0xf]
      %v305 = vld [vmem:[%s1 + $0x8] sm:$0xf]
      %v306 = vld [vmem:[%s1 + $0xc] sm:$0xf]
      %v307 = vld [vmem:[%s1 + $0x10] sm:$0xf]
      %v308 = vld [vmem:[%s1 + $0x14] sm:$0xf]
      %v309 = vld [vmem:[%s2] sm:$0x1]
      %v311 = vlaneseq
      %v312 = vshrl.u32 %v311, 7
      %v313 = vsub.s32 0, %v312
      %v314 = vrot.slane %v309, %v313
      %v444 = vunpack.c.l.b16 %v175
      %v445 = vunpack.c.l.b16 %v176
      %v446 = vunpack.c.l.b16 %v177
      %v447 = vunpack.c.l.b16 %v178
      %v448 = vunpack.c.l.b16 %v179
      %v449 = vunpack.c.l.b16 %v180
      %v450 = vunpack.c.l.b16 %v181
      %v451 = vunpack.c.l.b16 %v182
      %v452 = vunpack.c.l.b16 %v183
      %v453 = vunpack.c.l.b16 %v184
      %v454 = vunpack.c.l.b16 %v185
      %v455 = vunpack.c.l.b16 %v186
      %v456 = vunpack.c.l.b16 %v187
      %v457 = vunpack.c.l.b16 %v188
      %v458 = vunpack.c.l.b16 %v189
      %v459 = vunpack.c.l.b16 %v190
      %v460 = vunpack.c.l.b16 %v191
      %v461 = vunpack.c.l.b16 %v192
      %v462 = vunpack.c.l.b16 %v193
      %v463 = vunpack.c.l.b16 %v194
      %v464 = vunpack.c.l.b16 %v195
      %v465 = vunpack.c.l.b16 %v196
      %v466 = vunpack.c.l.b16 %v197
      %v467 = vunpack.c.l.b16 %v198
      %v468 = vunpack.c.l.b16 %v199
      %v469 = vunpack.c.l.b16 %v200
      %v470 = vunpack.c.l.b16 %v201
      %v471 = vunpack.c.l.b16 %v202
      %v472 = vunpack.c.l.b16 %v203
      %v473 = vunpack.c.l.b16 %v204
      %v474 = vunpack.c.l.b16 %v205
      %v475 = vunpack.c.l.b16 %v206
      %v476 = vunpack.c.l.b16 %v207
      %v477 = vunpack.c.l.b16 %v208
      %v478 = vunpack.c.l.b16 %v209
      %v479 = vunpack.c.l.b16 %v210
      %v480 = vunpack.c.l.b16 %v211
      %v481 = vunpack.c.l.b16 %v212
      %v482 = vunpack.c.l.b16 %v213
      %v483 = vunpack.c.l.b16 %v214
      %v484 = vunpack.c.l.b16 %v215
      %v485 = vunpack.c.l.b16 %v216
      %v486 = vunpack.c.l.b16 %v217
      %v487 = vunpack.c.l.b16 %v218
      %v488 = vunpack.c.l.b16 %v219
      %v489 = vunpack.c.l.b16 %v220
      %v490 = vunpack.c.l.b16 %v221
      %v491 = vunpack.c.l.b16 %v222
      %v492 = vunpack.c.l.b16 %v223
      %v493 = vunpack.c.l.b16 %v224
      %v494 = vunpack.c.l.b16 %v225
      %v495 = vunpack.c.l.b16 %v226
      %v496 = vunpack.c.l.b16 %v227
      %v497 = vunpack.c.l.b16 %v228
      %v498 = vunpack.c.l.b16 %v229
      %v499 = vunpack.c.l.b16 %v230
      %v500 = vunpack.c.l.b16 %v231
      %v501 = vunpack.c.l.b16 %v232
      %v502 = vunpack.c.l.b16 %v233
      %v503 = vunpack.c.l.b16 %v234
      %v504 = vunpack.c.l.b16 %v235
      %v505 = vunpack.c.l.b16 %v236
      %v506 = vunpack.c.l.b16 %v237
      %v507 = vunpack.c.l.b16 %v238
      %v508 = vunpack.c.l.b16 %v239
      %v509 = vunpack.c.l.b16 %v240
      %v510 = vunpack.c.l.b16 %v241
      %v511 = vunpack.c.l.b16 %v242
      %v512 = vunpack.c.l.b16 %v243
      %v513 = vunpack.c.l.b16 %v244
      %v514 = vunpack.c.l.b16 %v245
      %v515 = vunpack.c.l.b16 %v246
      %v516 = vunpack.c.l.b16 %v247
      %v517 = vunpack.c.l.b16 %v248
      %v518 = vunpack.c.l.b16 %v249
      %v519 = vunpack.c.l.b16 %v250
      %v520 = vunpack.c.l.b16 %v251
      %v521 = vunpack.c.l.b16 %v252
      %v522 = vunpack.c.l.b16 %v253
      %v523 = vunpack.c.l.b16 %v254
      %v524 = vunpack.c.l.b16 %v255
      %v525 = vunpack.c.l.b16 %v256
      %v526 = vunpack.c.l.b16 %v257
      %v527 = vunpack.c.l.b16 %v258
      %v528 = vunpack.c.l.b16 %v259
      %v529 = vunpack.c.l.b16 %v260
      %v530 = vunpack.c.l.b16 %v261
      %v531 = vunpack.c.l.b16 %v262
      %v532 = vunpack.c.l.b16 %v263
      %v533 = vunpack.c.l.b16 %v264
      %v534 = vunpack.c.l.b16 %v265
      %v535 = vunpack.c.l.b16 %v266
      %v536 = vunpack.c.l.b16 %v267
      %v537 = vunpack.c.l.b16 %v268
      %v538 = vunpack.c.l.b16 %v269
      %v539 = vunpack.c.l.b16 %v270
      %v540 = vunpack.c.l.b16 %v271
      %v541 = vunpack.c.l.b16 %v272
      %v542 = vunpack.c.l.b16 %v273
      %v543 = vunpack.c.l.b16 %v274
      %v544 = vunpack.c.l.b16 %v275
      %v545 = vunpack.c.l.b16 %v276
      %v546 = vunpack.c.l.b16 %v277
      %v547 = vunpack.c.l.b16 %v278
      %v548 = vunpack.c.l.b16 %v279
      %v549 = vunpack.c.l.b16 %v280
      %v550 = vunpack.c.l.b16 %v281
      %v551 = vunpack.c.l.b16 %v282
      %v552 = vunpack.c.l.b16 %v283
      %v553 = vunpack.c.l.b16 %v284
      %v554 = vunpack.c.l.b16 %v285
      %v555 = vunpack.c.l.b16 %v286
      %v556 = vunpack.c.l.b16 %v287
      %v557 = vunpack.c.l.b16 %v288
      %v558 = vunpack.c.l.b16 %v289
      %v559 = vunpack.c.l.b16 %v290
      %v560 = vunpack.c.l.b16 %v291
      %v561 = vunpack.c.l.b16 %v292
      %v562 = vunpack.c.l.b16 %v293
      %v563 = vunpack.c.l.b16 %v294
      %v564 = vunpack.c.l.b16 %v295
      %v565 = vunpack.c.l.b16 %v296
      %v566 = vunpack.c.l.b16 %v297
      %v567 = vunpack.c.l.b16 %v298
      %v568 = vunpack.c.l.b16 %v299
      %v569 = vunpack.c.l.b16 %v300
      %v570 = vunpack.c.l.b16 %v301
      %v571 = vunpack.c.l.b16 %v302
      %v572 = vpack.c.b16 %v445, %v444
      %v573 = vpack.c.b16 %v447, %v446
      %v574 = vpack.c.b16 %v449, %v448
      %v575 = vpack.c.b16 %v451, %v450
      %v576 = vpack.c.b16 %v453, %v452
      %v577 = vpack.c.b16 %v455, %v454
      %v578 = vpack.c.b16 %v457, %v456
      %v579 = vpack.c.b16 %v459, %v458
      %v580 = vpack.c.b16 %v461, %v460
      %v581 = vpack.c.b16 %v463, %v462
      %v582 = vpack.c.b16 %v465, %v464
      %v583 = vpack.c.b16 %v467, %v466
      %v584 = vpack.c.b16 %v469, %v468
      %v585 = vpack.c.b16 %v471, %v470
      %v586 = vpack.c.b16 %v473, %v472
      %v587 = vpack.c.b16 %v475, %v474
      %v588 = vpack.c.b16 %v477, %v476
      %v589 = vpack.c.b16 %v479, %v478
      %v590 = vpack.c.b16 %v481, %v480
      %v591 = vpack.c.b16 %v483, %v482
      %v592 = vpack.c.b16 %v485, %v484
      %v593 = vpack.c.b16 %v487, %v486
      %v594 = vpack.c.b16 %v489, %v488
      %v595 = vpack.c.b16 %v491, %v490
      %v596 = vpack.c.b16 %v493, %v492
      %v597 = vpack.c.b16 %v495, %v494
      %v598 = vpack.c.b16 %v497, %v496
      %v599 = vpack.c.b16 %v499, %v498
      %v600 = vpack.c.b16 %v501, %v500
      %v601 = vpack.c.b16 %v503, %v502
      %v602 = vpack.c.b16 %v505, %v504
      %v603 = vpack.c.b16 %v507, %v506
      %v604 = vpack.c.b16 %v509, %v508
      %v605 = vpack.c.b16 %v511, %v510
      %v606 = vpack.c.b16 %v513, %v512
      %v607 = vpack.c.b16 %v515, %v514
      %v608 = vpack.c.b16 %v517, %v516
      %v609 = vpack.c.b16 %v519, %v518
      %v610 = vpack.c.b16 %v521, %v520
      %v611 = vpack.c.b16 %v523, %v522
      %v612 = vpack.c.b16 %v525, %v524
      %v613 = vpack.c.b16 %v527, %v526
      %v614 = vpack.c.b16 %v529, %v528
      %v615 = vpack.c.b16 %v531, %v530
      %v616 = vpack.c.b16 %v533, %v532
      %v617 = vpack.c.b16 %v535, %v534
      %v618 = vpack.c.b16 %v537, %v536
      %v619 = vpack.c.b16 %v539, %v538
      %v620 = vpack.c.b16 %v541, %v540
      %v621 = vpack.c.b16 %v543, %v542
      %v622 = vpack.c.b16 %v545, %v544
      %v623 = vpack.c.b16 %v547, %v546
      %v624 = vpack.c.b16 %v549, %v548
      %v625 = vpack.c.b16 %v551, %v550
      %v626 = vpack.c.b16 %v553, %v552
      %v627 = vpack.c.b16 %v555, %v554
      %v628 = vpack.c.b16 %v557, %v556
      %v629 = vpack.c.b16 %v559, %v558
      %v630 = vpack.c.b16 %v561, %v560
      %v631 = vpack.c.b16 %v563, %v562
      %v632 = vpack.c.b16 %v565, %v564
      %v633 = vpack.c.b16 %v567, %v566
      %v634 = vpack.c.b16 %v569, %v568
      %v635 = vpack.c.b16 %v571, %v570
      %v642 = vunpack.c.l.b16 %v303
      %v643 = vunpack.c.l.b16 %v304
      %v644 = vunpack.c.l.b16 %v305
      %v645 = vunpack.c.l.b16 %v306
      %v646 = vunpack.c.l.b16 %v307
      %v647 = vunpack.c.l.b16 %v308
      %v648 = vpack.c.b16 %v643, %v642
      %v649 = vpack.c.b16 %v645, %v644
      %v650 = vpack.c.b16 %v647, %v646
      %vm654 = vcmask 392192
      %v656 = vsel %vm654, %v572, 0
      %v659 = vsel %vm654, %v573, 0
      %v662 = vsel %vm654, %v574, 0
      %v665 = vsel %vm654, %v575, 0
      %v668 = vsel %vm654, %v576, 0
      %v671 = vsel %vm654, %v577, 0
      %v674 = vsel %vm654, %v578, 0
      %v677 = vsel %vm654, %v579, 0
      %v680 = vsel %vm654, %v580, 0
      %v683 = vsel %vm654, %v581, 0
      %v686 = vsel %vm654, %v582, 0
      %v689 = vsel %vm654, %v583, 0
      %v692 = vsel %vm654, %v584, 0
      %v695 = vsel %vm654, %v585, 0
      %v698 = vsel %vm654, %v586, 0
      %v701 = vsel %vm654, %v587, 0
      %v704 = vsel %vm654, %v588, 0
      %v707 = vsel %vm654, %v589, 0
      %v710 = vsel %vm654, %v590, 0
      %v713 = vsel %vm654, %v591, 0
      %v716 = vsel %vm654, %v592, 0
      %v719 = vsel %vm654, %v593, 0
      %v722 = vsel %vm654, %v594, 0
      %v725 = vsel %vm654, %v595, 0
      %v728 = vsel %vm654, %v596, 0
      %v731 = vsel %vm654, %v597, 0
      %v734 = vsel %vm654, %v598, 0
      %v737 = vsel %vm654, %v599, 0
      %v740 = vsel %vm654, %v600, 0
      %v743 = vsel %vm654, %v601, 0
      %v746 = vsel %vm654, %v602, 0
      %v749 = vsel %vm654, %v603, 0
      %v752 = vsel %vm654, %v604, 0
      %v755 = vsel %vm654, %v605, 0
      %v758 = vsel %vm654, %v606, 0
      %v761 = vsel %vm654, %v607, 0
      %v764 = vsel %vm654, %v608, 0
      %v767 = vsel %vm654, %v609, 0
      %v770 = vsel %vm654, %v610, 0
      %v773 = vsel %vm654, %v611, 0
      %v776 = vsel %vm654, %v612, 0
      %v779 = vsel %vm654, %v613, 0
      %v782 = vsel %vm654, %v614, 0
      %v785 = vsel %vm654, %v615, 0
      %v788 = vsel %vm654, %v616, 0
      %v791 = vsel %vm654, %v617, 0
      %v794 = vsel %vm654, %v618, 0
      %v797 = vsel %vm654, %v619, 0
      %v800 = vsel %vm654, %v620, 0
      %v803 = vsel %vm654, %v621, 0
      %v806 = vsel %vm654, %v622, 0
      %v809 = vsel %vm654, %v623, 0
      %v812 = vsel %vm654, %v624, 0
      %v815 = vsel %vm654, %v625, 0
      %v818 = vsel %vm654, %v626, 0
      %v821 = vsel %vm654, %v627, 0
      %v824 = vsel %vm654, %v628, 0
      %v827 = vsel %vm654, %v629, 0
      %v830 = vsel %vm654, %v630, 0
      %v833 = vsel %vm654, %v631, 0
      %v836 = vsel %vm654, %v632, 0
      %v839 = vsel %vm654, %v633, 0
      %v842 = vsel %vm654, %v634, 0
      %v845 = vsel %vm654, %v635, 0
      %847 = vmatprep.subr.bf16.mxu0 0
      %848 = vmatpush1.bf16.msra.mxu0 %v648
      %849 = vmatprep.subr.bf16.mxu0 0
      %850 = vmatpush1.bf16.msra.mxu0 %v649
      %851 = vmatprep.subr.bf16.mxu0 0
      %852 = vmatpush1.bf16.msra.mxu0 %v650
      %853 = vmatprep.subr.bf16.mxu0 0
      %854 = vmatpush1.bf16.msra.mxu0 0
      %855 = vmatprep.subr.bf16.mxu0 0
      %856 = vmatpush1.bf16.msra.mxu0 0
      %857 = vmatprep.subr.bf16.mxu0 0
      %858 = vmatpush1.bf16.msra.mxu0 0
      %859 = vmatprep.subr.bf16.mxu0 0
      %860 = vmatpush1.bf16.msra.mxu0 0
      %861 = vmatprep.subr.bf16.mxu0 0
      %862 = vmatpush1.bf16.msra.mxu0 0
      %863 = vmatprep.subr.bf16.mxu0 0
      %864 = vmatpush1.bf16.msra.mxu0 0
      %865 = vmatprep.subr.bf16.mxu0 0
      %866 = vmatpush1.bf16.msra.mxu0 0
      %867 = vmatprep.subr.bf16.mxu0 0
      %868 = vmatpush1.bf16.msra.mxu0 0
      %869 = vmatprep.subr.bf16.mxu0 0
      %870 = vmatpush1.bf16.msra.mxu0 0
      %871 = vmatprep.subr.bf16.mxu0 0
      %872 = vmatpush1.bf16.msra.mxu0 0
      %873 = vmatprep.subr.bf16.mxu0 0
      %874 = vmatpush1.bf16.msra.mxu0 0
      %875 = vmatprep.subr.bf16.mxu0 0
      %876 = vmatpush1.bf16.msra.mxu0 0
      %877 = vmatprep.subr.bf16.mxu0 0
      %878 = vmatpush1.bf16.msra.mxu0 0
      %879 = vmatprep.mubr.bf16.mxu0 0
      %880 = vmatmul.mubr.bf16.gmra.mrb[0].mxu0 %v656
      %v881 = vpop.f32.mrb[0].mxu0
      %v882 = vadd.f32 %v314, %v881
      %v883 = vpop.f32.mrb[0].mxu0
      %v884 = vpop.f32.mrb[0].mxu0
      %v885 = vadd.f32 %v314, %v884
      %v886 = vpop.f32.mrb[0].mxu0
      %887 = vmatprep.mubr.bf16.mxu0 0
      %888 = vmatmul.mubr.bf16.gmra.mrb[0].mxu0 %v659
      %v889 = vpop.f32.mrb[0].mxu0
      %v890 = vadd.f32 %v314, %v889
      %v891 = vpop.f32.mrb[0].mxu0
      %v892 = vpop.f32.mrb[0].mxu0
      %v893 = vadd.f32 %v314, %v892
      %v894 = vpop.f32.mrb[0].mxu0
      %895 = vmatprep.mubr.bf16.mxu0 0
      %896 = vmatmul.mubr.bf16.gmra.mrb[0].mxu0 %v662
      %v897 = vpop.f32.mrb[0].mxu0
      %v898 = vadd.f32 %v314, %v897
      %v899 = vpop.f32.mrb[0].mxu0
      %v900 = vpop.f32.mrb[0].mxu0
      %v901 = vadd.f32 %v314, %v900
      %v902 = vpop.f32.mrb[0].mxu0
      %903 = vmatprep.mubr.bf16.mxu0 0
      %904 = vmatmul.mubr.bf16.gmra.mrb[0].mxu0 %v665
      %v905 = vpop.f32.mrb[0].mxu0
      %v906 = vadd.f32 %v314, %v905
      %v907 = vpop.f32.mrb[0].mxu0
      %v908 = vpop.f32.mrb[0].mxu0
      %v909 = vadd.f32 %v314, %v908
      %v910 = vpop.f32.mrb[0].mxu0
      %911 = vmatprep.mubr.bf16.mxu0 0
      %912 = vmatmul.mubr.bf16.gmra.mrb[0].mxu0 %v668
      %v913 = vpop.f32.mrb[0].mxu0
      %v914 = vadd.f32 %v314, %v913
      %v915 = vpop.f32.mrb[0].mxu0
      %v916 = vpop.f32.mrb[0].mxu0
      %v917 = vadd.f32 %v314, %v916
      %v918 = vpop.f32.mrb[0].mxu0
      %919 = vmatprep.mubr.bf16.mxu0 0
      %920 = vmatmul.mubr.bf16.gmra.mrb[0].mxu0 %v671
      %v921 = vpop.f32.mrb[0].mxu0
      %v922 = vadd.f32 %v314, %v921
      %v923 = vpop.f32.mrb[0].mxu0
      %v924 = vpop.f32.mrb[0].mxu0
      %v925 = vadd.f32 %v314, %v924
      %v926 = vpop.f32.mrb[0].mxu0
      %927 = vmatprep.mubr.bf16.mxu0 0
      %928 = vmatmul.mubr.bf16.gmra.mrb[0].mxu0 %v674
      %v929 = vpop.f32.mrb[0].mxu0
      %v930 = vadd.f32 %v314, %v929
      %v931 = vpop.f32.mrb[0].mxu0
      %v932 = vpop.f32.mrb[0].mxu0
      %v933 = vadd.f32 %v314, %v932
      %v934 = vpop.f32.mrb[0].mxu0
      %935 = vmatprep.mubr.bf16.mxu0 0
      %936 = vmatmul.mubr.bf16.gmra.mrb[0].mxu0 %v677
      %v937 = vpop.f32.mrb[0].mxu0
      %v938 = vadd.f32 %v314, %v937
      %v939 = vpop.f32.mrb[0].mxu0
      %v940 = vpop.f32.mrb[0].mxu0
      %v941 = vadd.f32 %v314, %v940
      %v942 = vpop.f32.mrb[0].mxu0
      %943 = vmatprep.mubr.bf16.mxu0 0
      %944 = vmatmul.mubr.bf16.gmra.mrb[0].mxu0 %v680
      %v945 = vpop.f32.mrb[0].mxu0
      %v946 = vadd.f32 %v314, %v945
      %v947 = vpop.f32.mrb[0].mxu0
      %v948 = vpop.f32.mrb[0].mxu0
      %v949 = vadd.f32 %v314, %v948
      %v950 = vpop.f32.mrb[0].mxu0
      %951 = vmatprep.mubr.bf16.mxu0 0
      %952 = vmatmul.mubr.bf16.gmra.mrb[0].mxu0 %v683
      %v953 = vpop.f32.mrb[0].mxu0
      %v954 = vadd.f32 %v314, %v953
      %v955 = vpop.f32.mrb[0].mxu0
      %v956 = vpop.f32.mrb[0].mxu0
      %v957 = vadd.f32 %v314, %v956
      %v958 = vpop.f32.mrb[0].mxu0
      %959 = vmatprep.mubr.bf16.mxu0 0
      %960 = vmatmul.mubr.bf16.gmra.mrb[0].mxu0 %v686
      %v961 = vpop.f32.mrb[0].mxu0
      %v962 = vadd.f32 %v314, %v961
      %v963 = vpop.f32.mrb[0].mxu0
      %v964 = vpop.f32.mrb[0].mxu0
      %v965 = vadd.f32 %v314, %v964
      %v966 = vpop.f32.mrb[0].mxu0
      %967 = vmatprep.mubr.bf16.mxu0 0
      %968 = vmatmul.mubr.bf16.gmra.mrb[0].mxu0 %v689
      %v969 = vpop.f32.mrb[0].mxu0
      %v970 = vadd.f32 %v314, %v969
      %v971 = vpop.f32.mrb[0].mxu0
      %v972 = vpop.f32.mrb[0].mxu0
      %v973 = vadd.f32 %v314, %v972
      %v974 = vpop.f32.mrb[0].mxu0
      %975 = vmatprep.mubr.bf16.mxu0 0
      %976 = vmatmul.mubr.bf16.gmra.mrb[0].mxu0 %v692
      %v977 = vpop.f32.mrb[0].mxu0
      %v978 = vadd.f32 %v314, %v977
      %v979 = vpop.f32.mrb[0].mxu0
      %v980 = vpop.f32.mrb[0].mxu0
      %v981 = vadd.f32 %v314, %v980
      %v982 = vpop.f32.mrb[0].mxu0
      %983 = vmatprep.mubr.bf16.mxu0 0
      %984 = vmatmul.mubr.bf16.gmra.mrb[0].mxu0 %v695
      %v985 = vpop.f32.mrb[0].mxu0
      %v986 = vadd.f32 %v314, %v985
      %v987 = vpop.f32.mrb[0].mxu0
      %v988 = vpop.f32.mrb[0].mxu0
      %v989 = vadd.f32 %v314, %v988
      %v990 = vpop.f32.mrb[0].mxu0
      %991 = vmatprep.mubr.bf16.mxu0 0
      %992 = vmatmul.mubr.bf16.gmra.mrb[0].mxu0 %v698
      %v993 = vpop.f32.mrb[0].mxu0
      %v994 = vadd.f32 %v314, %v993
      %v995 = vpop.f32.mrb[0].mxu0
      %v996 = vpop.f32.mrb[0].mxu0
      %v997 = vadd.f32 %v314, %v996
      %v998 = vpop.f32.mrb[0].mxu0
      %999 = vmatprep.mubr.bf16.mxu0 0
      %1000 = vmatmul.mubr.bf16.gmra.mrb[0].mxu0 %v701
      %v1001 = vpop.f32.mrb[0].mxu0
      %v1002 = vadd.f32 %v314, %v1001
      %v1003 = vpop.f32.mrb[0].mxu0
      %v1004 = vpop.f32.mrb[0].mxu0
      %v1005 = vadd.f32 %v314, %v1004
      %v1006 = vpop.f32.mrb[0].mxu0
      %1007 = vmatprep.mubr.bf16.mxu0 0
      %1008 = vmatmul.mubr.bf16.gmra.mrb[0].mxu0 %v704
      %v1009 = vpop.f32.mrb[0].mxu0
      %v1010 = vadd.f32 %v314, %v1009
      %v1011 = vpop.f32.mrb[0].mxu0
      %v1012 = vpop.f32.mrb[0].mxu0
      %v1013 = vadd.f32 %v314, %v1012
      %v1014 = vpop.f32.mrb[0].mxu0
      %1015 = vmatprep.mubr.bf16.mxu0 0
      %1016 = vmatmul.mubr.bf16.gmra.mrb[0].mxu0 %v707
      %v1017 = vpop.f32.mrb[0].mxu0
      %v1018 = vadd.f32 %v314, %v1017
      %v1019 = vpop.f32.mrb[0].mxu0
      %v1020 = vpop.f32.mrb[0].mxu0
      %v1021 = vadd.f32 %v314, %v1020
      %v1022 = vpop.f32.mrb[0].mxu0
      %1023 = vmatprep.mubr.bf16.mxu0 0
      %1024 = vmatmul.mubr.bf16.gmra.mrb[0].mxu0 %v710
      %v1025 = vpop.f32.mrb[0].mxu0
      %v1026 = vadd.f32 %v314, %v1025
      %v1027 = vpop.f32.mrb[0].mxu0
      %v1028 = vpop.f32.mrb[0].mxu0
      %v1029 = vadd.f32 %v314, %v1028
      %v1030 = vpop.f32.mrb[0].mxu0
      %1031 = vmatprep.mubr.bf16.mxu0 0
      %1032 = vmatmul.mubr.bf16.gmra.mrb[0].mxu0 %v713
      %v1033 = vpop.f32.mrb[0].mxu0
      %v1034 = vadd.f32 %v314, %v1033
      %v1035 = vpop.f32.mrb[0].mxu0
      %v1036 = vpop.f32.mrb[0].mxu0
      %v1037 = vadd.f32 %v314, %v1036
      %v1038 = vpop.f32.mrb[0].mxu0
      %1039 = vmatprep.mubr.bf16.mxu0 0
      %1040 = vmatmul.mubr.bf16.gmra.mrb[0].mxu0 %v716
      %v1041 = vpop.f32.mrb[0].mxu0
      %v1042 = vadd.f32 %v314, %v1041
      %v1043 = vpop.f32.mrb[0].mxu0
      %v1044 = vpop.f32.mrb[0].mxu0
      %v1045 = vadd.f32 %v314, %v1044
      %v1046 = vpop.f32.mrb[0].mxu0
      %1047 = vmatprep.mubr.bf16.mxu0 0
      %1048 = vmatmul.mubr.bf16.gmra.mrb[0].mxu0 %v719
      %v1049 = vpop.f32.mrb[0].mxu0
      %v1050 = vadd.f32 %v314, %v1049
      %v1051 = vpop.f32.mrb[0].mxu0
      %v1052 = vpop.f32.mrb[0].mxu0
      %v1053 = vadd.f32 %v314, %v1052
      %v1054 = vpop.f32.mrb[0].mxu0
      %1055 = vmatprep.mubr.bf16.mxu0 0
      %1056 = vmatmul.mubr.bf16.gmra.mrb[0].mxu0 %v722
      %v1057 = vpop.f32.mrb[0].mxu0
      %v1058 = vadd.f32 %v314, %v1057
      %v1059 = vpop.f32.mrb[0].mxu0
      %v1060 = vpop.f32.mrb[0].mxu0
      %v1061 = vadd.f32 %v314, %v1060
      %v1062 = vpop.f32.mrb[0].mxu0
      %1063 = vmatprep.mubr.bf16.mxu0 0
      %1064 = vmatmul.mubr.bf16.gmra.mrb[0].mxu0 %v725
      %v1065 = vpop.f32.mrb[0].mxu0
      %v1066 = vadd.f32 %v314, %v1065
      %v1067 = vpop.f32.mrb[0].mxu0
      %v1068 = vpop.f32.mrb[0].mxu0
      %v1069 = vadd.f32 %v314, %v1068
      %v1070 = vpop.f32.mrb[0].mxu0
      %1071 = vmatprep.mubr.bf16.mxu0 0
      %1072 = vmatmul.mubr.bf16.gmra.mrb[0].mxu0 %v728
      %v1073 = vpop.f32.mrb[0].mxu0
      %v1074 = vadd.f32 %v314, %v1073
      %v1075 = vpop.f32.mrb[0].mxu0
      %v1076 = vpop.f32.mrb[0].mxu0
      %v1077 = vadd.f32 %v314, %v1076
      %v1078 = vpop.f32.mrb[0].mxu0
      %1079 = vmatprep.mubr.bf16.mxu0 0
      %1080 = vmatmul.mubr.bf16.gmra.mrb[0].mxu0 %v731
      %v1081 = vpop.f32.mrb[0].mxu0
      %v1082 = vadd.f32 %v314, %v1081
      %v1083 = vpop.f32.mrb[0].mxu0
      %v1084 = vpop.f32.mrb[0].mxu0
      %v1085 = vadd.f32 %v314, %v1084
      %v1086 = vpop.f32.mrb[0].mxu0
      %1087 = vmatprep.mubr.bf16.mxu0 0
      %1088 = vmatmul.mubr.bf16.gmra.mrb[0].mxu0 %v734
      %v1089 = vpop.f32.mrb[0].mxu0
      %v1090 = vadd.f32 %v314, %v1089
      %v1091 = vpop.f32.mrb[0].mxu0
      %v1092 = vpop.f32.mrb[0].mxu0
      %v1093 = vadd.f32 %v314, %v1092
      %v1094 = vpop.f32.mrb[0].mxu0
      %1095 = vmatprep.mubr.bf16.mxu0 0
      %1096 = vmatmul.mubr.bf16.gmra.mrb[0].mxu0 %v737
      %v1097 = vpop.f32.mrb[0].mxu0
      %v1098 = vadd.f32 %v314, %v1097
      %v1099 = vpop.f32.mrb[0].mxu0
      %v1100 = vpop.f32.mrb[0].mxu0
      %v1101 = vadd.f32 %v314, %v1100
      %v1102 = vpop.f32.mrb[0].mxu0
      %1103 = vmatprep.mubr.bf16.mxu0 0
      %1104 = vmatmul.mubr.bf16.gmra.mrb[0].mxu0 %v740
      %v1105 = vpop.f32.mrb[0].mxu0
      %v1106 = vadd.f32 %v314, %v1105
      %v1107 = vpop.f32.mrb[0].mxu0
      %v1108 = vpop.f32.mrb[0].mxu0
      %v1109 = vadd.f32 %v314, %v1108
      %v1110 = vpop.f32.mrb[0].mxu0
      %1111 = vmatprep.mubr.bf16.mxu0 0
      %1112 = vmatmul.mubr.bf16.gmra.mrb[0].mxu0 %v743
      %v1113 = vpop.f32.mrb[0].mxu0
      %v1114 = vadd.f32 %v314, %v1113
      %v1115 = vpop.f32.mrb[0].mxu0
      %v1116 = vpop.f32.mrb[0].mxu0
      %v1117 = vadd.f32 %v314, %v1116
      %v1118 = vpop.f32.mrb[0].mxu0
      %1119 = vmatprep.mubr.bf16.mxu0 0
      %1120 = vmatmul.mubr.bf16.gmra.mrb[0].mxu0 %v746
      %v1121 = vpop.f32.mrb[0].mxu0
      %v1122 = vadd.f32 %v314, %v1121
      %v1123 = vpop.f32.mrb[0].mxu0
      %v1124 = vpop.f32.mrb[0].mxu0
      %v1125 = vadd.f32 %v314, %v1124
      %v1126 = vpop.f32.mrb[0].mxu0
      %1127 = vmatprep.mubr.bf16.mxu0 0
      %1128 = vmatmul.mubr.bf16.gmra.mrb[0].mxu0 %v749
      %v1129 = vpop.f32.mrb[0].mxu0
      %v1130 = vadd.f32 %v314, %v1129
      %v1131 = vpop.f32.mrb[0].mxu0
      %v1132 = vpop.f32.mrb[0].mxu0
      %v1133 = vadd.f32 %v314, %v1132
      %v1134 = vpop.f32.mrb[0].mxu0
      %1135 = vmatprep.mubr.bf16.mxu0 0
      %1136 = vmatmul.mubr.bf16.gmra.mrb[0].mxu0 %v752
      %v1137 = vpop.f32.mrb[0].mxu0
      %v1138 = vadd.f32 %v314, %v1137
      %v1139 = vpop.f32.mrb[0].mxu0
      %v1140 = vpop.f32.mrb[0].mxu0
      %v1141 = vadd.f32 %v314, %v1140
      %v1142 = vpop.f32.mrb[0].mxu0
      %1143 = vmatprep.mubr.bf16.mxu0 0
      %1144 = vmatmul.mubr.bf16.gmra.mrb[0].mxu0 %v755
      %v1145 = vpop.f32.mrb[0].mxu0
      %v1146 = vadd.f32 %v314, %v1145
      %v1147 = vpop.f32.mrb[0].mxu0
      %v1148 = vpop.f32.mrb[0].mxu0
      %v1149 = vadd.f32 %v314, %v1148
      %v1150 = vpop.f32.mrb[0].mxu0
      %1151 = vmatprep.mubr.bf16.mxu0 0
      %1152 = vmatmul.mubr.bf16.gmra.mrb[0].mxu0 %v758
      %v1153 = vpop.f32.mrb[0].mxu0
      %v1154 = vadd.f32 %v314, %v1153
      %v1155 = vpop.f32.mrb[0].mxu0
      %v1156 = vpop.f32.mrb[0].mxu0
      %v1157 = vadd.f32 %v314, %v1156
      %v1158 = vpop.f32.mrb[0].mxu0
      %1159 = vmatprep.mubr.bf16.mxu0 0
      %1160 = vmatmul.mubr.bf16.gmra.mrb[0].mxu0 %v761
      %v1161 = vpop.f32.mrb[0].mxu0
      %v1162 = vadd.f32 %v314, %v1161
      %v1163 = vpop.f32.mrb[0].mxu0
      %v1164 = vpop.f32.mrb[0].mxu0
      %v1165 = vadd.f32 %v314, %v1164
      %v1166 = vpop.f32.mrb[0].mxu0
      %1167 = vmatprep.mubr.bf16.mxu0 0
      %1168 = vmatmul.mubr.bf16.gmra.mrb[0].mxu0 %v764
      %v1169 = vpop.f32.mrb[0].mxu0
      %v1170 = vadd.f32 %v314, %v1169
      %v1171 = vpop.f32.mrb[0].mxu0
      %v1172 = vpop.f32.mrb[0].mxu0
      %v1173 = vadd.f32 %v314, %v1172
      %v1174 = vpop.f32.mrb[0].mxu0
      %1175 = vmatprep.mubr.bf16.mxu0 0
      %1176 = vmatmul.mubr.bf16.gmra.mrb[0].mxu0 %v767
      %v1177 = vpop.f32.mrb[0].mxu0
      %v1178 = vadd.f32 %v314, %v1177
      %v1179 = vpop.f32.mrb[0].mxu0
      %v1180 = vpop.f32.mrb[0].mxu0
      %v1181 = vadd.f32 %v314, %v1180
      %v1182 = vpop.f32.mrb[0].mxu0
      %1183 = vmatprep.mubr.bf16.mxu0 0
      %1184 = vmatmul.mubr.bf16.gmra.mrb[0].mxu0 %v770
      %v1185 = vpop.f32.mrb[0].mxu0
      %v1186 = vadd.f32 %v314, %v1185
      %v1187 = vpop.f32.mrb[0].mxu0
      %v1188 = vpop.f32.mrb[0].mxu0
      %v1189 = vadd.f32 %v314, %v1188
      %v1190 = vpop.f32.mrb[0].mxu0
      %1191 = vmatprep.mubr.bf16.mxu0 0
      %1192 = vmatmul.mubr.bf16.gmra.mrb[0].mxu0 %v773
      %v1193 = vpop.f32.mrb[0].mxu0
      %v1194 = vadd.f32 %v314, %v1193
      %v1195 = vpop.f32.mrb[0].mxu0
      %v1196 = vpop.f32.mrb[0].mxu0
      %v1197 = vadd.f32 %v314, %v1196
      %v1198 = vpop.f32.mrb[0].mxu0
      %1199 = vmatprep.mubr.bf16.mxu0 0
      %1200 = vmatmul.mubr.bf16.gmra.mrb[0].mxu0 %v776
      %v1201 = vpop.f32.mrb[0].mxu0
      %v1202 = vadd.f32 %v314, %v1201
      %v1203 = vpop.f32.mrb[0].mxu0
      %v1204 = vpop.f32.mrb[0].mxu0
      %v1205 = vadd.f32 %v314, %v1204
      %v1206 = vpop.f32.mrb[0].mxu0
      %1207 = vmatprep.mubr.bf16.mxu0 0
      %1208 = vmatmul.mubr.bf16.gmra.mrb[0].mxu0 %v779
      %v1209 = vpop.f32.mrb[0].mxu0
      %v1210 = vadd.f32 %v314, %v1209
      %v1211 = vpop.f32.mrb[0].mxu0
      %v1212 = vpop.f32.mrb[0].mxu0
      %v1213 = vadd.f32 %v314, %v1212
      %v1214 = vpop.f32.mrb[0].mxu0
      %1215 = vmatprep.mubr.bf16.mxu0 0
      %1216 = vmatmul.mubr.bf16.gmra.mrb[0].mxu0 %v782
      %v1217 = vpop.f32.mrb[0].mxu0
      %v1218 = vadd.f32 %v314, %v1217
      %v1219 = vpop.f32.mrb[0].mxu0
      %v1220 = vpop.f32.mrb[0].mxu0
      %v1221 = vadd.f32 %v314, %v1220
      %v1222 = vpop.f32.mrb[0].mxu0
      %1223 = vmatprep.mubr.bf16.mxu0 0
      %1224 = vmatmul.mubr.bf16.gmra.mrb[0].mxu0 %v785
      %v1225 = vpop.f32.mrb[0].mxu0
      %v1226 = vadd.f32 %v314, %v1225
      %v1227 = vpop.f32.mrb[0].mxu0
      %v1228 = vpop.f32.mrb[0].mxu0
      %v1229 = vadd.f32 %v314, %v1228
      %v1230 = vpop.f32.mrb[0].mxu0
      %1231 = vmatprep.mubr.bf16.mxu0 0
      %1232 = vmatmul.mubr.bf16.gmra.mrb[0].mxu0 %v788
      %v1233 = vpop.f32.mrb[0].mxu0
      %v1234 = vadd.f32 %v314, %v1233
      %v1235 = vpop.f32.mrb[0].mxu0
      %v1236 = vpop.f32.mrb[0].mxu0
      %v1237 = vadd.f32 %v314, %v1236
      %v1238 = vpop.f32.mrb[0].mxu0
      %1239 = vmatprep.mubr.bf16.mxu0 0
      %1240 = vmatmul.mubr.bf16.gmra.mrb[0].mxu0 %v791
      %v1241 = vpop.f32.mrb[0].mxu0
      %v1242 = vadd.f32 %v314, %v1241
      %v1243 = vpop.f32.mrb[0].mxu0
      %v1244 = vpop.f32.mrb[0].mxu0
      %v1245 = vadd.f32 %v314, %v1244
      %v1246 = vpop.f32.mrb[0].mxu0
      %1247 = vmatprep.mubr.bf16.mxu0 0
      %1248 = vmatmul.mubr.bf16.gmra.mrb[0].mxu0 %v794
      %v1249 = vpop.f32.mrb[0].mxu0
      %v1250 = vadd.f32 %v314, %v1249
      %v1251 = vpop.f32.mrb[0].mxu0
      %v1252 = vpop.f32.mrb[0].mxu0
      %v1253 = vadd.f32 %v314, %v1252
      %v1254 = vpop.f32.mrb[0].mxu0
      %1255 = vmatprep.mubr.bf16.mxu0 0
      %1256 = vmatmul.mubr.bf16.gmra.mrb[0].mxu0 %v797
      %v1257 = vpop.f32.mrb[0].mxu0
      %v1258 = vadd.f32 %v314, %v1257
      %v1259 = vpop.f32.mrb[0].mxu0
      %v1260 = vpop.f32.mrb[0].mxu0
      %v1261 = vadd.f32 %v314, %v1260
      %v1262 = vpop.f32.mrb[0].mxu0
      %1263 = vmatprep.mubr.bf16.mxu0 0
      %1264 = vmatmul.mubr.bf16.gmra.mrb[0].mxu0 %v800
      %v1265 = vpop.f32.mrb[0].mxu0
      %v1266 = vadd.f32 %v314, %v1265
      %v1267 = vpop.f32.mrb[0].mxu0
      %v1268 = vpop.f32.mrb[0].mxu0
      %v1269 = vadd.f32 %v314, %v1268
      %v1270 = vpop.f32.mrb[0].mxu0
      %1271 = vmatprep.mubr.bf16.mxu0 0
      %1272 = vmatmul.mubr.bf16.gmra.mrb[0].mxu0 %v803
      %v1273 = vpop.f32.mrb[0].mxu0
      %v1274 = vadd.f32 %v314, %v1273
      %v1275 = vpop.f32.mrb[0].mxu0
      %v1276 = vpop.f32.mrb[0].mxu0
      %v1277 = vadd.f32 %v314, %v1276
      %v1278 = vpop.f32.mrb[0].mxu0
      %1279 = vmatprep.mubr.bf16.mxu0 0
      %1280 = vmatmul.mubr.bf16.gmra.mrb[0].mxu0 %v806
      %v1281 = vpop.f32.mrb[0].mxu0
      %v1282 = vadd.f32 %v314, %v1281
      %v1283 = vpop.f32.mrb[0].mxu0
      %v1284 = vpop.f32.mrb[0].mxu0
      %v1285 = vadd.f32 %v314, %v1284
      %v1286 = vpop.f32.mrb[0].mxu0
      %1287 = vmatprep.mubr.bf16.mxu0 0
      %1288 = vmatmul.mubr.bf16.gmra.mrb[0].mxu0 %v809
      %v1289 = vpop.f32.mrb[0].mxu0
      %v1290 = vadd.f32 %v314, %v1289
      %v1291 = vpop.f32.mrb[0].mxu0
      %v1292 = vpop.f32.mrb[0].mxu0
      %v1293 = vadd.f32 %v314, %v1292
      %v1294 = vpop.f32.mrb[0].mxu0
      %1295 = vmatprep.mubr.bf16.mxu0 0
      %1296 = vmatmul.mubr.bf16.gmra.mrb[0].mxu0 %v812
      %v1297 = vpop.f32.mrb[0].mxu0
      %v1298 = vadd.f32 %v314, %v1297
      %v1299 = vpop.f32.mrb[0].mxu0
      %v1300 = vpop.f32.mrb[0].mxu0
      %v1301 = vadd.f32 %v314, %v1300
      %v1302 = vpop.f32.mrb[0].mxu0
      %1303 = vmatprep.mubr.bf16.mxu0 0
      %1304 = vmatmul.mubr.bf16.gmra.mrb[0].mxu0 %v815
      %v1305 = vpop.f32.mrb[0].mxu0
      %v1306 = vadd.f32 %v314, %v1305
      %v1307 = vpop.f32.mrb[0].mxu0
      %v1308 = vpop.f32.mrb[0].mxu0
      %v1309 = vadd.f32 %v314, %v1308
      %v1310 = vpop.f32.mrb[0].mxu0
      %1311 = vmatprep.mubr.bf16.mxu0 0
      %1312 = vmatmul.mubr.bf16.gmra.mrb[0].mxu0 %v818
      %v1313 = vpop.f32.mrb[0].mxu0
      %v1314 = vadd.f32 %v314, %v1313
      %v1315 = vpop.f32.mrb[0].mxu0
      %v1316 = vpop.f32.mrb[0].mxu0
      %v1317 = vadd.f32 %v314, %v1316
      %v1318 = vpop.f32.mrb[0].mxu0
      %1319 = vmatprep.mubr.bf16.mxu0 0
      %1320 = vmatmul.mubr.bf16.gmra.mrb[0].mxu0 %v821
      %v1321 = vpop.f32.mrb[0].mxu0
      %v1322 = vadd.f32 %v314, %v1321
      %v1323 = vpop.f32.mrb[0].mxu0
      %v1324 = vpop.f32.mrb[0].mxu0
      %v1325 = vadd.f32 %v314, %v1324
      %v1326 = vpop.f32.mrb[0].mxu0
      %1327 = vmatprep.mubr.bf16.mxu0 0
      %1328 = vmatmul.mubr.bf16.gmra.mrb[0].mxu0 %v824
      %v1329 = vpop.f32.mrb[0].mxu0
      %v1330 = vadd.f32 %v314, %v1329
      %v1331 = vpop.f32.mrb[0].mxu0
      %v1332 = vpop.f32.mrb[0].mxu0
      %v1333 = vadd.f32 %v314, %v1332
      %v1334 = vpop.f32.mrb[0].mxu0
      %1335 = vmatprep.mubr.bf16.mxu0 0
      %1336 = vmatmul.mubr.bf16.gmra.mrb[0].mxu0 %v827
      %v1337 = vpop.f32.mrb[0].mxu0
      %v1338 = vadd.f32 %v314, %v1337
      %v1339 = vpop.f32.mrb[0].mxu0
      %v1340 = vpop.f32.mrb[0].mxu0
      %v1341 = vadd.f32 %v314, %v1340
      %v1342 = vpop.f32.mrb[0].mxu0
      %1343 = vmatprep.mubr.bf16.mxu0 0
      %1344 = vmatmul.mubr.bf16.gmra.mrb[0].mxu0 %v830
      %v1345 = vpop.f32.mrb[0].mxu0
      %v1346 = vadd.f32 %v314, %v1345
      %v1347 = vpop.f32.mrb[0].mxu0
      %v1348 = vpop.f32.mrb[0].mxu0
      %v1349 = vadd.f32 %v314, %v1348
      %v1350 = vpop.f32.mrb[0].mxu0
      %1351 = vmatprep.mubr.bf16.mxu0 0
      %1352 = vmatmul.mubr.bf16.gmra.mrb[0].mxu0 %v833
      %v1353 = vpop.f32.mrb[0].mxu0
      %v1354 = vadd.f32 %v314, %v1353
      %v1355 = vpop.f32.mrb[0].mxu0
      %v1356 = vpop.f32.mrb[0].mxu0
      %v1357 = vadd.f32 %v314, %v1356
      %v1358 = vpop.f32.mrb[0].mxu0
      %1359 = vmatprep.mubr.bf16.mxu0 0
      %1360 = vmatmul.mubr.bf16.gmra.mrb[0].mxu0 %v836
      %v1361 = vpop.f32.mrb[0].mxu0
      %v1362 = vadd.f32 %v314, %v1361
      %v1363 = vpop.f32.mrb[0].mxu0
      %v1364 = vpop.f32.mrb[0].mxu0
      %v1365 = vadd.f32 %v314, %v1364
      %v1366 = vpop.f32.mrb[0].mxu0
      %1367 = vmatprep.mubr.bf16.mxu0 0
      %1368 = vmatmul.mubr.bf16.gmra.mrb[0].mxu0 %v839
      %v1369 = vpop.f32.mrb[0].mxu0
      %v1370 = vadd.f32 %v314, %v1369
      %v1371 = vpop.f32.mrb[0].mxu0
      %v1372 = vpop.f32.mrb[0].mxu0
      %v1373 = vadd.f32 %v314, %v1372
      %v1374 = vpop.f32.mrb[0].mxu0
      %1375 = vmatprep.mubr.bf16.mxu0 0
      %1376 = vmatmul.mubr.bf16.gmra.mrb[0].mxu0 %v842
      %v1377 = vpop.f32.mrb[0].mxu0
      %v1378 = vadd.f32 %v314, %v1377
      %v1379 = vpop.f32.mrb[0].mxu0
      %v1380 = vpop.f32.mrb[0].mxu0
      %v1381 = vadd.f32 %v314, %v1380
      %v1382 = vpop.f32.mrb[0].mxu0
      %1383 = vmatprep.mubr.bf16.mxu0 0
      %1384 = vmatmul.mubr.bf16.gmra.mrb[0].mxu0 %v845
      %v1385 = vpop.f32.mrb[0].mxu0
      %v1386 = vadd.f32 %v314, %v1385
      %v1387 = vpop.f32.mrb[0].mxu0
      %v1388 = vpop.f32.mrb[0].mxu0
      %v1389 = vadd.f32 %v314, %v1388
      %v1390 = vpop.f32.mrb[0].mxu0
      %1391 = vdwg.mxu0
      %v1392 = vmul.f32 %v882, 0.2
      %v1393 = vmul.f32 %v885, 0.2
      %v1394 = vmul.f32 %v890, 0.2
      %v1395 = vmul.f32 %v893, 0.2
      %v1396 = vmul.f32 %v898, 0.2
      %v1397 = vmul.f32 %v901, 0.2
      %v1398 = vmul.f32 %v906, 0.2
      %v1399 = vmul.f32 %v909, 0.2
      %v1400 = vmul.f32 %v914, 0.2
      %v1401 = vmul.f32 %v917, 0.2
      %v1402 = vmul.f32 %v922, 0.2
      %v1403 = vmul.f32 %v925, 0.2
      %v1404 = vmul.f32 %v930, 0.2
      %v1405 = vmul.f32 %v933, 0.2
      %v1406 = vmul.f32 %v938, 0.2
      %v1407 = vmul.f32 %v941, 0.2
      %v1408 = vmul.f32 %v946, 0.2
      %v1409 = vmul.f32 %v949, 0.2
      %v1410 = vmul.f32 %v954, 0.2
      %v1411 = vmul.f32 %v957, 0.2
      %v1412 = vmul.f32 %v962, 0.2
      %v1413 = vmul.f32 %v965, 0.2
      %v1414 = vmul.f32 %v970, 0.2
      %v1415 = vmul.f32 %v973, 0.2
      %v1416 = vmul.f32 %v978, 0.2
      %v1417 = vmul.f32 %v981, 0.2
      %v1418 = vmul.f32 %v986, 0.2
      %v1419 = vmul.f32 %v989, 0.2
      %v1420 = vmul.f32 %v994, 0.2
      %v1421 = vmul.f32 %v997, 0.2
      %v1422 = vmul.f32 %v1002, 0.2
      %v1423 = vmul.f32 %v1005, 0.2
      %v1424 = vmul.f32 %v1010, 0.2
      %v1425 = vmul.f32 %v1013, 0.2
      %v1426 = vmul.f32 %v1018, 0.2
      %v1427 = vmul.f32 %v1021, 0.2
      %v1428 = vmul.f32 %v1026, 0.2
      %v1429 = vmul.f32 %v1029, 0.2
      %v1430 = vmul.f32 %v1034, 0.2
      %v1431 = vmul.f32 %v1037, 0.2
      %v1432 = vmul.f32 %v1042, 0.2
      %v1433 = vmul.f32 %v1045, 0.2
      %v1434 = vmul.f32 %v1050, 0.2
      %v1435 = vmul.f32 %v1053, 0.2
      %v1436 = vmul.f32 %v1058, 0.2
      %v1437 = vmul.f32 %v1061, 0.2
      %v1438 = vmul.f32 %v1066, 0.2
      %v1439 = vmul.f32 %v1069, 0.2
      %v1440 = vmul.f32 %v1074, 0.2
      %v1441 = vmul.f32 %v1077, 0.2
      %v1442 = vmul.f32 %v1082, 0.2
      %v1443 = vmul.f32 %v1085, 0.2
      %v1444 = vmul.f32 %v1090, 0.2
      %v1445 = vmul.f32 %v1093, 0.2
      %v1446 = vmul.f32 %v1098, 0.2
      %v1447 = vmul.f32 %v1101, 0.2
      %v1448 = vmul.f32 %v1106, 0.2
      %v1449 = vmul.f32 %v1109, 0.2
      %v1450 = vmul.f32 %v1114, 0.2
      %v1451 = vmul.f32 %v1117, 0.2
      %v1452 = vmul.f32 %v1122, 0.2
      %v1453 = vmul.f32 %v1125, 0.2
      %v1454 = vmul.f32 %v1130, 0.2
      %v1455 = vmul.f32 %v1133, 0.2
      %v1456 = vmul.f32 %v1138, 0.2
      %v1457 = vmul.f32 %v1141, 0.2
      %v1458 = vmul.f32 %v1146, 0.2
      %v1459 = vmul.f32 %v1149, 0.2
      %v1460 = vmul.f32 %v1154, 0.2
      %v1461 = vmul.f32 %v1157, 0.2
      %v1462 = vmul.f32 %v1162, 0.2
      %v1463 = vmul.f32 %v1165, 0.2
      %v1464 = vmul.f32 %v1170, 0.2
      %v1465 = vmul.f32 %v1173, 0.2
      %v1466 = vmul.f32 %v1178, 0.2
      %v1467 = vmul.f32 %v1181, 0.2
      %v1468 = vmul.f32 %v1186, 0.2
      %v1469 = vmul.f32 %v1189, 0.2
      %v1470 = vmul.f32 %v1194, 0.2
      %v1471 = vmul.f32 %v1197, 0.2
      %v1472 = vmul.f32 %v1202, 0.2
      %v1473 = vmul.f32 %v1205, 0.2
      %v1474 = vmul.f32 %v1210, 0.2
      %v1475 = vmul.f32 %v1213, 0.2
      %v1476 = vmul.f32 %v1218, 0.2
      %v1477 = vmul.f32 %v1221, 0.2
      %v1478 = vmul.f32 %v1226, 0.2
      %v1479 = vmul.f32 %v1229, 0.2
      %v1480 = vmul.f32 %v1234, 0.2
      %v1481 = vmul.f32 %v1237, 0.2
      %v1482 = vmul.f32 %v1242, 0.2
      %v1483 = vmul.f32 %v1245, 0.2
      %v1484 = vmul.f32 %v1250, 0.2
      %v1485 = vmul.f32 %v1253, 0.2
      %v1486 = vmul.f32 %v1258, 0.2
      %v1487 = vmul.f32 %v1261, 0.2
      %v1488 = vmul.f32 %v1266, 0.2
      %v1489 = vmul.f32 %v1269, 0.2
      %v1490 = vmul.f32 %v1274, 0.2
      %v1491 = vmul.f32 %v1277, 0.2
      %v1492 = vmul.f32 %v1282, 0.2
      %v1493 = vmul.f32 %v1285, 0.2
      %v1494 = vmul.f32 %v1290, 0.2
      %v1495 = vmul.f32 %v1293, 0.2
      %v1496 = vmul.f32 %v1298, 0.2
      %v1497 = vmul.f32 %v1301, 0.2
      %v1498 = vmul.f32 %v1306, 0.2
      %v1499 = vmul.f32 %v1309, 0.2
      %v1500 = vmul.f32 %v1314, 0.2
      %v1501 = vmul.f32 %v1317, 0.2
      %v1502 = vmul.f32 %v1322, 0.2
      %v1503 = vmul.f32 %v1325, 0.2
      %v1504 = vmul.f32 %v1330, 0.2
      %v1505 = vmul.f32 %v1333, 0.2
      %v1506 = vmul.f32 %v1338, 0.2
      %v1507 = vmul.f32 %v1341, 0.2
      %v1508 = vmul.f32 %v1346, 0.2
      %v1509 = vmul.f32 %v1349, 0.2
      %v1510 = vmul.f32 %v1354, 0.2
      %v1511 = vmul.f32 %v1357, 0.2
      %v1512 = vmul.f32 %v1362, 0.2
      %v1513 = vmul.f32 %v1365, 0.2
      %v1514 = vmul.f32 %v1370, 0.2
      %v1515 = vmul.f32 %v1373, 0.2
      %v1516 = vmul.f32 %v1378, 0.2
      %v1517 = vmul.f32 %v1381, 0.2
      %v1518 = vmul.f32 %v1386, 0.2
      %v1519 = vmul.f32 %v1389, 0.2
      %v1520 = vmax.f32 %v882, %v1392
      %v1521 = vmax.f32 %v885, %v1393
      %v1522 = vmax.f32 %v890, %v1394
      %v1523 = vmax.f32 %v893, %v1395
      %v1524 = vmax.f32 %v898, %v1396
      %v1525 = vmax.f32 %v901, %v1397
      %v1526 = vmax.f32 %v906, %v1398
      %v1527 = vmax.f32 %v909, %v1399
      %v1528 = vmax.f32 %v914, %v1400
      %v1529 = vmax.f32 %v917, %v1401
      %v1530 = vmax.f32 %v922, %v1402
      %v1531 = vmax.f32 %v925, %v1403
      %v1532 = vmax.f32 %v930, %v1404
      %v1533 = vmax.f32 %v933, %v1405
      %v1534 = vmax.f32 %v938, %v1406
      %v1535 = vmax.f32 %v941, %v1407
      %v1536 = vmax.f32 %v946, %v1408
      %v1537 = vmax.f32 %v949, %v1409
      %v1538 = vmax.f32 %v954, %v1410
      %v1539 = vmax.f32 %v957, %v1411
      %v1540 = vmax.f32 %v962, %v1412
      %v1541 = vmax.f32 %v965, %v1413
      %v1542 = vmax.f32 %v970, %v1414
      %v1543 = vmax.f32 %v973, %v1415
      %v1544 = vmax.f32 %v978, %v1416
      %v1545 = vmax.f32 %v981, %v1417
      %v1546 = vmax.f32 %v986, %v1418
      %v1547 = vmax.f32 %v989, %v1419
      %v1548 = vmax.f32 %v994, %v1420
      %v1549 = vmax.f32 %v997, %v1421
      %v1550 = vmax.f32 %v1002, %v1422
      %v1551 = vmax.f32 %v1005, %v1423
      %v1552 = vmax.f32 %v1010, %v1424
      %v1553 = vmax.f32 %v1013, %v1425
      %v1554 = vmax.f32 %v1018, %v1426
      %v1555 = vmax.f32 %v1021, %v1427
      %v1556 = vmax.f32 %v1026, %v1428
      %v1557 = vmax.f32 %v1029, %v1429
      %v1558 = vmax.f32 %v1034, %v1430
      %v1559 = vmax.f32 %v1037, %v1431
      %v1560 = vmax.f32 %v1042, %v1432
      %v1561 = vmax.f32 %v1045, %v1433
      %v1562 = vmax.f32 %v1050, %v1434
      %v1563 = vmax.f32 %v1053, %v1435
      %v1564 = vmax.f32 %v1058, %v1436
      %v1565 = vmax.f32 %v1061, %v1437
      %v1566 = vmax.f32 %v1066, %v1438
      %v1567 = vmax.f32 %v1069, %v1439
      %v1568 = vmax.f32 %v1074, %v1440
      %v1569 = vmax.f32 %v1077, %v1441
      %v1570 = vmax.f32 %v1082, %v1442
      %v1571 = vmax.f32 %v1085, %v1443
      %v1572 = vmax.f32 %v1090, %v1444
      %v1573 = vmax.f32 %v1093, %v1445
      %v1574 = vmax.f32 %v1098, %v1446
      %v1575 = vmax.f32 %v1101, %v1447
      %v1576 = vmax.f32 %v1106, %v1448
      %v1577 = vmax.f32 %v1109, %v1449
      %v1578 = vmax.f32 %v1114, %v1450
      %v1579 = vmax.f32 %v1117, %v1451
      %v1580 = vmax.f32 %v1122, %v1452
      %v1581 = vmax.f32 %v1125, %v1453
      %v1582 = vmax.f32 %v1130, %v1454
      %v1583 = vmax.f32 %v1133, %v1455
      %v1584 = vmax.f32 %v1138, %v1456
      %v1585 = vmax.f32 %v1141, %v1457
      %v1586 = vmax.f32 %v1146, %v1458
      %v1587 = vmax.f32 %v1149, %v1459
      %v1588 = vmax.f32 %v1154, %v1460
      %v1589 = vmax.f32 %v1157, %v1461
      %v1590 = vmax.f32 %v1162, %v1462
      %v1591 = vmax.f32 %v1165, %v1463
      %v1592 = vmax.f32 %v1170, %v1464
      %v1593 = vmax.f32 %v1173, %v1465
      %v1594 = vmax.f32 %v1178, %v1466
      %v1595 = vmax.f32 %v1181, %v1467
      %v1596 = vmax.f32 %v1186, %v1468
      %v1597 = vmax.f32 %v1189, %v1469
      %v1598 = vmax.f32 %v1194, %v1470
      %v1599 = vmax.f32 %v1197, %v1471
      %v1600 = vmax.f32 %v1202, %v1472
      %v1601 = vmax.f32 %v1205, %v1473
      %v1602 = vmax.f32 %v1210, %v1474
      %v1603 = vmax.f32 %v1213, %v1475
      %v1604 = vmax.f32 %v1218, %v1476
      %v1605 = vmax.f32 %v1221, %v1477
      %v1606 = vmax.f32 %v1226, %v1478
      %v1607 = vmax.f32 %v1229, %v1479
      %v1608 = vmax.f32 %v1234, %v1480
      %v1609 = vmax.f32 %v1237, %v1481
      %v1610 = vmax.f32 %v1242, %v1482
      %v1611 = vmax.f32 %v1245, %v1483
      %v1612 = vmax.f32 %v1250, %v1484
      %v1613 = vmax.f32 %v1253, %v1485
      %v1614 = vmax.f32 %v1258, %v1486
      %v1615 = vmax.f32 %v1261, %v1487
      %v1616 = vmax.f32 %v1266, %v1488
      %v1617 = vmax.f32 %v1269, %v1489
      %v1618 = vmax.f32 %v1274, %v1490
      %v1619 = vmax.f32 %v1277, %v1491
      %v1620 = vmax.f32 %v1282, %v1492
      %v1621 = vmax.f32 %v1285, %v1493
      %v1622 = vmax.f32 %v1290, %v1494
      %v1623 = vmax.f32 %v1293, %v1495
      %v1624 = vmax.f32 %v1298, %v1496
      %v1625 = vmax.f32 %v1301, %v1497
      %v1626 = vmax.f32 %v1306, %v1498
      %v1627 = vmax.f32 %v1309, %v1499
      %v1628 = vmax.f32 %v1314, %v1500
      %v1629 = vmax.f32 %v1317, %v1501
      %v1630 = vmax.f32 %v1322, %v1502
      %v1631 = vmax.f32 %v1325, %v1503
      %v1632 = vmax.f32 %v1330, %v1504
      %v1633 = vmax.f32 %v1333, %v1505
      %v1634 = vmax.f32 %v1338, %v1506
      %v1635 = vmax.f32 %v1341, %v1507
      %v1636 = vmax.f32 %v1346, %v1508
      %v1637 = vmax.f32 %v1349, %v1509
      %v1638 = vmax.f32 %v1354, %v1510
      %v1639 = vmax.f32 %v1357, %v1511
      %v1640 = vmax.f32 %v1362, %v1512
      %v1641 = vmax.f32 %v1365, %v1513
      %v1642 = vmax.f32 %v1370, %v1514
      %v1643 = vmax.f32 %v1373, %v1515
      %v1644 = vmax.f32 %v1378, %v1516
      %v1645 = vmax.f32 %v1381, %v1517
      %v1646 = vmax.f32 %v1386, %v1518
      %v1647 = vmax.f32 %v1389, %v1519
      %v1648 = vpack.c.bf16 %v1521, %v1520
      %v1649 = vpack.c.bf16 %v1523, %v1522
      %v1650 = vpack.c.bf16 %v1525, %v1524
      %v1651 = vpack.c.bf16 %v1527, %v1526
      %v1652 = vpack.c.bf16 %v1529, %v1528
      %v1653 = vpack.c.bf16 %v1531, %v1530
      %v1654 = vpack.c.bf16 %v1533, %v1532
      %v1655 = vpack.c.bf16 %v1535, %v1534
      %v1656 = vpack.c.bf16 %v1537, %v1536
      %v1657 = vpack.c.bf16 %v1539, %v1538
      %v1658 = vpack.c.bf16 %v1541, %v1540
      %v1659 = vpack.c.bf16 %v1543, %v1542
      %v1660 = vpack.c.bf16 %v1545, %v1544
      %v1661 = vpack.c.bf16 %v1547, %v1546
      %v1662 = vpack.c.bf16 %v1549, %v1548
      %v1663 = vpack.c.bf16 %v1551, %v1550
      %v1664 = vpack.c.bf16 %v1553, %v1552
      %v1665 = vpack.c.bf16 %v1555, %v1554
      %v1666 = vpack.c.bf16 %v1557, %v1556
      %v1667 = vpack.c.bf16 %v1559, %v1558
      %v1668 = vpack.c.bf16 %v1561, %v1560
      %v1669 = vpack.c.bf16 %v1563, %v1562
      %v1670 = vpack.c.bf16 %v1565, %v1564
      %v1671 = vpack.c.bf16 %v1567, %v1566
      %v1672 = vpack.c.bf16 %v1569, %v1568
      %v1673 = vpack.c.bf16 %v1571, %v1570
      %v1674 = vpack.c.bf16 %v1573, %v1572
      %v1675 = vpack.c.bf16 %v1575, %v1574
      %v1676 = vpack.c.bf16 %v1577, %v1576
      %v1677 = vpack.c.bf16 %v1579, %v1578
      %v1678 = vpack.c.bf16 %v1581, %v1580
      %v1679 = vpack.c.bf16 %v1583, %v1582
      %v1680 = vpack.c.bf16 %v1585, %v1584
      %v1681 = vpack.c.bf16 %v1587, %v1586
      %v1682 = vpack.c.bf16 %v1589, %v1588
      %v1683 = vpack.c.bf16 %v1591, %v1590
      %v1684 = vpack.c.bf16 %v1593, %v1592
      %v1685 = vpack.c.bf16 %v1595, %v1594
      %v1686 = vpack.c.bf16 %v1597, %v1596
      %v1687 = vpack.c.bf16 %v1599, %v1598
      %v1688 = vpack.c.bf16 %v1601, %v1600
      %v1689 = vpack.c.bf16 %v1603, %v1602
      %v1690 = vpack.c.bf16 %v1605, %v1604
      %v1691 = vpack.c.bf16 %v1607, %v1606
      %v1692 = vpack.c.bf16 %v1609, %v1608
      %v1693 = vpack.c.bf16 %v1611, %v1610
      %v1694 = vpack.c.bf16 %v1613, %v1612
      %v1695 = vpack.c.bf16 %v1615, %v1614
      %v1696 = vpack.c.bf16 %v1617, %v1616
      %v1697 = vpack.c.bf16 %v1619, %v1618
      %v1698 = vpack.c.bf16 %v1621, %v1620
      %v1699 = vpack.c.bf16 %v1623, %v1622
      %v1700 = vpack.c.bf16 %v1625, %v1624
      %v1701 = vpack.c.bf16 %v1627, %v1626
      %v1702 = vpack.c.bf16 %v1629, %v1628
      %v1703 = vpack.c.bf16 %v1631, %v1630
      %v1704 = vpack.c.bf16 %v1633, %v1632
      %v1705 = vpack.c.bf16 %v1635, %v1634
      %v1706 = vpack.c.bf16 %v1637, %v1636
      %v1707 = vpack.c.bf16 %v1639, %v1638
      %v1708 = vpack.c.bf16 %v1641, %v1640
      %v1709 = vpack.c.bf16 %v1643, %v1642
      %v1710 = vpack.c.bf16 %v1645, %v1644
      %v1711 = vpack.c.bf16 %v1647, %v1646
      %v1776 = vunpack.c.l.b16 %v1648
      %v1777 = vunpack.c.h.b16 %v1648
      %v1778 = vunpack.c.l.b16 %v1649
      %v1779 = vunpack.c.h.b16 %v1649
      %v1780 = vunpack.c.l.b16 %v1650
      %v1781 = vunpack.c.h.b16 %v1650
      %v1782 = vunpack.c.l.b16 %v1651
      %v1783 = vunpack.c.h.b16 %v1651
      %v1784 = vunpack.c.l.b16 %v1652
      %v1785 = vunpack.c.h.b16 %v1652
      %v1786 = vunpack.c.l.b16 %v1653
      %v1787 = vunpack.c.h.b16 %v1653
      %v1788 = vunpack.c.l.b16 %v1654
      %v1789 = vunpack.c.h.b16 %v1654
      %v1790 = vunpack.c.l.b16 %v1655
      %v1791 = vunpack.c.h.b16 %v1655
      %v1792 = vunpack.c.l.b16 %v1656
      %v1793 = vunpack.c.h.b16 %v1656
      %v1794 = vunpack.c.l.b16 %v1657
      %v1795 = vunpack.c.h.b16 %v1657
      %v1796 = vunpack.c.l.b16 %v1658
      %v1797 = vunpack.c.h.b16 %v1658
      %v1798 = vunpack.c.l.b16 %v1659
      %v1799 = vunpack.c.h.b16 %v1659
      %v1800 = vunpack.c.l.b16 %v1660
      %v1801 = vunpack.c.h.b16 %v1660
      %v1802 = vunpack.c.l.b16 %v1661
      %v1803 = vunpack.c.h.b16 %v1661
      %v1804 = vunpack.c.l.b16 %v1662
      %v1805 = vunpack.c.h.b16 %v1662
      %v1806 = vunpack.c.l.b16 %v1663
      %v1807 = vunpack.c.h.b16 %v1663
      %v1808 = vunpack.c.l.b16 %v1664
      %v1809 = vunpack.c.h.b16 %v1664
      %v1810 = vunpack.c.l.b16 %v1665
      %v1811 = vunpack.c.h.b16 %v1665
      %v1812 = vunpack.c.l.b16 %v1666
      %v1813 = vunpack.c.h.b16 %v1666
      %v1814 = vunpack.c.l.b16 %v1667
      %v1815 = vunpack.c.h.b16 %v1667
      %v1816 = vunpack.c.l.b16 %v1668
      %v1817 = vunpack.c.h.b16 %v1668
      %v1818 = vunpack.c.l.b16 %v1669
      %v1819 = vunpack.c.h.b16 %v1669
      %v1820 = vunpack.c.l.b16 %v1670
      %v1821 = vunpack.c.h.b16 %v1670
      %v1822 = vunpack.c.l.b16 %v1671
      %v1823 = vunpack.c.h.b16 %v1671
      %v1824 = vunpack.c.l.b16 %v1672
      %v1825 = vunpack.c.h.b16 %v1672
      %v1826 = vunpack.c.l.b16 %v1673
      %v1827 = vunpack.c.h.b16 %v1673
      %v1828 = vunpack.c.l.b16 %v1674
      %v1829 = vunpack.c.h.b16 %v1674
      %v1830 = vunpack.c.l.b16 %v1675
      %v1831 = vunpack.c.h.b16 %v1675
      %v1832 = vunpack.c.l.b16 %v1676
      %v1833 = vunpack.c.h.b16 %v1676
      %v1834 = vunpack.c.l.b16 %v1677
      %v1835 = vunpack.c.h.b16 %v1677
      %v1836 = vunpack.c.l.b16 %v1678
      %v1837 = vunpack.c.h.b16 %v1678
      %v1838 = vunpack.c.l.b16 %v1679
      %v1839 = vunpack.c.h.b16 %v1679
      %v1840 = vunpack.c.l.b16 %v1680
      %v1841 = vunpack.c.h.b16 %v1680
      %v1842 = vunpack.c.l.b16 %v1681
      %v1843 = vunpack.c.h.b16 %v1681
      %v1844 = vunpack.c.l.b16 %v1682
      %v1845 = vunpack.c.h.b16 %v1682
      %v1846 = vunpack.c.l.b16 %v1683
      %v1847 = vunpack.c.h.b16 %v1683
      %v1848 = vunpack.c.l.b16 %v1684
      %v1849 = vunpack.c.h.b16 %v1684
      %v1850 = vunpack.c.l.b16 %v1685
      %v1851 = vunpack.c.h.b16 %v1685
      %v1852 = vunpack.c.l.b16 %v1686
      %v1853 = vunpack.c.h.b16 %v1686
      %v1854 = vunpack.c.l.b16 %v1687
      %v1855 = vunpack.c.h.b16 %v1687
      %v1856 = vunpack.c.l.b16 %v1688
      %v1857 = vunpack.c.h.b16 %v1688
      %v1858 = vunpack.c.l.b16 %v1689
      %v1859 = vunpack.c.h.b16 %v1689
      %v1860 = vunpack.c.l.b16 %v1690
      %v1861 = vunpack.c.h.b16 %v1690
      %v1862 = vunpack.c.l.b16 %v1691
      %v1863 = vunpack.c.h.b16 %v1691
      %v1864 = vunpack.c.l.b16 %v1692
      %v1865 = vunpack.c.h.b16 %v1692
      %v1866 = vunpack.c.l.b16 %v1693
      %v1867 = vunpack.c.h.b16 %v1693
      %v1868 = vunpack.c.l.b16 %v1694
      %v1869 = vunpack.c.h.b16 %v1694
      %v1870 = vunpack.c.l.b16 %v1695
      %v1871 = vunpack.c.h.b16 %v1695
      %v1872 = vunpack.c.l.b16 %v1696
      %v1873 = vunpack.c.h.b16 %v1696
      %v1874 = vunpack.c.l.b16 %v1697
      %v1875 = vunpack.c.h.b16 %v1697
      %v1876 = vunpack.c.l.b16 %v1698
      %v1877 = vunpack.c.h.b16 %v1698
      %v1878 = vunpack.c.l.b16 %v1699
      %v1879 = vunpack.c.h.b16 %v1699
      %v1880 = vunpack.c.l.b16 %v1700
      %v1881 = vunpack.c.h.b16 %v1700
      %v1882 = vunpack.c.l.b16 %v1701
      %v1883 = vunpack.c.h.b16 %v1701
      %v1884 = vunpack.c.l.b16 %v1702
      %v1885 = vunpack.c.h.b16 %v1702
      %v1886 = vunpack.c.l.b16 %v1703
      %v1887 = vunpack.c.h.b16 %v1703
      %v1888 = vunpack.c.l.b16 %v1704
      %v1889 = vunpack.c.h.b16 %v1704
      %v1890 = vunpack.c.l.b16 %v1705
      %v1891 = vunpack.c.h.b16 %v1705
      %v1892 = vunpack.c.l.b16 %v1706
      %v1893 = vunpack.c.h.b16 %v1706
      %v1894 = vunpack.c.l.b16 %v1707
      %v1895 = vunpack.c.h.b16 %v1707
      %v1896 = vunpack.c.l.b16 %v1708
      %v1897 = vunpack.c.h.b16 %v1708
      %v1898 = vunpack.c.l.b16 %v1709
      %v1899 = vunpack.c.h.b16 %v1709
      %v1900 = vunpack.c.l.b16 %v1710
      %v1901 = vunpack.c.h.b16 %v1710
      %v1902 = vunpack.c.l.b16 %v1711
      %v1903 = vunpack.c.h.b16 %v1711
      %v1904 = vpack.c.b16 %v1776, %v1776
      %v1905 = vpack.c.b16 %v1777, %v1777
      %v1906 = vpack.c.b16 %v1778, %v1778
      %v1907 = vpack.c.b16 %v1779, %v1779
      %v1908 = vpack.c.b16 %v1780, %v1780
      %v1909 = vpack.c.b16 %v1781, %v1781
      %v1910 = vpack.c.b16 %v1782, %v1782
      %v1911 = vpack.c.b16 %v1783, %v1783
      %v1912 = vpack.c.b16 %v1784, %v1784
      %v1913 = vpack.c.b16 %v1785, %v1785
      %v1914 = vpack.c.b16 %v1786, %v1786
      %v1915 = vpack.c.b16 %v1787, %v1787
      %v1916 = vpack.c.b16 %v1788, %v1788
      %v1917 = vpack.c.b16 %v1789, %v1789
      %v1918 = vpack.c.b16 %v1790, %v1790
      %v1919 = vpack.c.b16 %v1791, %v1791
      %v1920 = vpack.c.b16 %v1792, %v1792
      %v1921 = vpack.c.b16 %v1793, %v1793
      %v1922 = vpack.c.b16 %v1794, %v1794
      %v1923 = vpack.c.b16 %v1795, %v1795
      %v1924 = vpack.c.b16 %v1796, %v1796
      %v1925 = vpack.c.b16 %v1797, %v1797
      %v1926 = vpack.c.b16 %v1798, %v1798
      %v1927 = vpack.c.b16 %v1799, %v1799
      %v1928 = vpack.c.b16 %v1800, %v1800
      %v1929 = vpack.c.b16 %v1801, %v1801
      %v1930 = vpack.c.b16 %v1802, %v1802
      %v1931 = vpack.c.b16 %v1803, %v1803
      %v1932 = vpack.c.b16 %v1804, %v1804
      %v1933 = vpack.c.b16 %v1805, %v1805
      %v1934 = vpack.c.b16 %v1806, %v1806
      %v1935 = vpack.c.b16 %v1807, %v1807
      %v1936 = vpack.c.b16 %v1808, %v1808
      %v1937 = vpack.c.b16 %v1809, %v1809
      %v1938 = vpack.c.b16 %v1810, %v1810
      %v1939 = vpack.c.b16 %v1811, %v1811
      %v1940 = vpack.c.b16 %v1812, %v1812
      %v1941 = vpack.c.b16 %v1813, %v1813
      %v1942 = vpack.c.b16 %v1814, %v1814
      %v1943 = vpack.c.b16 %v1815, %v1815
      %v1944 = vpack.c.b16 %v1816, %v1816
      %v1945 = vpack.c.b16 %v1817, %v1817
      %v1946 = vpack.c.b16 %v1818, %v1818
      %v1947 = vpack.c.b16 %v1819, %v1819
      %v1948 = vpack.c.b16 %v1820, %v1820
      %v1949 = vpack.c.b16 %v1821, %v1821
      %v1950 = vpack.c.b16 %v1822, %v1822
      %v1951 = vpack.c.b16 %v1823, %v1823
      %v1952 = vpack.c.b16 %v1824, %v1824
      %v1953 = vpack.c.b16 %v1825, %v1825
      %v1954 = vpack.c.b16 %v1826, %v1826
      %v1955 = vpack.c.b16 %v1827, %v1827
      %v1956 = vpack.c.b16 %v1828, %v1828
      %v1957 = vpack.c.b16 %v1829, %v1829
      %v1958 = vpack.c.b16 %v1830, %v1830
      %v1959 = vpack.c.b16 %v1831, %v1831
      %v1960 = vpack.c.b16 %v1832, %v1832
      %v1961 = vpack.c.b16 %v1833, %v1833
      %v1962 = vpack.c.b16 %v1834, %v1834
      %v1963 = vpack.c.b16 %v1835, %v1835
      %v1964 = vpack.c.b16 %v1836, %v1836
      %v1965 = vpack.c.b16 %v1837, %v1837
      %v1966 = vpack.c.b16 %v1838, %v1838
      %v1967 = vpack.c.b16 %v1839, %v1839
      %v1968 = vpack.c.b16 %v1840, %v1840
      %v1969 = vpack.c.b16 %v1841, %v1841
      %v1970 = vpack.c.b16 %v1842, %v1842
      %v1971 = vpack.c.b16 %v1843, %v1843
      %v1972 = vpack.c.b16 %v1844, %v1844
      %v1973 = vpack.c.b16 %v1845, %v1845
      %v1974 = vpack.c.b16 %v1846, %v1846
      %v1975 = vpack.c.b16 %v1847, %v1847
      %v1976 = vpack.c.b16 %v1848, %v1848
      %v1977 = vpack.c.b16 %v1849, %v1849
      %v1978 = vpack.c.b16 %v1850, %v1850
      %v1979 = vpack.c.b16 %v1851, %v1851
      %v1980 = vpack.c.b16 %v1852, %v1852
      %v1981 = vpack.c.b16 %v1853, %v1853
      %v1982 = vpack.c.b16 %v1854, %v1854
      %v1983 = vpack.c.b16 %v1855, %v1855
      %v1984 = vpack.c.b16 %v1856, %v1856
      %v1985 = vpack.c.b16 %v1857, %v1857
      %v1986 = vpack.c.b16 %v1858, %v1858
      %v1987 = vpack.c.b16 %v1859, %v1859
      %v1988 = vpack.c.b16 %v1860, %v1860
      %v1989 = vpack.c.b16 %v1861, %v1861
      %v1990 = vpack.c.b16 %v1862, %v1862
      %v1991 = vpack.c.b16 %v1863, %v1863
      %v1992 = vpack.c.b16 %v1864, %v1864
      %v1993 = vpack.c.b16 %v1865, %v1865
      %v1994 = vpack.c.b16 %v1866, %v1866
      %v1995 = vpack.c.b16 %v1867, %v1867
      %v1996 = vpack.c.b16 %v1868, %v1868
      %v1997 = vpack.c.b16 %v1869, %v1869
      %v1998 = vpack.c.b16 %v1870, %v1870
      %v1999 = vpack.c.b16 %v1871, %v1871
      %v2000 = vpack.c.b16 %v1872, %v1872
      %v2001 = vpack.c.b16 %v1873, %v1873
      %v2002 = vpack.c.b16 %v1874, %v1874
      %v2003 = vpack.c.b16 %v1875, %v1875
      %v2004 = vpack.c.b16 %v1876, %v1876
      %v2005 = vpack.c.b16 %v1877, %v1877
      %v2006 = vpack.c.b16 %v1878, %v1878
      %v2007 = vpack.c.b16 %v1879, %v1879
      %v2008 = vpack.c.b16 %v1880, %v1880
      %v2009 = vpack.c.b16 %v1881, %v1881
      %v2010 = vpack.c.b16 %v1882, %v1882
      %v2011 = vpack.c.b16 %v1883, %v1883
      %v2012 = vpack.c.b16 %v1884, %v1884
      %v2013 = vpack.c.b16 %v1885, %v1885
      %v2014 = vpack.c.b16 %v1886, %v1886
      %v2015 = vpack.c.b16 %v1887, %v1887
      %v2016 = vpack.c.b16 %v1888, %v1888
      %v2017 = vpack.c.b16 %v1889, %v1889
      %v2018 = vpack.c.b16 %v1890, %v1890
      %v2019 = vpack.c.b16 %v1891, %v1891
      %v2020 = vpack.c.b16 %v1892, %v1892
      %v2021 = vpack.c.b16 %v1893, %v1893
      %v2022 = vpack.c.b16 %v1894, %v1894
      %v2023 = vpack.c.b16 %v1895, %v1895
      %v2024 = vpack.c.b16 %v1896, %v1896
      %v2025 = vpack.c.b16 %v1897, %v1897
      %v2026 = vpack.c.b16 %v1898, %v1898
      %v2027 = vpack.c.b16 %v1899, %v1899
      %v2028 = vpack.c.b16 %v1900, %v1900
      %v2029 = vpack.c.b16 %v1901, %v1901
      %v2030 = vpack.c.b16 %v1902, %v1902
      %v2031 = vpack.c.b16 %v1903, %v1903
      %2160 = vst [vmem:[%s172] sm:$0xf] %v1904
      %2161 = vst [vmem:[%s172 + $0x4] sm:$0xf] %v1905
      %2162 = vst [vmem:[%s172 + $0x8] sm:$0xf] %v1906
      %2163 = vst [vmem:[%s172 + $0xc] sm:$0xf] %v1907
      %2164 = vst [vmem:[%s172 + $0x10] sm:$0xf] %v1908
      %2165 = vst [vmem:[%s172 + $0x14] sm:$0xf] %v1909
      %2166 = vst [vmem:[%s172 + $0x18] sm:$0xf] %v1910
      %2167 = vst [vmem:[%s172 + $0x1c] sm:$0xf] %v1911
      %2168 = vst [vmem:[%s172 + $0x20] sm:$0xf] %v1912
      %2169 = vst [vmem:[%s172 + $0x24] sm:$0xf] %v1913
      %2170 = vst [vmem:[%s172 + $0x28] sm:$0xf] %v1914
      %2171 = vst [vmem:[%s172 + $0x2c] sm:$0xf] %v1915
      %2172 = vst [vmem:[%s172 + $0x30] sm:$0xf] %v1916
      %2173 = vst [vmem:[%s172 + $0x34] sm:$0xf] %v1917
      %2174 = vst [vmem:[%s172 + $0x38] sm:$0xf] %v1918
      %2175 = vst [vmem:[%s172 + $0x3c] sm:$0xf] %v1919
      %2176 = vst [vmem:[%s172 + $0x40] sm:$0xf] %v1920
      %2177 = vst [vmem:[%s172 + $0x44] sm:$0xf] %v1921
      %2178 = vst [vmem:[%s172 + $0x48] sm:$0xf] %v1922
      %2179 = vst [vmem:[%s172 + $0x4c] sm:$0xf] %v1923
      %2180 = vst [vmem:[%s172 + $0x50] sm:$0xf] %v1924
      %2181 = vst [vmem:[%s172 + $0x54] sm:$0xf] %v1925
      %2182 = vst [vmem:[%s172 + $0x58] sm:$0xf] %v1926
      %2183 = vst [vmem:[%s172 + $0x5c] sm:$0xf] %v1927
      %2184 = vst [vmem:[%s172 + $0x60] sm:$0xf] %v1928
      %2185 = vst [vmem:[%s172 + $0x64] sm:$0xf] %v1929
      %2186 = vst [vmem:[%s172 + $0x68] sm:$0xf] %v1930
      %2187 = vst [vmem:[%s172 + $0x6c] sm:$0xf] %v1931
      %2188 = vst [vmem:[%s172 + $0x70] sm:$0xf] %v1932
      %2189 = vst [vmem:[%s172 + $0x74] sm:$0xf] %v1933
      %2190 = vst [vmem:[%s172 + $0x78] sm:$0xf] %v1934
      %2191 = vst [vmem:[%s172 + $0x7c] sm:$0xf] %v1935
      %2192 = vst [vmem:[%s172 + $0x80] sm:$0xf] %v1936
      %2193 = vst [vmem:[%s172 + $0x84] sm:$0xf] %v1937
      %2194 = vst [vmem:[%s172 + $0x88] sm:$0xf] %v1938
      %2195 = vst [vmem:[%s172 + $0x8c] sm:$0xf] %v1939
      %2196 = vst [vmem:[%s172 + $0x90] sm:$0xf] %v1940
      %2197 = vst [vmem:[%s172 + $0x94] sm:$0xf] %v1941
      %2198 = vst [vmem:[%s172 + $0x98] sm:$0xf] %v1942
      %2199 = vst [vmem:[%s172 + $0x9c] sm:$0xf] %v1943
      %2200 = vst [vmem:[%s172 + $0xa0] sm:$0xf] %v1944
      %2201 = vst [vmem:[%s172 + $0xa4] sm:$0xf] %v1945
      %2202 = vst [vmem:[%s172 + $0xa8] sm:$0xf] %v1946
      %2203 = vst [vmem:[%s172 + $0xac] sm:$0xf] %v1947
      %2204 = vst [vmem:[%s172 + $0xb0] sm:$0xf] %v1948
      %2205 = vst [vmem:[%s172 + $0xb4] sm:$0xf] %v1949
      %2206 = vst [vmem:[%s172 + $0xb8] sm:$0xf] %v1950
      %2207 = vst [vmem:[%s172 + $0xbc] sm:$0xf] %v1951
      %2208 = vst [vmem:[%s172 + $0xc0] sm:$0xf] %v1952
      %2209 = vst [vmem:[%s172 + $0xc4] sm:$0xf] %v1953
      %2210 = vst [vmem:[%s172 + $0xc8] sm:$0xf] %v1954
      %2211 = vst [vmem:[%s172 + $0xcc] sm:$0xf] %v1955
      %2212 = vst [vmem:[%s172 + $0xd0] sm:$0xf] %v1956
      %2213 = vst [vmem:[%s172 + $0xd4] sm:$0xf] %v1957
      %2214 = vst [vmem:[%s172 + $0xd8] sm:$0xf] %v1958
      %2215 = vst [vmem:[%s172 + $0xdc] sm:$0xf] %v1959
      %2216 = vst [vmem:[%s172 + $0xe0] sm:$0xf] %v1960
      %2217 = vst [vmem:[%s172 + $0xe4] sm:$0xf] %v1961
      %2218 = vst [vmem:[%s172 + $0xe8] sm:$0xf] %v1962
      %2219 = vst [vmem:[%s172 + $0xec] sm:$0xf] %v1963
      %2220 = vst [vmem:[%s172 + $0xf0] sm:$0xf] %v1964
      %2221 = vst [vmem:[%s172 + $0xf4] sm:$0xf] %v1965
      %2222 = vst [vmem:[%s172 + $0xf8] sm:$0xf] %v1966
      %2223 = vst [vmem:[%s172 + $0xfc] sm:$0xf] %v1967
      %2224 = vst [vmem:[%s172 + $0x100] sm:$0xf] %v1968
      %2225 = vst [vmem:[%s172 + $0x104] sm:$0xf] %v1969
      %2226 = vst [vmem:[%s172 + $0x108] sm:$0xf] %v1970
      %2227 = vst [vmem:[%s172 + $0x10c] sm:$0xf] %v1971
      %2228 = vst [vmem:[%s172 + $0x110] sm:$0xf] %v1972
      %2229 = vst [vmem:[%s172 + $0x114] sm:$0xf] %v1973
      %2230 = vst [vmem:[%s172 + $0x118] sm:$0xf] %v1974
      %2231 = vst [vmem:[%s172 + $0x11c] sm:$0xf] %v1975
      %2232 = vst [vmem:[%s172 + $0x120] sm:$0xf] %v1976
      %2233 = vst [vmem:[%s172 + $0x124] sm:$0xf] %v1977
      %2234 = vst [vmem:[%s172 + $0x128] sm:$0xf] %v1978
      %2235 = vst [vmem:[%s172 + $0x12c] sm:$0xf] %v1979
      %2236 = vst [vmem:[%s172 + $0x130] sm:$0xf] %v1980
      %2237 = vst [vmem:[%s172 + $0x134] sm:$0xf] %v1981
      %2238 = vst [vmem:[%s172 + $0x138] sm:$0xf] %v1982
      %2239 = vst [vmem:[%s172 + $0x13c] sm:$0xf] %v1983
      %2240 = vst [vmem:[%s172 + $0x140] sm:$0xf] %v1984
      %2241 = vst [vmem:[%s172 + $0x144] sm:$0xf] %v1985
      %2242 = vst [vmem:[%s172 + $0x148] sm:$0xf] %v1986
      %2243 = vst [vmem:[%s172 + $0x14c] sm:$0xf] %v1987
      %2244 = vst [vmem:[%s172 + $0x150] sm:$0xf] %v1988
      %2245 = vst [vmem:[%s172 + $0x154] sm:$0xf] %v1989
      %2246 = vst [vmem:[%s172 + $0x158] sm:$0xf] %v1990
      %2247 = vst [vmem:[%s172 + $0x15c] sm:$0xf] %v1991
      %2248 = vst [vmem:[%s172 + $0x160] sm:$0xf] %v1992
      %2249 = vst [vmem:[%s172 + $0x164] sm:$0xf] %v1993
      %2250 = vst [vmem:[%s172 + $0x168] sm:$0xf] %v1994
      %2251 = vst [vmem:[%s172 + $0x16c] sm:$0xf] %v1995
      %2252 = vst [vmem:[%s172 + $0x170] sm:$0xf] %v1996
      %2253 = vst [vmem:[%s172 + $0x174] sm:$0xf] %v1997
      %2254 = vst [vmem:[%s172 + $0x178] sm:$0xf] %v1998
      %2255 = vst [vmem:[%s172 + $0x17c] sm:$0xf] %v1999
      %2256 = vst [vmem:[%s172 + $0x180] sm:$0xf] %v2000
      %2257 = vst [vmem:[%s172 + $0x184] sm:$0xf] %v2001
      %2258 = vst [vmem:[%s172 + $0x188] sm:$0xf] %v2002
      %2259 = vst [vmem:[%s172 + $0x18c] sm:$0xf] %v2003
      %2260 = vst [vmem:[%s172 + $0x190] sm:$0xf] %v2004
      %2261 = vst [vmem:[%s172 + $0x194] sm:$0xf] %v2005
      %2262 = vst [vmem:[%s172 + $0x198] sm:$0xf] %v2006
      %2263 = vst [vmem:[%s172 + $0x19c] sm:$0xf] %v2007
      %2264 = vst [vmem:[%s172 + $0x1a0] sm:$0xf] %v2008
      %2265 = vst [vmem:[%s172 + $0x1a4] sm:$0xf] %v2009
      %2266 = vst [vmem:[%s172 + $0x1a8] sm:$0xf] %v2010
      %2267 = vst [vmem:[%s172 + $0x1ac] sm:$0xf] %v2011
      %2268 = vst [vmem:[%s172 + $0x1b0] sm:$0xf] %v2012
      %2269 = vst [vmem:[%s172 + $0x1b4] sm:$0xf] %v2013
      %2270 = vst [vmem:[%s172 + $0x1b8] sm:$0xf] %v2014
      %2271 = vst [vmem:[%s172 + $0x1bc] sm:$0xf] %v2015
      %2272 = vst [vmem:[%s172 + $0x1c0] sm:$0xf] %v2016
      %2273 = vst [vmem:[%s172 + $0x1c4] sm:$0xf] %v2017
      %2274 = vst [vmem:[%s172 + $0x1c8] sm:$0xf] %v2018
      %2275 = vst [vmem:[%s172 + $0x1cc] sm:$0xf] %v2019
      %2276 = vst [vmem:[%s172 + $0x1d0] sm:$0xf] %v2020
      %2277 = vst [vmem:[%s172 + $0x1d4] sm:$0xf] %v2021
      %2278 = vst [vmem:[%s172 + $0x1d8] sm:$0xf] %v2022
      %2279 = vst [vmem:[%s172 + $0x1dc] sm:$0xf] %v2023
      %2280 = vst [vmem:[%s172 + $0x1e0] sm:$0xf] %v2024
      %2281 = vst [vmem:[%s172 + $0x1e4] sm:$0xf] %v2025
      %2282 = vst [vmem:[%s172 + $0x1e8] sm:$0xf] %v2026
      %2283 = vst [vmem:[%s172 + $0x1ec] sm:$0xf] %v2027
      %2284 = vst [vmem:[%s172 + $0x1f0] sm:$0xf] %v2028
      %2285 = vst [vmem:[%s172 + $0x1f4] sm:$0xf] %v2029
      %2286 = vst [vmem:[%s172 + $0x1f8] sm:$0xf] %v2030
      %2287 = vst [vmem:[%s172 + $0x1fc] sm:$0xf] %v2031
      %s2288 = smul.u32 128, %s14
      %p2289 = scmp.lt.s32.totalorder %s2288, 255
      %s2290 = scalar_select %p2289, %s2288, 255
      %s2291 = smul.addr %s2290, 4
      %s2292 = scalar_lea.vmem %s3, %s2291
      // Predicated region
      $region33: #{dcgan_discriminator.5} parent=31 // pred_check
        %p2293 = pneg %p100
      $region34: #{dcgan_discriminator.5} parent=31 // pred_check_branch
        %2295 = sbr.rel (%p2293) target = $region36
      $region35: #{dcgan_discriminator.5} parent=31 // pred_region
        %s2296 = smul.u32 128, %s14
      $region36: #{dcgan_discriminator.5} parent=31 // pred_fallthru
        _
    $region32: #{dcgan_discriminator.5} parent=5 // pred_fallthru
      _
    %p2297 = scmp.le.s32.totalorder 2, %s9
    // Predicated region
    $region37: #{dcgan_discriminator.5} parent=5 // pred_check
      %p2298 = pneg %p2297
    $region38: #{dcgan_discriminator.5} parent=5 // pred_check_branch
      %2300 = sbr.rel (%p2298) target = $region40
    $region39: #{dcgan_discriminator.5} parent=5 // pred_region
      %s2301 = ssub.s32 %s9, 2
      // Predicated region
      $region41: #{dcgan_discriminator.5} parent=39 // pred_check
        %p2302 = pneg %p106
      $region42: #{dcgan_discriminator.5} parent=39 // pred_check_branch
        %2304 = sbr.rel (%p2302) target = $region44
      $region43: #{dcgan_discriminator.5} parent=39 // pred_region
        %s2305 = smul.u32 128, %s15
        %p2306 = scmp.lt.s32.totalorder %s2305, 255
        %s2307 = scalar_select %p2306, %s2305, 255
        %s2308 = smul.addr %s2307, 4
        %s2309 = scalar_lea.vmem %s3, %s2308
      $region44: #{dcgan_discriminator.5} parent=39 // pred_fallthru
        _
    $region40: #{dcgan_discriminator.5} parent=5 // pred_fallthru
      _
  $region6: #{dcgan_discriminator.5} parent=0 // loop_footer
    %s13 = sadd.s32 1, %s9
  $region7: #{dcgan_discriminator.5} parent=0 // loop_footer_branch
    %8 = sbr.rel target = $region3
  $region8: #{dcgan_discriminator.5} parent=0 // loop_exit
    _

// kernel: dcgan_discriminator.6
$region0: #{dcgan_discriminator.6}
  #allocation0 [shape = 'u32[]', space=smem, size = 0x4, offset = 0x4, fixed_abs, tag = 'smem constant byte address 0x4 - core index']
  #allocation1 [shape = 'u32[144,128]{1,0:T(1,128)}', space=vmem, size = 0x12000, scoped, tag = 'internal scratch']
  %s0 = inlined_call_operand.vmem [shape: bf16[512,128], index: 0, kind: input, shape index: {}]
  %s1 = inlined_call_operand.vmem [shape: bf16[128,128], index: 1, kind: input, shape index: {}]
  %s2 = inlined_call_operand.vmem [shape: bf16[512,128], index: 2, kind: output, shape index: {0}]
  %s3 = inlined_call_operand.vmem [shape: f32[8,128], index: 3, kind: output, shape index: {1}]
  %s4 = inlined_call_operand.vmem [shape: f32[8,128], index: 4, kind: output, shape index: {2}]
  %5 = xla_tuple %s2, %s3, %s4
  %s6 = sld [smem:[#allocation0]]
  $region34: #{dcgan_discriminator.6} parent=0
    _
  %s8 = ssub.s32 1, %s6
  %s9 = scalar_select 0, %s8, %s6
  // Predicated region
  $region2: #{dcgan_discriminator.6} parent=0 // pred_check
    _
  $region3: #{dcgan_discriminator.6} parent=0 // pred_check_branch
    %11 = sbr.rel (0) target = $region5
  $region4: #{dcgan_discriminator.6} parent=0 // pred_region
    _
  $region5: #{dcgan_discriminator.6} parent=0 // pred_fallthru
    _
  // Predicated region
  $region6: #{dcgan_discriminator.6} parent=0 // pred_check
    _
  $region7: #{dcgan_discriminator.6} parent=0 // pred_check_branch
    %13 = sbr.rel (0) target = $region9
  $region8: #{dcgan_discriminator.6} parent=0 // pred_region
    _
  $region9: #{dcgan_discriminator.6} parent=0 // pred_fallthru
    _
  %v15 = vld [vmem:[%s0] sm:$0xf]
  %v16 = vld [vmem:[%s0 + $0x4] sm:$0xf]
  %v17 = vld [vmem:[%s0 + $0x8] sm:$0xf]
  %v18 = vld [vmem:[%s0 + $0xc] sm:$0xf]
  %v19 = vld [vmem:[%s0 + $0x10] sm:$0xf]
  %v20 = vld [vmem:[%s0 + $0x14] sm:$0xf]
  %v21 = vld [vmem:[%s0 + $0x18] sm:$0xf]
  %v22 = vld [vmem:[%s0 + $0x1c] sm:$0xf]
  %v23 = vld [vmem:[%s0 + $0x20] sm:$0xf]
  %v24 = vld [vmem:[%s0 + $0x24] sm:$0xf]
  %v25 = vld [vmem:[%s0 + $0x28] sm:$0xf]
  %v26 = vld [vmem:[%s0 + $0x2c] sm:$0xf]
  %v27 = vld [vmem:[%s0 + $0x30] sm:$0xf]
  %v28 = vld [vmem:[%s0 + $0x34] sm:$0xf]
  %v29 = vld [vmem:[%s0 + $0x38] sm:$0xf]
  %v30 = vld [vmem:[%s0 + $0x3c] sm:$0xf]
  %v31 = vld [vmem:[%s0 + $0x40] sm:$0xf]
  %v32 = vld [vmem:[%s0 + $0x44] sm:$0xf]
  %v33 = vld [vmem:[%s0 + $0x48] sm:$0xf]
  %v34 = vld [vmem:[%s0 + $0x4c] sm:$0xf]
  %v35 = vld [vmem:[%s0 + $0x50] sm:$0xf]
  %v36 = vld [vmem:[%s0 + $0x54] sm:$0xf]
  %v37 = vld [vmem:[%s0 + $0x58] sm:$0xf]
  %v38 = vld [vmem:[%s0 + $0x5c] sm:$0xf]
  %v39 = vld [vmem:[%s0 + $0x60] sm:$0xf]
  %v40 = vld [vmem:[%s0 + $0x64] sm:$0xf]
  %v41 = vld [vmem:[%s0 + $0x68] sm:$0xf]
  %v42 = vld [vmem:[%s0 + $0x6c] sm:$0xf]
  %v43 = vld [vmem:[%s0 + $0x70] sm:$0xf]
  %v44 = vld [vmem:[%s0 + $0x74] sm:$0xf]
  %v45 = vld [vmem:[%s0 + $0x78] sm:$0xf]
  %v46 = vld [vmem:[%s0 + $0x7c] sm:$0xf]
  %v47 = vld [vmem:[%s0 + $0x80] sm:$0xf]
  %v48 = vld [vmem:[%s0 + $0x84] sm:$0xf]
  %v49 = vld [vmem:[%s0 + $0x88] sm:$0xf]
  %v50 = vld [vmem:[%s0 + $0x8c] sm:$0xf]
  %v51 = vld [vmem:[%s0 + $0x90] sm:$0xf]
  %v52 = vld [vmem:[%s0 + $0x94] sm:$0xf]
  %v53 = vld [vmem:[%s0 + $0x98] sm:$0xf]
  %v54 = vld [vmem:[%s0 + $0x9c] sm:$0xf]
  %v55 = vld [vmem:[%s0 + $0xa0] sm:$0xf]
  %v56 = vld [vmem:[%s0 + $0xa4] sm:$0xf]
  %v57 = vld [vmem:[%s0 + $0xa8] sm:$0xf]
  %v58 = vld [vmem:[%s0 + $0xac] sm:$0xf]
  %v59 = vld [vmem:[%s0 + $0xb0] sm:$0xf]
  %v60 = vld [vmem:[%s0 + $0xb4] sm:$0xf]
  %v61 = vld [vmem:[%s0 + $0xb8] sm:$0xf]
  %v62 = vld [vmem:[%s0 + $0xbc] sm:$0xf]
  %v63 = vld [vmem:[%s0 + $0xc0] sm:$0xf]
  %v64 = vld [vmem:[%s0 + $0xc4] sm:$0xf]
  %v65 = vld [vmem:[%s0 + $0xc8] sm:$0xf]
  %v66 = vld [vmem:[%s0 + $0xcc] sm:$0xf]
  %v67 = vld [vmem:[%s0 + $0xd0] sm:$0xf]
  %v68 = vld [vmem:[%s0 + $0xd4] sm:$0xf]
  %v69 = vld [vmem:[%s0 + $0xd8] sm:$0xf]
  %v70 = vld [vmem:[%s0 + $0xdc] sm:$0xf]
  %v71 = vld [vmem:[%s0 + $0xe0] sm:$0xf]
  %v72 = vld [vmem:[%s0 + $0xe4] sm:$0xf]
  %v73 = vld [vmem:[%s0 + $0xe8] sm:$0xf]
  %v74 = vld [vmem:[%s0 + $0xec] sm:$0xf]
  %v75 = vld [vmem:[%s0 + $0xf0] sm:$0xf]
  %v76 = vld [vmem:[%s0 + $0xf4] sm:$0xf]
  %v77 = vld [vmem:[%s0 + $0xf8] sm:$0xf]
  %v78 = vld [vmem:[%s0 + $0xfc] sm:$0xf]
  %v79 = vld [vmem:[%s1] sm:$0xf]
  %v80 = vld [vmem:[%s1 + $0x4] sm:$0xf]
  %v81 = vld [vmem:[%s1 + $0x8] sm:$0xf]
  %v82 = vld [vmem:[%s1 + $0xc] sm:$0xf]
  %v83 = vld [vmem:[%s1 + $0x10] sm:$0xf]
  %v84 = vld [vmem:[%s1 + $0x14] sm:$0xf]
  %v85 = vld [vmem:[%s1 + $0x18] sm:$0xf]
  %v86 = vld [vmem:[%s1 + $0x1c] sm:$0xf]
  %v87 = vld [vmem:[%s1 + $0x20] sm:$0xf]
  %v88 = vld [vmem:[%s1 + $0x24] sm:$0xf]
  %v89 = vld [vmem:[%s1 + $0x28] sm:$0xf]
  %v90 = vld [vmem:[%s1 + $0x2c] sm:$0xf]
  %v91 = vld [vmem:[%s1 + $0x30] sm:$0xf]
  %v92 = vld [vmem:[%s1 + $0x34] sm:$0xf]
  %v93 = vld [vmem:[%s1 + $0x38] sm:$0xf]
  %v94 = vld [vmem:[%s1 + $0x3c] sm:$0xf]
  %v159 = vunpack.c.l.b16 %v15
  %v160 = vunpack.c.l.b16 %v16
  %v161 = vunpack.c.l.b16 %v17
  %v162 = vunpack.c.l.b16 %v18
  %v163 = vunpack.c.l.b16 %v19
  %v164 = vunpack.c.l.b16 %v20
  %v165 = vunpack.c.l.b16 %v21
  %v166 = vunpack.c.l.b16 %v22
  %v167 = vunpack.c.l.b16 %v23
  %v168 = vunpack.c.l.b16 %v24
  %v169 = vunpack.c.l.b16 %v25
  %v170 = vunpack.c.l.b16 %v26
  %v171 = vunpack.c.l.b16 %v27
  %v172 = vunpack.c.l.b16 %v28
  %v173 = vunpack.c.l.b16 %v29
  %v174 = vunpack.c.l.b16 %v30
  %v175 = vunpack.c.l.b16 %v31
  %v176 = vunpack.c.l.b16 %v32
  %v177 = vunpack.c.l.b16 %v33
  %v178 = vunpack.c.l.b16 %v34
  %v179 = vunpack.c.l.b16 %v35
  %v180 = vunpack.c.l.b16 %v36
  %v181 = vunpack.c.l.b16 %v37
  %v182 = vunpack.c.l.b16 %v38
  %v183 = vunpack.c.l.b16 %v39
  %v184 = vunpack.c.l.b16 %v40
  %v185 = vunpack.c.l.b16 %v41
  %v186 = vunpack.c.l.b16 %v42
  %v187 = vunpack.c.l.b16 %v43
  %v188 = vunpack.c.l.b16 %v44
  %v189 = vunpack.c.l.b16 %v45
  %v190 = vunpack.c.l.b16 %v46
  %v191 = vunpack.c.l.b16 %v47
  %v192 = vunpack.c.l.b16 %v48
  %v193 = vunpack.c.l.b16 %v49
  %v194 = vunpack.c.l.b16 %v50
  %v195 = vunpack.c.l.b16 %v51
  %v196 = vunpack.c.l.b16 %v52
  %v197 = vunpack.c.l.b16 %v53
  %v198 = vunpack.c.l.b16 %v54
  %v199 = vunpack.c.l.b16 %v55
  %v200 = vunpack.c.l.b16 %v56
  %v201 = vunpack.c.l.b16 %v57
  %v202 = vunpack.c.l.b16 %v58
  %v203 = vunpack.c.l.b16 %v59
  %v204 = vunpack.c.l.b16 %v60
  %v205 = vunpack.c.l.b16 %v61
  %v206 = vunpack.c.l.b16 %v62
  %v207 = vunpack.c.l.b16 %v63
  %v208 = vunpack.c.l.b16 %v64
  %v209 = vunpack.c.l.b16 %v65
  %v210 = vunpack.c.l.b16 %v66
  %v211 = vunpack.c.l.b16 %v67
  %v212 = vunpack.c.l.b16 %v68
  %v213 = vunpack.c.l.b16 %v69
  %v214 = vunpack.c.l.b16 %v70
  %v215 = vunpack.c.l.b16 %v71
  %v216 = vunpack.c.l.b16 %v72
  %v217 = vunpack.c.l.b16 %v73
  %v218 = vunpack.c.l.b16 %v74
  %v219 = vunpack.c.l.b16 %v75
  %v220 = vunpack.c.l.b16 %v76
  %v221 = vunpack.c.l.b16 %v77
  %v222 = vunpack.c.l.b16 %v78
  %v223 = vpack.c.b16 %v160, %v159
  %v224 = vpack.c.b16 %v162, %v161
  %v225 = vpack.c.b16 %v164, %v163
  %v226 = vpack.c.b16 %v166, %v165
  %v227 = vpack.c.b16 %v168, %v167
  %v228 = vpack.c.b16 %v170, %v169
  %v229 = vpack.c.b16 %v172, %v171
  %v230 = vpack.c.b16 %v174, %v173
  %v231 = vpack.c.b16 %v176, %v175
  %v232 = vpack.c.b16 %v178, %v177
  %v233 = vpack.c.b16 %v180, %v179
  %v234 = vpack.c.b16 %v182, %v181
  %v235 = vpack.c.b16 %v184, %v183
  %v236 = vpack.c.b16 %v186, %v185
  %v237 = vpack.c.b16 %v188, %v187
  %v238 = vpack.c.b16 %v190, %v189
  %v239 = vpack.c.b16 %v192, %v191
  %v240 = vpack.c.b16 %v194, %v193
  %v241 = vpack.c.b16 %v196, %v195
  %v242 = vpack.c.b16 %v198, %v197
  %v243 = vpack.c.b16 %v200, %v199
  %v244 = vpack.c.b16 %v202, %v201
  %v245 = vpack.c.b16 %v204, %v203
  %v246 = vpack.c.b16 %v206, %v205
  %v247 = vpack.c.b16 %v208, %v207
  %v248 = vpack.c.b16 %v210, %v209
  %v249 = vpack.c.b16 %v212, %v211
  %v250 = vpack.c.b16 %v214, %v213
  %v251 = vpack.c.b16 %v216, %v215
  %v252 = vpack.c.b16 %v218, %v217
  %v253 = vpack.c.b16 %v220, %v219
  %v254 = vpack.c.b16 %v222, %v221
  %v303 = vunpack.c.l.b16 %v79
  %v304 = vunpack.c.l.b16 %v80
  %v305 = vunpack.c.l.b16 %v81
  %v306 = vunpack.c.l.b16 %v82
  %v307 = vunpack.c.l.b16 %v83
  %v308 = vunpack.c.l.b16 %v84
  %v309 = vunpack.c.l.b16 %v85
  %v310 = vunpack.c.l.b16 %v86
  %v311 = vunpack.c.l.b16 %v87
  %v312 = vunpack.c.l.b16 %v88
  %v313 = vunpack.c.l.b16 %v89
  %v314 = vunpack.c.l.b16 %v90
  %v315 = vunpack.c.l.b16 %v91
  %v316 = vunpack.c.l.b16 %v92
  %v317 = vunpack.c.l.b16 %v93
  %v318 = vunpack.c.l.b16 %v94
  %v319 = vpack.c.b16 %v304, %v303
  %v320 = vpack.c.b16 %v306, %v305
  %v321 = vpack.c.b16 %v308, %v307
  %v322 = vpack.c.b16 %v310, %v309
  %v323 = vpack.c.b16 %v312, %v311
  %v324 = vpack.c.b16 %v314, %v313
  %v325 = vpack.c.b16 %v316, %v315
  %v326 = vpack.c.b16 %v318, %v317
  %335 = vmatprep.subr.bf16.mxu0 0
  %336 = vmatpush1.bf16.msra.mxu0 %v319
  %337 = vmatprep.subr.bf16.mxu0 0
  %338 = vmatpush1.bf16.msra.mxu0 %v320
  %339 = vmatprep.subr.bf16.mxu0 0
  %340 = vmatpush1.bf16.msra.mxu0 %v321
  %341 = vmatprep.subr.bf16.mxu0 0
  %342 = vmatpush1.bf16.msra.mxu0 %v322
  %343 = vmatprep.subr.bf16.mxu0 0
  %344 = vmatpush1.bf16.msra.mxu0 %v323
  %345 = vmatprep.subr.bf16.mxu0 0
  %346 = vmatpush1.bf16.msra.mxu0 %v324
  %347 = vmatprep.subr.bf16.mxu0 0
  %348 = vmatpush1.bf16.msra.mxu0 %v325
  %349 = vmatprep.subr.bf16.mxu0 0
  %350 = vmatpush1.bf16.msra.mxu0 %v326
  %351 = vmatprep.subr.bf16.mxu0 0
  %352 = vmatpush1.bf16.msra.mxu0 0
  %353 = vmatprep.subr.bf16.mxu0 0
  %354 = vmatpush1.bf16.msra.mxu0 0
  %355 = vmatprep.subr.bf16.mxu0 0
  %356 = vmatpush1.bf16.msra.mxu0 0
  %357 = vmatprep.subr.bf16.mxu0 0
  %358 = vmatpush1.bf16.msra.mxu0 0
  %359 = vmatprep.subr.bf16.mxu0 0
  %360 = vmatpush1.bf16.msra.mxu0 0
  %361 = vmatprep.subr.bf16.mxu0 0
  %362 = vmatpush1.bf16.msra.mxu0 0
  %363 = vmatprep.subr.bf16.mxu0 0
  %364 = vmatpush1.bf16.msra.mxu0 0
  %365 = vmatprep.subr.bf16.mxu0 0
  %366 = vmatpush1.bf16.msra.mxu0 0
  %367 = vmatprep.mubr.bf16.mxu0 0
  %368 = vmatmul.mubr.bf16.gmra.mrb[0].mxu0 %v223
  %v369 = vpop.f32.mrb[0].mxu0
  %v370 = vadd.f32 0.0, %v369
  %v371 = vpop.f32.mrb[0].mxu0
  %v372 = vpop.f32.mrb[0].mxu0
  %v373 = vadd.f32 0.0, %v372
  %v374 = vpop.f32.mrb[0].mxu0
  %375 = vmatprep.mubr.bf16.mxu0 0
  %376 = vmatmul.mubr.bf16.gmra.mrb[0].mxu0 %v224
  %v377 = vpop.f32.mrb[0].mxu0
  %v378 = vadd.f32 0.0, %v377
  %v379 = vpop.f32.mrb[0].mxu0
  %v380 = vpop.f32.mrb[0].mxu0
  %v381 = vadd.f32 0.0, %v380
  %v382 = vpop.f32.mrb[0].mxu0
  %383 = vmatprep.mubr.bf16.mxu0 0
  %384 = vmatmul.mubr.bf16.gmra.mrb[0].mxu0 %v225
  %v385 = vpop.f32.mrb[0].mxu0
  %v386 = vadd.f32 0.0, %v385
  %v387 = vpop.f32.mrb[0].mxu0
  %v388 = vpop.f32.mrb[0].mxu0
  %v389 = vadd.f32 0.0, %v388
  %v390 = vpop.f32.mrb[0].mxu0
  %391 = vmatprep.mubr.bf16.mxu0 0
  %392 = vmatmul.mubr.bf16.gmra.mrb[0].mxu0 %v226
  %v393 = vpop.f32.mrb[0].mxu0
  %v394 = vadd.f32 0.0, %v393
  %v395 = vpop.f32.mrb[0].mxu0
  %v396 = vpop.f32.mrb[0].mxu0
  %v397 = vadd.f32 0.0, %v396
  %v398 = vpop.f32.mrb[0].mxu0
  %399 = vmatprep.mubr.bf16.mxu0 0
  %400 = vmatmul.mubr.bf16.gmra.mrb[0].mxu0 %v227
  %v401 = vpop.f32.mrb[0].mxu0
  %v402 = vadd.f32 0.0, %v401
  %v403 = vpop.f32.mrb[0].mxu0
  %v404 = vpop.f32.mrb[0].mxu0
  %v405 = vadd.f32 0.0, %v404
  %v406 = vpop.f32.mrb[0].mxu0
  %407 = vmatprep.mubr.bf16.mxu0 0
  %408 = vmatmul.mubr.bf16.gmra.mrb[0].mxu0 %v228
  %v409 = vpop.f32.mrb[0].mxu0
  %v410 = vadd.f32 0.0, %v409
  %v411 = vpop.f32.mrb[0].mxu0
  %v412 = vpop.f32.mrb[0].mxu0
  %v413 = vadd.f32 0.0, %v412
  %v414 = vpop.f32.mrb[0].mxu0
  %415 = vmatprep.mubr.bf16.mxu0 0
  %416 = vmatmul.mubr.bf16.gmra.mrb[0].mxu0 %v229
  %v417 = vpop.f32.mrb[0].mxu0
  %v418 = vadd.f32 0.0, %v417
  %v419 = vpop.f32.mrb[0].mxu0
  %v420 = vpop.f32.mrb[0].mxu0
  %v421 = vadd.f32 0.0, %v420
  %v422 = vpop.f32.mrb[0].mxu0
  %423 = vmatprep.mubr.bf16.mxu0 0
  %424 = vmatmul.mubr.bf16.gmra.mrb[0].mxu0 %v230
  %v425 = vpop.f32.mrb[0].mxu0
  %v426 = vadd.f32 0.0, %v425
  %v427 = vpop.f32.mrb[0].mxu0
  %v428 = vpop.f32.mrb[0].mxu0
  %v429 = vadd.f32 0.0, %v428
  %v430 = vpop.f32.mrb[0].mxu0
  %431 = vmatprep.mubr.bf16.mxu0 0
  %432 = vmatmul.mubr.bf16.gmra.mrb[0].mxu0 %v231
  %v433 = vpop.f32.mrb[0].mxu0
  %v434 = vadd.f32 0.0, %v433
  %v435 = vpop.f32.mrb[0].mxu0
  %v436 = vpop.f32.mrb[0].mxu0
  %v437 = vadd.f32 0.0, %v436
  %v438 = vpop.f32.mrb[0].mxu0
  %439 = vmatprep.mubr.bf16.mxu0 0
  %440 = vmatmul.mubr.bf16.gmra.mrb[0].mxu0 %v232
  %v441 = vpop.f32.mrb[0].mxu0
  %v442 = vadd.f32 0.0, %v441
  %v443 = vpop.f32.mrb[0].mxu0
  %v444 = vpop.f32.mrb[0].mxu0
  %v445 = vadd.f32 0.0, %v444
  %v446 = vpop.f32.mrb[0].mxu0
  %447 = vmatprep.mubr.bf16.mxu0 0
  %448 = vmatmul.mubr.bf16.gmra.mrb[0].mxu0 %v233
  %v449 = vpop.f32.mrb[0].mxu0
  %v450 = vadd.f32 0.0, %v449
  %v451 = vpop.f32.mrb[0].mxu0
  %v452 = vpop.f32.mrb[0].mxu0
  %v453 = vadd.f32 0.0, %v452
  %v454 = vpop.f32.mrb[0].mxu0
  %455 = vmatprep.mubr.bf16.mxu0 0
  %456 = vmatmul.mubr.bf16.gmra.mrb[0].mxu0 %v234
  %v457 = vpop.f32.mrb[0].mxu0
  %v458 = vadd.f32 0.0, %v457
  %v459 = vpop.f32.mrb[0].mxu0
  %v460 = vpop.f32.mrb[0].mxu0
  %v461 = vadd.f32 0.0, %v460
  %v462 = vpop.f32.mrb[0].mxu0
  %463 = vmatprep.mubr.bf16.mxu0 0
  %464 = vmatmul.mubr.bf16.gmra.mrb[0].mxu0 %v235
  %v465 = vpop.f32.mrb[0].mxu0
  %v466 = vadd.f32 0.0, %v465
  %v467 = vpop.f32.mrb[0].mxu0
  %v468 = vpop.f32.mrb[0].mxu0
  %v469 = vadd.f32 0.0, %v468
  %v470 = vpop.f32.mrb[0].mxu0
  %471 = vmatprep.mubr.bf16.mxu0 0
  %472 = vmatmul.mubr.bf16.gmra.mrb[0].mxu0 %v236
  %v473 = vpop.f32.mrb[0].mxu0
  %v474 = vadd.f32 0.0, %v473
  %v475 = vpop.f32.mrb[0].mxu0
  %v476 = vpop.f32.mrb[0].mxu0
  %v477 = vadd.f32 0.0, %v476
  %v478 = vpop.f32.mrb[0].mxu0
  %479 = vmatprep.mubr.bf16.mxu0 0
  %480 = vmatmul.mubr.bf16.gmra.mrb[0].mxu0 %v237
  %v481 = vpop.f32.mrb[0].mxu0
  %v482 = vadd.f32 0.0, %v481
  %v483 = vpop.f32.mrb[0].mxu0
  %v484 = vpop.f32.mrb[0].mxu0
  %v485 = vadd.f32 0.0, %v484
  %v486 = vpop.f32.mrb[0].mxu0
  %487 = vmatprep.mubr.bf16.mxu0 0
  %488 = vmatmul.mubr.bf16.gmra.mrb[0].mxu0 %v238
  %v489 = vpop.f32.mrb[0].mxu0
  %v490 = vadd.f32 0.0, %v489
  %v491 = vpop.f32.mrb[0].mxu0
  %v492 = vpop.f32.mrb[0].mxu0
  %v493 = vadd.f32 0.0, %v492
  %v494 = vpop.f32.mrb[0].mxu0
  %495 = vmatprep.mubr.bf16.mxu0 0
  %496 = vmatmul.mubr.bf16.gmra.mrb[0].mxu0 %v239
  %v497 = vpop.f32.mrb[0].mxu0
  %v498 = vadd.f32 0.0, %v497
  %v499 = vpop.f32.mrb[0].mxu0
  %v500 = vpop.f32.mrb[0].mxu0
  %v501 = vadd.f32 0.0, %v500
  %v502 = vpop.f32.mrb[0].mxu0
  %503 = vmatprep.mubr.bf16.mxu0 0
  %504 = vmatmul.mubr.bf16.gmra.mrb[0].mxu0 %v240
  %v505 = vpop.f32.mrb[0].mxu0
  %v506 = vadd.f32 0.0, %v505
  %v507 = vpop.f32.mrb[0].mxu0
  %v508 = vpop.f32.mrb[0].mxu0
  %v509 = vadd.f32 0.0, %v508
  %v510 = vpop.f32.mrb[0].mxu0
  %511 = vmatprep.mubr.bf16.mxu0 0
  %512 = vmatmul.mubr.bf16.gmra.mrb[0].mxu0 %v241
  %v513 = vpop.f32.mrb[0].mxu0
  %v514 = vadd.f32 0.0, %v513
  %v515 = vpop.f32.mrb[0].mxu0
  %v516 = vpop.f32.mrb[0].mxu0
  %v517 = vadd.f32 0.0, %v516
  %v518 = vpop.f32.mrb[0].mxu0
  %519 = vmatprep.mubr.bf16.mxu0 0
  %520 = vmatmul.mubr.bf16.gmra.mrb[0].mxu0 %v242
  %v521 = vpop.f32.mrb[0].mxu0
  %v522 = vadd.f32 0.0, %v521
  %v523 = vpop.f32.mrb[0].mxu0
  %v524 = vpop.f32.mrb[0].mxu0
  %v525 = vadd.f32 0.0, %v524
  %v526 = vpop.f32.mrb[0].mxu0
  %527 = vmatprep.mubr.bf16.mxu0 0
  %528 = vmatmul.mubr.bf16.gmra.mrb[0].mxu0 %v243
  %v529 = vpop.f32.mrb[0].mxu0
  %v530 = vadd.f32 0.0, %v529
  %v531 = vpop.f32.mrb[0].mxu0
  %v532 = vpop.f32.mrb[0].mxu0
  %v533 = vadd.f32 0.0, %v532
  %v534 = vpop.f32.mrb[0].mxu0
  %535 = vmatprep.mubr.bf16.mxu0 0
  %536 = vmatmul.mubr.bf16.gmra.mrb[0].mxu0 %v244
  %v537 = vpop.f32.mrb[0].mxu0
  %v538 = vadd.f32 0.0, %v537
  %v539 = vpop.f32.mrb[0].mxu0
  %v540 = vpop.f32.mrb[0].mxu0
  %v541 = vadd.f32 0.0, %v540
  %v542 = vpop.f32.mrb[0].mxu0
  %543 = vmatprep.mubr.bf16.mxu0 0
  %544 = vmatmul.mubr.bf16.gmra.mrb[0].mxu0 %v245
  %v545 = vpop.f32.mrb[0].mxu0
  %v546 = vadd.f32 0.0, %v545
  %v547 = vpop.f32.mrb[0].mxu0
  %v548 = vpop.f32.mrb[0].mxu0
  %v549 = vadd.f32 0.0, %v548
  %v550 = vpop.f32.mrb[0].mxu0
  %551 = vmatprep.mubr.bf16.mxu0 0
  %552 = vmatmul.mubr.bf16.gmra.mrb[0].mxu0 %v246
  %v553 = vpop.f32.mrb[0].mxu0
  %v554 = vadd.f32 0.0, %v553
  %v555 = vpop.f32.mrb[0].mxu0
  %v556 = vpop.f32.mrb[0].mxu0
  %v557 = vadd.f32 0.0, %v556
  %v558 = vpop.f32.mrb[0].mxu0
  %559 = vmatprep.mubr.bf16.mxu0 0
  %560 = vmatmul.mubr.bf16.gmra.mrb[0].mxu0 %v247
  %v561 = vpop.f32.mrb[0].mxu0
  %v562 = vadd.f32 0.0, %v561
  %v563 = vpop.f32.mrb[0].mxu0
  %v564 = vpop.f32.mrb[0].mxu0
  %v565 = vadd.f32 0.0, %v564
  %v566 = vpop.f32.mrb[0].mxu0
  %567 = vmatprep.mubr.bf16.mxu0 0
  %568 = vmatmul.mubr.bf16.gmra.mrb[0].mxu0 %v248
  %v569 = vpop.f32.mrb[0].mxu0
  %v570 = vadd.f32 0.0, %v569
  %v571 = vpop.f32.mrb[0].mxu0
  %v572 = vpop.f32.mrb[0].mxu0
  %v573 = vadd.f32 0.0, %v572
  %v574 = vpop.f32.mrb[0].mxu0
  %575 = vmatprep.mubr.bf16.mxu0 0
  %576 = vmatmul.mubr.bf16.gmra.mrb[0].mxu0 %v249
  %v577 = vpop.f32.mrb[0].mxu0
  %v578 = vadd.f32 0.0, %v577
  %v579 = vpop.f32.mrb[0].mxu0
  %v580 = vpop.f32.mrb[0].mxu0
  %v581 = vadd.f32 0.0, %v580
  %v582 = vpop.f32.mrb[0].mxu0
  %583 = vmatprep.mubr.bf16.mxu0 0
  %584 = vmatmul.mubr.bf16.gmra.mrb[0].mxu0 %v250
  %v585 = vpop.f32.mrb[0].mxu0
  %v586 = vadd.f32 0.0, %v585
  %v587 = vpop.f32.mrb[0].mxu0
  %v588 = vpop.f32.mrb[0].mxu0
  %v589 = vadd.f32 0.0, %v588
  %v590 = vpop.f32.mrb[0].mxu0
  %591 = vmatprep.mubr.bf16.mxu0 0
  %592 = vmatmul.mubr.bf16.gmra.mrb[0].mxu0 %v251
  %v593 = vpop.f32.mrb[0].mxu0
  %v594 = vadd.f32 0.0, %v593
  %v595 = vpop.f32.mrb[0].mxu0
  %v596 = vpop.f32.mrb[0].mxu0
  %v597 = vadd.f32 0.0, %v596
  %v598 = vpop.f32.mrb[0].mxu0
  %599 = vmatprep.mubr.bf16.mxu0 0
  %600 = vmatmul.mubr.bf16.gmra.mrb[0].mxu0 %v252
  %v601 = vpop.f32.mrb[0].mxu0
  %v602 = vadd.f32 0.0, %v601
  %v603 = vpop.f32.mrb[0].mxu0
  %v604 = vpop.f32.mrb[0].mxu0
  %v605 = vadd.f32 0.0, %v604
  %v606 = vpop.f32.mrb[0].mxu0
  %607 = vmatprep.mubr.bf16.mxu0 0
  %608 = vmatmul.mubr.bf16.gmra.mrb[0].mxu0 %v253
  %v609 = vpop.f32.mrb[0].mxu0
  %v610 = vadd.f32 0.0, %v609
  %v611 = vpop.f32.mrb[0].mxu0
  %v612 = vpop.f32.mrb[0].mxu0
  %v613 = vadd.f32 0.0, %v612
  %v614 = vpop.f32.mrb[0].mxu0
  %615 = vmatprep.mubr.bf16.mxu0 0
  %616 = vmatmul.mubr.bf16.gmra.mrb[0].mxu0 %v254
  %v617 = vpop.f32.mrb[0].mxu0
  %v618 = vadd.f32 0.0, %v617
  %v619 = vpop.f32.mrb[0].mxu0
  %v620 = vpop.f32.mrb[0].mxu0
  %v621 = vadd.f32 0.0, %v620
  %v622 = vpop.f32.mrb[0].mxu0
  %623 = vdwg.mxu0
  %v624 = vpack.c.bf16 %v373, %v370
  %v625 = vpack.c.bf16 %v381, %v378
  %v626 = vpack.c.bf16 %v389, %v386
  %v627 = vpack.c.bf16 %v397, %v394
  %v628 = vpack.c.bf16 %v405, %v402
  %v629 = vpack.c.bf16 %v413, %v410
  %v630 = vpack.c.bf16 %v421, %v418
  %v631 = vpack.c.bf16 %v429, %v426
  %v632 = vpack.c.bf16 %v437, %v434
  %v633 = vpack.c.bf16 %v445, %v442
  %v634 = vpack.c.bf16 %v453, %v450
  %v635 = vpack.c.bf16 %v461, %v458
  %v636 = vpack.c.bf16 %v469, %v466
  %v637 = vpack.c.bf16 %v477, %v474
  %v638 = vpack.c.bf16 %v485, %v482
  %v639 = vpack.c.bf16 %v493, %v490
  %v640 = vpack.c.bf16 %v501, %v498
  %v641 = vpack.c.bf16 %v509, %v506
  %v642 = vpack.c.bf16 %v517, %v514
  %v643 = vpack.c.bf16 %v525, %v522
  %v644 = vpack.c.bf16 %v533, %v530
  %v645 = vpack.c.bf16 %v541, %v538
  %v646 = vpack.c.bf16 %v549, %v546
  %v647 = vpack.c.bf16 %v557, %v554
  %v648 = vpack.c.bf16 %v565, %v562
  %v649 = vpack.c.bf16 %v573, %v570
  %v650 = vpack.c.bf16 %v581, %v578
  %v651 = vpack.c.bf16 %v589, %v586
  %v652 = vpack.c.bf16 %v597, %v594
  %v653 = vpack.c.bf16 %v605, %v602
  %v654 = vpack.c.bf16 %v613, %v610
  %v655 = vpack.c.bf16 %v621, %v618
  %v688 = vunpack.c.l.b16 %v624
  %v689 = vunpack.c.h.b16 %v624
  %v690 = vunpack.c.l.b16 %v625
  %v691 = vunpack.c.h.b16 %v625
  %v692 = vunpack.c.l.b16 %v626
  %v693 = vunpack.c.h.b16 %v626
  %v694 = vunpack.c.l.b16 %v627
  %v695 = vunpack.c.h.b16 %v627
  %v696 = vunpack.c.l.b16 %v628
  %v697 = vunpack.c.h.b16 %v628
  %v698 = vunpack.c.l.b16 %v629
  %v699 = vunpack.c.h.b16 %v629
  %v700 = vunpack.c.l.b16 %v630
  %v701 = vunpack.c.h.b16 %v630
  %v702 = vunpack.c.l.b16 %v631
  %v703 = vunpack.c.h.b16 %v631
  %v704 = vunpack.c.l.b16 %v632
  %v705 = vunpack.c.h.b16 %v632
  %v706 = vunpack.c.l.b16 %v633
  %v707 = vunpack.c.h.b16 %v633
  %v708 = vunpack.c.l.b16 %v634
  %v709 = vunpack.c.h.b16 %v634
  %v710 = vunpack.c.l.b16 %v635
  %v711 = vunpack.c.h.b16 %v635
  %v712 = vunpack.c.l.b16 %v636
  %v713 = vunpack.c.h.b16 %v636
  %v714 = vunpack.c.l.b16 %v637
  %v715 = vunpack.c.h.b16 %v637
  %v716 = vunpack.c.l.b16 %v638
  %v717 = vunpack.c.h.b16 %v638
  %v718 = vunpack.c.l.b16 %v639
  %v719 = vunpack.c.h.b16 %v639
  %v720 = vunpack.c.l.b16 %v640
  %v721 = vunpack.c.h.b16 %v640
  %v722 = vunpack.c.l.b16 %v641
  %v723 = vunpack.c.h.b16 %v641
  %v724 = vunpack.c.l.b16 %v642
  %v725 = vunpack.c.h.b16 %v642
  %v726 = vunpack.c.l.b16 %v643
  %v727 = vunpack.c.h.b16 %v643
  %v728 = vunpack.c.l.b16 %v644
  %v729 = vunpack.c.h.b16 %v644
  %v730 = vunpack.c.l.b16 %v645
  %v731 = vunpack.c.h.b16 %v645
  %v732 = vunpack.c.l.b16 %v646
  %v733 = vunpack.c.h.b16 %v646
  %v734 = vunpack.c.l.b16 %v647
  %v735 = vunpack.c.h.b16 %v647
  %v736 = vunpack.c.l.b16 %v648
  %v737 = vunpack.c.h.b16 %v648
  %v738 = vunpack.c.l.b16 %v649
  %v739 = vunpack.c.h.b16 %v649
  %v740 = vunpack.c.l.b16 %v650
  %v741 = vunpack.c.h.b16 %v650
  %v742 = vunpack.c.l.b16 %v651
  %v743 = vunpack.c.h.b16 %v651
  %v744 = vunpack.c.l.b16 %v652
  %v745 = vunpack.c.h.b16 %v652
  %v746 = vunpack.c.l.b16 %v653
  %v747 = vunpack.c.h.b16 %v653
  %v748 = vunpack.c.l.b16 %v654
  %v749 = vunpack.c.h.b16 %v654
  %v750 = vunpack.c.l.b16 %v655
  %v751 = vunpack.c.h.b16 %v655
  %v752 = vpack.c.b16 %v688, %v688
  %v753 = vpack.c.b16 %v689, %v689
  %v754 = vpack.c.b16 %v690, %v690
  %v755 = vpack.c.b16 %v691, %v691
  %v756 = vpack.c.b16 %v692, %v692
  %v757 = vpack.c.b16 %v693, %v693
  %v758 = vpack.c.b16 %v694, %v694
  %v759 = vpack.c.b16 %v695, %v695
  %v760 = vpack.c.b16 %v696, %v696
  %v761 = vpack.c.b16 %v697, %v697
  %v762 = vpack.c.b16 %v698, %v698
  %v763 = vpack.c.b16 %v699, %v699
  %v764 = vpack.c.b16 %v700, %v700
  %v765 = vpack.c.b16 %v701, %v701
  %v766 = vpack.c.b16 %v702, %v702
  %v767 = vpack.c.b16 %v703, %v703
  %v768 = vpack.c.b16 %v704, %v704
  %v769 = vpack.c.b16 %v705, %v705
  %v770 = vpack.c.b16 %v706, %v706
  %v771 = vpack.c.b16 %v707, %v707
  %v772 = vpack.c.b16 %v708, %v708
  %v773 = vpack.c.b16 %v709, %v709
  %v774 = vpack.c.b16 %v710, %v710
  %v775 = vpack.c.b16 %v711, %v711
  %v776 = vpack.c.b16 %v712, %v712
  %v777 = vpack.c.b16 %v713, %v713
  %v778 = vpack.c.b16 %v714, %v714
  %v779 = vpack.c.b16 %v715, %v715
  %v780 = vpack.c.b16 %v716, %v716
  %v781 = vpack.c.b16 %v717, %v717
  %v782 = vpack.c.b16 %v718, %v718
  %v783 = vpack.c.b16 %v719, %v719
  %v784 = vpack.c.b16 %v720, %v720
  %v785 = vpack.c.b16 %v721, %v721
  %v786 = vpack.c.b16 %v722, %v722
  %v787 = vpack.c.b16 %v723, %v723
  %v788 = vpack.c.b16 %v724, %v724
  %v789 = vpack.c.b16 %v725, %v725
  %v790 = vpack.c.b16 %v726, %v726
  %v791 = vpack.c.b16 %v727, %v727
  %v792 = vpack.c.b16 %v728, %v728
  %v793 = vpack.c.b16 %v729, %v729
  %v794 = vpack.c.b16 %v730, %v730
  %v795 = vpack.c.b16 %v731, %v731
  %v796 = vpack.c.b16 %v732, %v732
  %v797 = vpack.c.b16 %v733, %v733
  %v798 = vpack.c.b16 %v734, %v734
  %v799 = vpack.c.b16 %v735, %v735
  %v800 = vpack.c.b16 %v736, %v736
  %v801 = vpack.c.b16 %v737, %v737
  %v802 = vpack.c.b16 %v738, %v738
  %v803 = vpack.c.b16 %v739, %v739
  %v804 = vpack.c.b16 %v740, %v740
  %v805 = vpack.c.b16 %v741, %v741
  %v806 = vpack.c.b16 %v742, %v742
  %v807 = vpack.c.b16 %v743, %v743
  %v808 = vpack.c.b16 %v744, %v744
  %v809 = vpack.c.b16 %v745, %v745
  %v810 = vpack.c.b16 %v746, %v746
  %v811 = vpack.c.b16 %v747, %v747
  %v812 = vpack.c.b16 %v748, %v748
  %v813 = vpack.c.b16 %v749, %v749
  %v814 = vpack.c.b16 %v750, %v750
  %v815 = vpack.c.b16 %v751, %v751
  %880 = vst [vmem:[%s2] sm:$0xf] %v752
  %881 = vst [vmem:[%s2 + $0x4] sm:$0xf] %v753
  %882 = vst [vmem:[%s2 + $0x8] sm:$0xf] %v754
  %883 = vst [vmem:[%s2 + $0xc] sm:$0xf] %v755
  %884 = vst [vmem:[%s2 + $0x10] sm:$0xf] %v756
  %885 = vst [vmem:[%s2 + $0x14] sm:$0xf] %v757
  %886 = vst [vmem:[%s2 + $0x18] sm:$0xf] %v758
  %887 = vst [vmem:[%s2 + $0x1c] sm:$0xf] %v759
  %888 = vst [vmem:[%s2 + $0x20] sm:$0xf] %v760
  %889 = vst [vmem:[%s2 + $0x24] sm:$0xf] %v761
  %890 = vst [vmem:[%s2 + $0x28] sm:$0xf] %v762
  %891 = vst [vmem:[%s2 + $0x2c] sm:$0xf] %v763
  %892 = vst [vmem:[%s2 + $0x30] sm:$0xf] %v764
  %893 = vst [vmem:[%s2 + $0x34] sm:$0xf] %v765
  %894 = vst [vmem:[%s2 + $0x38] sm:$0xf] %v766
  %895 = vst [vmem:[%s2 + $0x3c] sm:$0xf] %v767
  %896 = vst [vmem:[%s2 + $0x40] sm:$0xf] %v768
  %897 = vst [vmem:[%s2 + $0x44] sm:$0xf] %v769
  %898 = vst [vmem:[%s2 + $0x48] sm:$0xf] %v770
  %899 = vst [vmem:[%s2 + $0x4c] sm:$0xf] %v771
  %900 = vst [vmem:[%s2 + $0x50] sm:$0xf] %v772
  %901 = vst [vmem:[%s2 + $0x54] sm:$0xf] %v773
  %902 = vst [vmem:[%s2 + $0x58] sm:$0xf] %v774
  %903 = vst [vmem:[%s2 + $0x5c] sm:$0xf] %v775
  %904 = vst [vmem:[%s2 + $0x60] sm:$0xf] %v776
  %905 = vst [vmem:[%s2 + $0x64] sm:$0xf] %v777
  %906 = vst [vmem:[%s2 + $0x68] sm:$0xf] %v778
  %907 = vst [vmem:[%s2 + $0x6c] sm:$0xf] %v779
  %908 = vst [vmem:[%s2 + $0x70] sm:$0xf] %v780
  %909 = vst [vmem:[%s2 + $0x74] sm:$0xf] %v781
  %910 = vst [vmem:[%s2 + $0x78] sm:$0xf] %v782
  %911 = vst [vmem:[%s2 + $0x7c] sm:$0xf] %v783
  %912 = vst [vmem:[%s2 + $0x80] sm:$0xf] %v784
  %913 = vst [vmem:[%s2 + $0x84] sm:$0xf] %v785
  %914 = vst [vmem:[%s2 + $0x88] sm:$0xf] %v786
  %915 = vst [vmem:[%s2 + $0x8c] sm:$0xf] %v787
  %916 = vst [vmem:[%s2 + $0x90] sm:$0xf] %v788
  %917 = vst [vmem:[%s2 + $0x94] sm:$0xf] %v789
  %918 = vst [vmem:[%s2 + $0x98] sm:$0xf] %v790
  %919 = vst [vmem:[%s2 + $0x9c] sm:$0xf] %v791
  %920 = vst [vmem:[%s2 + $0xa0] sm:$0xf] %v792
  %921 = vst [vmem:[%s2 + $0xa4] sm:$0xf] %v793
  %922 = vst [vmem:[%s2 + $0xa8] sm:$0xf] %v794
  %923 = vst [vmem:[%s2 + $0xac] sm:$0xf] %v795
  %924 = vst [vmem:[%s2 + $0xb0] sm:$0xf] %v796
  %925 = vst [vmem:[%s2 + $0xb4] sm:$0xf] %v797
  %926 = vst [vmem:[%s2 + $0xb8] sm:$0xf] %v798
  %927 = vst [vmem:[%s2 + $0xbc] sm:$0xf] %v799
  %928 = vst [vmem:[%s2 + $0xc0] sm:$0xf] %v800
  %929 = vst [vmem:[%s2 + $0xc4] sm:$0xf] %v801
  %930 = vst [vmem:[%s2 + $0xc8] sm:$0xf] %v802
  %931 = vst [vmem:[%s2 + $0xcc] sm:$0xf] %v803
  %932 = vst [vmem:[%s2 + $0xd0] sm:$0xf] %v804
  %933 = vst [vmem:[%s2 + $0xd4] sm:$0xf] %v805
  %934 = vst [vmem:[%s2 + $0xd8] sm:$0xf] %v806
  %935 = vst [vmem:[%s2 + $0xdc] sm:$0xf] %v807
  %936 = vst [vmem:[%s2 + $0xe0] sm:$0xf] %v808
  %937 = vst [vmem:[%s2 + $0xe4] sm:$0xf] %v809
  %938 = vst [vmem:[%s2 + $0xe8] sm:$0xf] %v810
  %939 = vst [vmem:[%s2 + $0xec] sm:$0xf] %v811
  %940 = vst [vmem:[%s2 + $0xf0] sm:$0xf] %v812
  %941 = vst [vmem:[%s2 + $0xf4] sm:$0xf] %v813
  %942 = vst [vmem:[%s2 + $0xf8] sm:$0xf] %v814
  %943 = vst [vmem:[%s2 + $0xfc] sm:$0xf] %v815
  %v944 = vadd.f32 %v370, %v373
  %v945 = vadd.f32 %v944, %v378
  %v946 = vadd.f32 %v945, %v381
  %v947 = vadd.f32 %v946, %v386
  %v948 = vadd.f32 %v947, %v389
  %v949 = vadd.f32 %v948, %v394
  %v950 = vadd.f32 %v949, %v397
  %v951 = vadd.f32 %v950, %v402
  %v952 = vadd.f32 %v951, %v405
  %v953 = vadd.f32 %v952, %v410
  %v954 = vadd.f32 %v953, %v413
  %v955 = vadd.f32 %v954, %v418
  %v956 = vadd.f32 %v955, %v421
  %v957 = vadd.f32 %v956, %v426
  %v958 = vadd.f32 %v957, %v429
  %v959 = vadd.f32 %v958, %v434
  %v960 = vadd.f32 %v959, %v437
  %v961 = vadd.f32 %v960, %v442
  %v962 = vadd.f32 %v961, %v445
  %v963 = vadd.f32 %v962, %v450
  %v964 = vadd.f32 %v963, %v453
  %v965 = vadd.f32 %v964, %v458
  %v966 = vadd.f32 %v965, %v461
  %v967 = vadd.f32 %v966, %v466
  %v968 = vadd.f32 %v967, %v469
  %v969 = vadd.f32 %v968, %v474
  %v970 = vadd.f32 %v969, %v477
  %v971 = vadd.f32 %v970, %v482
  %v972 = vadd.f32 %v971, %v485
  %v973 = vadd.f32 %v972, %v490
  %v974 = vadd.f32 %v973, %v493
  %v975 = vadd.f32 %v974, %v498
  %v976 = vadd.f32 %v975, %v501
  %v977 = vadd.f32 %v976, %v506
  %v978 = vadd.f32 %v977, %v509
  %v979 = vadd.f32 %v978, %v514
  %v980 = vadd.f32 %v979, %v517
  %v981 = vadd.f32 %v980, %v522
  %v982 = vadd.f32 %v981, %v525
  %v983 = vadd.f32 %v982, %v530
  %v984 = vadd.f32 %v983, %v533
  %v985 = vadd.f32 %v984, %v538
  %v986 = vadd.f32 %v985, %v541
  %v987 = vadd.f32 %v986, %v546
  %v988 = vadd.f32 %v987, %v549
  %v989 = vadd.f32 %v988, %v554
  %v990 = vadd.f32 %v989, %v557
  %v991 = vadd.f32 %v990, %v562
  %v992 = vadd.f32 %v991, %v565
  %v993 = vadd.f32 %v992, %v570
  %v994 = vadd.f32 %v993, %v573
  %v995 = vadd.f32 %v994, %v578
  %v996 = vadd.f32 %v995, %v581
  %v997 = vadd.f32 %v996, %v586
  %v998 = vadd.f32 %v997, %v589
  %v999 = vadd.f32 %v998, %v594
  %v1000 = vadd.f32 %v999, %v597
  %v1001 = vadd.f32 %v1000, %v602
  %v1002 = vadd.f32 %v1001, %v605
  %v1003 = vadd.f32 %v1002, %v610
  %v1004 = vadd.f32 %v1003, %v613
  %v1005 = vadd.f32 %v1004, %v618
  %v1006 = vadd.f32 %v1005, %v621
  %v1007 = vrot.slane %v1006, 4
  %v1008 = vadd.f32 %v1006, %v1007
  %v1009 = vrot.slane %v1008, 2
  %v1010 = vadd.f32 %v1008, %v1009
  %v1011 = vrot.slane %v1010, 1
  %v1012 = vadd.f32 %v1010, %v1011
  %1013 = vst [vmem:[%s3] sm:$0x1] %v1012
  %v1014 = vmul.f32 %v370, %v370
  %v1015 = vmul.f32 %v373, %v373
  %v1016 = vmul.f32 %v378, %v378
  %v1017 = vmul.f32 %v381, %v381
  %v1018 = vmul.f32 %v386, %v386
  %v1019 = vmul.f32 %v389, %v389
  %v1020 = vmul.f32 %v394, %v394
  %v1021 = vmul.f32 %v397, %v397
  %v1022 = vmul.f32 %v402, %v402
  %v1023 = vmul.f32 %v405, %v405
  %v1024 = vmul.f32 %v410, %v410
  %v1025 = vmul.f32 %v413, %v413
  %v1026 = vmul.f32 %v418, %v418
  %v1027 = vmul.f32 %v421, %v421
  %v1028 = vmul.f32 %v426, %v426
  %v1029 = vmul.f32 %v429, %v429
  %v1030 = vmul.f32 %v434, %v434
  %v1031 = vmul.f32 %v437, %v437
  %v1032 = vmul.f32 %v442, %v442
  %v1033 = vmul.f32 %v445, %v445
  %v1034 = vmul.f32 %v450, %v450
  %v1035 = vmul.f32 %v453, %v453
  %v1036 = vmul.f32 %v458, %v458
  %v1037 = vmul.f32 %v461, %v461
  %v1038 = vmul.f32 %v466, %v466
  %v1039 = vmul.f32 %v469, %v469
  %v1040 = vmul.f32 %v474, %v474
  %v1041 = vmul.f32 %v477, %v477
  %v1042 = vmul.f32 %v482, %v482
  %v1043 = vmul.f32 %v485, %v485
  %v1044 = vmul.f32 %v490, %v490
  %v1045 = vmul.f32 %v493, %v493
  %v1046 = vmul.f32 %v498, %v498
  %v1047 = vmul.f32 %v501, %v501
  %v1048 = vmul.f32 %v506, %v506
  %v1049 = vmul.f32 %v509, %v509
  %v1050 = vmul.f32 %v514, %v514
  %v1051 = vmul.f32 %v517, %v517
  %v1052 = vmul.f32 %v522, %v522
  %v1053 = vmul.f32 %v525, %v525
  %v1054 = vmul.f32 %v530, %v530
  %v1055 = vmul.f32 %v533, %v533
  %v1056 = vmul.f32 %v538, %v538
  %v1057 = vmul.f32 %v541, %v541
  %v1058 = vmul.f32 %v546, %v546
  %v1059 = vmul.f32 %v549, %v549
  %v1060 = vmul.f32 %v554, %v554
  %v1061 = vmul.f32 %v557, %v557
  %v1062 = vmul.f32 %v562, %v562
  %v1063 = vmul.f32 %v565, %v565
  %v1064 = vmul.f32 %v570, %v570
  %v1065 = vmul.f32 %v573, %v573
  %v1066 = vmul.f32 %v578, %v578
  %v1067 = vmul.f32 %v581, %v581
  %v1068 = vmul.f32 %v586, %v586
  %v1069 = vmul.f32 %v589, %v589
  %v1070 = vmul.f32 %v594, %v594
  %v1071 = vmul.f32 %v597, %v597
  %v1072 = vmul.f32 %v602, %v602
  %v1073 = vmul.f32 %v605, %v605
  %v1074 = vmul.f32 %v610, %v610
  %v1075 = vmul.f32 %v613, %v613
  %v1076 = vmul.f32 %v618, %v618
  %v1077 = vmul.f32 %v621, %v621
  %v1078 = vadd.f32 %v1014, %v1015
  %v1079 = vadd.f32 %v1078, %v1016
  %v1080 = vadd.f32 %v1079, %v1017
  %v1081 = vadd.f32 %v1080, %v1018
  %v1082 = vadd.f32 %v1081, %v1019
  %v1083 = vadd.f32 %v1082, %v1020
  %v1084 = vadd.f32 %v1083, %v1021
  %v1085 = vadd.f32 %v1084, %v1022
  %v1086 = vadd.f32 %v1085, %v1023
  %v1087 = vadd.f32 %v1086, %v1024
  %v1088 = vadd.f32 %v1087, %v1025
  %v1089 = vadd.f32 %v1088, %v1026
  %v1090 = vadd.f32 %v1089, %v1027
  %v1091 = vadd.f32 %v1090, %v1028
  %v1092 = vadd.f32 %v1091, %v1029
  %v1093 = vadd.f32 %v1092, %v1030
  %v1094 = vadd.f32 %v1093, %v1031
  %v1095 = vadd.f32 %v1094, %v1032
  %v1096 = vadd.f32 %v1095, %v1033
  %v1097 = vadd.f32 %v1096, %v1034
  %v1098 = vadd.f32 %v1097, %v1035
  %v1099 = vadd.f32 %v1098, %v1036
  %v1100 = vadd.f32 %v1099, %v1037
  %v1101 = vadd.f32 %v1100, %v1038
  %v1102 = vadd.f32 %v1101, %v1039
  %v1103 = vadd.f32 %v1102, %v1040
  %v1104 = vadd.f32 %v1103, %v1041
  %v1105 = vadd.f32 %v1104, %v1042
  %v1106 = vadd.f32 %v1105, %v1043
  %v1107 = vadd.f32 %v1106, %v1044
  %v1108 = vadd.f32 %v1107, %v1045
  %v1109 = vadd.f32 %v1108, %v1046
  %v1110 = vadd.f32 %v1109, %v1047
  %v1111 = vadd.f32 %v1110, %v1048
  %v1112 = vadd.f32 %v1111, %v1049
  %v1113 = vadd.f32 %v1112, %v1050
  %v1114 = vadd.f32 %v1113, %v1051
  %v1115 = vadd.f32 %v1114, %v1052
  %v1116 = vadd.f32 %v1115, %v1053
  %v1117 = vadd.f32 %v1116, %v1054
  %v1118 = vadd.f32 %v1117, %v1055
  %v1119 = vadd.f32 %v1118, %v1056
  %v1120 = vadd.f32 %v1119, %v1057
  %v1121 = vadd.f32 %v1120, %v1058
  %v1122 = vadd.f32 %v1121, %v1059
  %v1123 = vadd.f32 %v1122, %v1060
  %v1124 = vadd.f32 %v1123, %v1061
  %v1125 = vadd.f32 %v1124, %v1062
  %v1126 = vadd.f32 %v1125, %v1063
  %v1127 = vadd.f32 %v1126, %v1064
  %v1128 = vadd.f32 %v1127, %v1065
  %v1129 = vadd.f32 %v1128, %v1066
  %v1130 = vadd.f32 %v1129, %v1067
  %v1131 = vadd.f32 %v1130, %v1068
  %v1132 = vadd.f32 %v1131, %v1069
  %v1133 = vadd.f32 %v1132, %v1070
  %v1134 = vadd.f32 %v1133, %v1071
  %v1135 = vadd.f32 %v1134, %v1072
  %v1136 = vadd.f32 %v1135, %v1073
  %v1137 = vadd.f32 %v1136, %v1074
  %v1138 = vadd.f32 %v1137, %v1075
  %v1139 = vadd.f32 %v1138, %v1076
  %v1140 = vadd.f32 %v1139, %v1077
  %v1141 = vrot.slane %v1140, 4
  %v1142 = vadd.f32 %v1140, %v1141
  %v1143 = vrot.slane %v1142, 2
  %v1144 = vadd.f32 %v1142, %v1143
  %v1145 = vrot.slane %v1144, 1
  %v1146 = vadd.f32 %v1144, %v1145
  %1147 = vst [vmem:[%s4] sm:$0x1] %v1146
  // Predicated region
  $region10: #{dcgan_discriminator.6} parent=0 // pred_check
    _
  $region11: #{dcgan_discriminator.6} parent=0 // pred_check_branch
    %1149 = sbr.rel (0) target = $region13
  $region12: #{dcgan_discriminator.6} parent=0 // pred_region
    _
  $region13: #{dcgan_discriminator.6} parent=0 // pred_fallthru
    _
  // Predicated region
  $region14: #{dcgan_discriminator.6} parent=0 // pred_check
    _
  $region15: #{dcgan_discriminator.6} parent=0 // pred_check_branch
    %1151 = sbr.rel (0) target = $region17
  $region16: #{dcgan_discriminator.6} parent=0 // pred_region
    _
  $region17: #{dcgan_discriminator.6} parent=0 // pred_fallthru
    _
  // Predicated region
  $region18: #{dcgan_discriminator.6} parent=0 // pred_check
    _
  $region19: #{dcgan_discriminator.6} parent=0 // pred_check_branch
    %1153 = sbr.rel (0) target = $region21
  $region20: #{dcgan_discriminator.6} parent=0 // pred_region
    _
  $region21: #{dcgan_discriminator.6} parent=0 // pred_fallthru
    _
  // Predicated region
  $region22: #{dcgan_discriminator.6} parent=0 // pred_check
    _
  $region23: #{dcgan_discriminator.6} parent=0 // pred_check_branch
    %1155 = sbr.rel (0) target = $region25
  $region24: #{dcgan_discriminator.6} parent=0 // pred_region
    _
  $region25: #{dcgan_discriminator.6} parent=0 // pred_fallthru
    _
  // Predicated region
  $region26: #{dcgan_discriminator.6} parent=0 // pred_check
    _
  $region27: #{dcgan_discriminator.6} parent=0 // pred_check_branch
    %1157 = sbr.rel (0) target = $region29
  $region28: #{dcgan_discriminator.6} parent=0 // pred_region
    _
  $region29: #{dcgan_discriminator.6} parent=0 // pred_fallthru
    _
  // Predicated region
  $region30: #{dcgan_discriminator.6} parent=0 // pred_check
    _
  $region31: #{dcgan_discriminator.6} parent=0 // pred_check_branch
    %1159 = sbr.rel (0) target = $region33
  $region32: #{dcgan_discriminator.6} parent=0 // pred_region
    _
  $region33: #{dcgan_discriminator.6} parent=0 // pred_fallthru
    _

// kernel: dcgan_discriminator.7
$region0: #{dcgan_discriminator.7}
  #allocation0 [shape = 'u32[]', space=smem, size = 0x4, offset = 0x4, fixed_abs, tag = 'smem constant byte address 0x4 - core index']
  #allocation1 [shape = 'u32[144,128]{1,0:T(1,128)}', space=vmem, size = 0x12000, scoped, tag = 'internal scratch']
  %s0 = inlined_call_operand.vmem [shape: bf16[128,256], index: 0, kind: input, shape index: {}]
  %s1 = inlined_call_operand.vmem [shape: bf16[256,128], index: 1, kind: input, shape index: {}]
  %s2 = inlined_call_operand.vmem [shape: bf16[128,128], index: 2, kind: output, shape index: {0}]
  %s3 = inlined_call_operand.vmem [shape: f32[8,128], index: 3, kind: output, shape index: {1}]
  %s4 = inlined_call_operand.vmem [shape: f32[8,128], index: 4, kind: output, shape index: {2}]
  %5 = xla_tuple %s2, %s3, %s4
  %s6 = sld [smem:[#allocation0]]
  $region34: #{dcgan_discriminator.7} parent=0
    _
  %s8 = ssub.s32 1, %s6
  %s9 = scalar_select 0, %s8, %s6
  // Predicated region
  $region2: #{dcgan_discriminator.7} parent=0 // pred_check
    _
  $region3: #{dcgan_discriminator.7} parent=0 // pred_check_branch
    %11 = sbr.rel (0) target = $region5
  $region4: #{dcgan_discriminator.7} parent=0 // pred_region
    _
  $region5: #{dcgan_discriminator.7} parent=0 // pred_fallthru
    _
  // Predicated region
  $region6: #{dcgan_discriminator.7} parent=0 // pred_check
    _
  $region7: #{dcgan_discriminator.7} parent=0 // pred_check_branch
    %13 = sbr.rel (0) target = $region9
  $region8: #{dcgan_discriminator.7} parent=0 // pred_region
    _
  $region9: #{dcgan_discriminator.7} parent=0 // pred_fallthru
    _
  %v15 = vld [vmem:[%s0] sm:$0xff]
  %v16 = vld [vmem:[%s0 + $0x8] sm:$0xff]
  %v17 = vld [vmem:[%s0 + $0x10] sm:$0xff]
  %v18 = vld [vmem:[%s0 + $0x18] sm:$0xff]
  %v19 = vld [vmem:[%s0 + $0x20] sm:$0xff]
  %v20 = vld [vmem:[%s0 + $0x28] sm:$0xff]
  %v21 = vld [vmem:[%s0 + $0x30] sm:$0xff]
  %v22 = vld [vmem:[%s0 + $0x38] sm:$0xff]
  %v23 = vld [vmem:[%s0 + $0x40] sm:$0xff]
  %v24 = vld [vmem:[%s0 + $0x48] sm:$0xff]
  %v25 = vld [vmem:[%s0 + $0x50] sm:$0xff]
  %v26 = vld [vmem:[%s0 + $0x58] sm:$0xff]
  %v27 = vld [vmem:[%s0 + $0x60] sm:$0xff]
  %v28 = vld [vmem:[%s0 + $0x68] sm:$0xff]
  %v29 = vld [vmem:[%s0 + $0x70] sm:$0xff]
  %v30 = vld [vmem:[%s0 + $0x78] sm:$0xff]
  %v31 = vld [vmem:[%s1] sm:$0xf]
  %v32 = vld [vmem:[%s1 + $0x4] sm:$0xf]
  %v33 = vld [vmem:[%s1 + $0x8] sm:$0xf]
  %v34 = vld [vmem:[%s1 + $0xc] sm:$0xf]
  %v35 = vld [vmem:[%s1 + $0x10] sm:$0xf]
  %v36 = vld [vmem:[%s1 + $0x14] sm:$0xf]
  %v37 = vld [vmem:[%s1 + $0x18] sm:$0xf]
  %v38 = vld [vmem:[%s1 + $0x1c] sm:$0xf]
  %v39 = vld [vmem:[%s1 + $0x20] sm:$0xf]
  %v40 = vld [vmem:[%s1 + $0x24] sm:$0xf]
  %v41 = vld [vmem:[%s1 + $0x28] sm:$0xf]
  %v42 = vld [vmem:[%s1 + $0x2c] sm:$0xf]
  %v43 = vld [vmem:[%s1 + $0x30] sm:$0xf]
  %v44 = vld [vmem:[%s1 + $0x34] sm:$0xf]
  %v45 = vld [vmem:[%s1 + $0x38] sm:$0xf]
  %v46 = vld [vmem:[%s1 + $0x3c] sm:$0xf]
  %v47 = vld [vmem:[%s1 + $0x40] sm:$0xf]
  %v48 = vld [vmem:[%s1 + $0x44] sm:$0xf]
  %v49 = vld [vmem:[%s1 + $0x48] sm:$0xf]
  %v50 = vld [vmem:[%s1 + $0x4c] sm:$0xf]
  %v51 = vld [vmem:[%s1 + $0x50] sm:$0xf]
  %v52 = vld [vmem:[%s1 + $0x54] sm:$0xf]
  %v53 = vld [vmem:[%s1 + $0x58] sm:$0xf]
  %v54 = vld [vmem:[%s1 + $0x5c] sm:$0xf]
  %v55 = vld [vmem:[%s1 + $0x60] sm:$0xf]
  %v56 = vld [vmem:[%s1 + $0x64] sm:$0xf]
  %v57 = vld [vmem:[%s1 + $0x68] sm:$0xf]
  %v58 = vld [vmem:[%s1 + $0x6c] sm:$0xf]
  %v59 = vld [vmem:[%s1 + $0x70] sm:$0xf]
  %v60 = vld [vmem:[%s1 + $0x74] sm:$0xf]
  %v61 = vld [vmem:[%s1 + $0x78] sm:$0xf]
  %v62 = vld [vmem:[%s1 + $0x7c] sm:$0xf]
  %v79 = vunpack.c.l.b16 %v15
  %v80 = vunpack.c.h.b16 %v15
  %v81 = vunpack.c.l.b16 %v16
  %v82 = vunpack.c.h.b16 %v16
  %v83 = vunpack.c.l.b16 %v17
  %v84 = vunpack.c.h.b16 %v17
  %v85 = vunpack.c.l.b16 %v18
  %v86 = vunpack.c.h.b16 %v18
  %v87 = vunpack.c.l.b16 %v19
  %v88 = vunpack.c.h.b16 %v19
  %v89 = vunpack.c.l.b16 %v20
  %v90 = vunpack.c.h.b16 %v20
  %v91 = vunpack.c.l.b16 %v21
  %v92 = vunpack.c.h.b16 %v21
  %v93 = vunpack.c.l.b16 %v22
  %v94 = vunpack.c.h.b16 %v22
  %v95 = vunpack.c.l.b16 %v23
  %v96 = vunpack.c.h.b16 %v23
  %v97 = vunpack.c.l.b16 %v24
  %v98 = vunpack.c.h.b16 %v24
  %v99 = vunpack.c.l.b16 %v25
  %v100 = vunpack.c.h.b16 %v25
  %v101 = vunpack.c.l.b16 %v26
  %v102 = vunpack.c.h.b16 %v26
  %v103 = vunpack.c.l.b16 %v27
  %v104 = vunpack.c.h.b16 %v27
  %v105 = vunpack.c.l.b16 %v28
  %v106 = vunpack.c.h.b16 %v28
  %v107 = vunpack.c.l.b16 %v29
  %v108 = vunpack.c.h.b16 %v29
  %v109 = vunpack.c.l.b16 %v30
  %v110 = vunpack.c.h.b16 %v30
  %v111 = vpack.c.b16 %v81, %v79
  %v112 = vpack.c.b16 %v82, %v80
  %v113 = vpack.c.b16 %v85, %v83
  %v114 = vpack.c.b16 %v86, %v84
  %v115 = vpack.c.b16 %v89, %v87
  %v116 = vpack.c.b16 %v90, %v88
  %v117 = vpack.c.b16 %v93, %v91
  %v118 = vpack.c.b16 %v94, %v92
  %v119 = vpack.c.b16 %v97, %v95
  %v120 = vpack.c.b16 %v98, %v96
  %v121 = vpack.c.b16 %v101, %v99
  %v122 = vpack.c.b16 %v102, %v100
  %v123 = vpack.c.b16 %v105, %v103
  %v124 = vpack.c.b16 %v106, %v104
  %v125 = vpack.c.b16 %v109, %v107
  %v126 = vpack.c.b16 %v110, %v108
  %v175 = vunpack.c.l.b16 %v31
  %v176 = vunpack.c.l.b16 %v32
  %v177 = vunpack.c.l.b16 %v33
  %v178 = vunpack.c.l.b16 %v34
  %v179 = vunpack.c.l.b16 %v35
  %v180 = vunpack.c.l.b16 %v36
  %v181 = vunpack.c.l.b16 %v37
  %v182 = vunpack.c.l.b16 %v38
  %v183 = vunpack.c.l.b16 %v39
  %v184 = vunpack.c.l.b16 %v40
  %v185 = vunpack.c.l.b16 %v41
  %v186 = vunpack.c.l.b16 %v42
  %v187 = vunpack.c.l.b16 %v43
  %v188 = vunpack.c.l.b16 %v44
  %v189 = vunpack.c.l.b16 %v45
  %v190 = vunpack.c.l.b16 %v46
  %v191 = vunpack.c.l.b16 %v47
  %v192 = vunpack.c.l.b16 %v48
  %v193 = vunpack.c.l.b16 %v49
  %v194 = vunpack.c.l.b16 %v50
  %v195 = vunpack.c.l.b16 %v51
  %v196 = vunpack.c.l.b16 %v52
  %v197 = vunpack.c.l.b16 %v53
  %v198 = vunpack.c.l.b16 %v54
  %v199 = vunpack.c.l.b16 %v55
  %v200 = vunpack.c.l.b16 %v56
  %v201 = vunpack.c.l.b16 %v57
  %v202 = vunpack.c.l.b16 %v58
  %v203 = vunpack.c.l.b16 %v59
  %v204 = vunpack.c.l.b16 %v60
  %v205 = vunpack.c.l.b16 %v61
  %v206 = vunpack.c.l.b16 %v62
  %v207 = vpack.c.b16 %v176, %v175
  %v208 = vpack.c.b16 %v178, %v177
  %v209 = vpack.c.b16 %v180, %v179
  %v210 = vpack.c.b16 %v182, %v181
  %v211 = vpack.c.b16 %v184, %v183
  %v212 = vpack.c.b16 %v186, %v185
  %v213 = vpack.c.b16 %v188, %v187
  %v214 = vpack.c.b16 %v190, %v189
  %v215 = vpack.c.b16 %v192, %v191
  %v216 = vpack.c.b16 %v194, %v193
  %v217 = vpack.c.b16 %v196, %v195
  %v218 = vpack.c.b16 %v198, %v197
  %v219 = vpack.c.b16 %v200, %v199
  %v220 = vpack.c.b16 %v202, %v201
  %v221 = vpack.c.b16 %v204, %v203
  %v222 = vpack.c.b16 %v206, %v205
  %239 = vmatprep.subr.bf16.mxu0 0
  %240 = vmatpush1.bf16.msra.mxu0 %v207
  %241 = vmatprep.subr.bf16.mxu0 0
  %242 = vmatpush1.bf16.msra.mxu0 %v208
  %243 = vmatprep.subr.bf16.mxu0 0
  %244 = vmatpush1.bf16.msra.mxu0 %v209
  %245 = vmatprep.subr.bf16.mxu0 0
  %246 = vmatpush1.bf16.msra.mxu0 %v210
  %247 = vmatprep.subr.bf16.mxu0 0
  %248 = vmatpush1.bf16.msra.mxu0 %v211
  %249 = vmatprep.subr.bf16.mxu0 0
  %250 = vmatpush1.bf16.msra.mxu0 %v212
  %251 = vmatprep.subr.bf16.mxu0 0
  %252 = vmatpush1.bf16.msra.mxu0 %v213
  %253 = vmatprep.subr.bf16.mxu0 0
  %254 = vmatpush1.bf16.msra.mxu0 %v214
  %255 = vmatprep.subr.bf16.mxu0 0
  %256 = vmatpush1.bf16.msra.mxu0 %v215
  %257 = vmatprep.subr.bf16.mxu0 0
  %258 = vmatpush1.bf16.msra.mxu0 %v216
  %259 = vmatprep.subr.bf16.mxu0 0
  %260 = vmatpush1.bf16.msra.mxu0 %v217
  %261 = vmatprep.subr.bf16.mxu0 0
  %262 = vmatpush1.bf16.msra.mxu0 %v218
  %263 = vmatprep.subr.bf16.mxu0 0
  %264 = vmatpush1.bf16.msra.mxu0 %v219
  %265 = vmatprep.subr.bf16.mxu0 0
  %266 = vmatpush1.bf16.msra.mxu0 %v220
  %267 = vmatprep.subr.bf16.mxu0 0
  %268 = vmatpush1.bf16.msra.mxu0 %v221
  %269 = vmatprep.subr.bf16.mxu0 0
  %270 = vmatpush1.bf16.msra.mxu0 %v222
  %271 = vmatprep.mubr.bf16.mxu0 %v112
  %272 = vmatmul.mubr.bf16.gmra.mrb[0].mxu0 %v111
  %v273 = vpop.f32.mrb[0].mxu0
  %v274 = vadd.f32 0.0, %v273
  %v275 = vpop.f32.mrb[0].mxu0
  %v276 = vpop.f32.mrb[0].mxu0
  %v277 = vadd.f32 0.0, %v276
  %v278 = vpop.f32.mrb[0].mxu0
  %279 = vmatprep.mubr.bf16.mxu0 %v114
  %280 = vmatmul.mubr.bf16.gmra.mrb[0].mxu0 %v113
  %v281 = vpop.f32.mrb[0].mxu0
  %v282 = vadd.f32 0.0, %v281
  %v283 = vpop.f32.mrb[0].mxu0
  %v284 = vpop.f32.mrb[0].mxu0
  %v285 = vadd.f32 0.0, %v284
  %v286 = vpop.f32.mrb[0].mxu0
  %287 = vmatprep.mubr.bf16.mxu0 %v116
  %288 = vmatmul.mubr.bf16.gmra.mrb[0].mxu0 %v115
  %v289 = vpop.f32.mrb[0].mxu0
  %v290 = vadd.f32 0.0, %v289
  %v291 = vpop.f32.mrb[0].mxu0
  %v292 = vpop.f32.mrb[0].mxu0
  %v293 = vadd.f32 0.0, %v292
  %v294 = vpop.f32.mrb[0].mxu0
  %295 = vmatprep.mubr.bf16.mxu0 %v118
  %296 = vmatmul.mubr.bf16.gmra.mrb[0].mxu0 %v117
  %v297 = vpop.f32.mrb[0].mxu0
  %v298 = vadd.f32 0.0, %v297
  %v299 = vpop.f32.mrb[0].mxu0
  %v300 = vpop.f32.mrb[0].mxu0
  %v301 = vadd.f32 0.0, %v300
  %v302 = vpop.f32.mrb[0].mxu0
  %303 = vmatprep.mubr.bf16.mxu0 %v120
  %304 = vmatmul.mubr.bf16.gmra.mrb[0].mxu0 %v119
  %v305 = vpop.f32.mrb[0].mxu0
  %v306 = vadd.f32 0.0, %v305
  %v307 = vpop.f32.mrb[0].mxu0
  %v308 = vpop.f32.mrb[0].mxu0
  %v309 = vadd.f32 0.0, %v308
  %v310 = vpop.f32.mrb[0].mxu0
  %311 = vmatprep.mubr.bf16.mxu0 %v122
  %312 = vmatmul.mubr.bf16.gmra.mrb[0].mxu0 %v121
  %v313 = vpop.f32.mrb[0].mxu0
  %v314 = vadd.f32 0.0, %v313
  %v315 = vpop.f32.mrb[0].mxu0
  %v316 = vpop.f32.mrb[0].mxu0
  %v317 = vadd.f32 0.0, %v316
  %v318 = vpop.f32.mrb[0].mxu0
  %319 = vmatprep.mubr.bf16.mxu0 %v124
  %320 = vmatmul.mubr.bf16.gmra.mrb[0].mxu0 %v123
  %v321 = vpop.f32.mrb[0].mxu0
  %v322 = vadd.f32 0.0, %v321
  %v323 = vpop.f32.mrb[0].mxu0
  %v324 = vpop.f32.mrb[0].mxu0
  %v325 = vadd.f32 0.0, %v324
  %v326 = vpop.f32.mrb[0].mxu0
  %327 = vmatprep.mubr.bf16.mxu0 %v126
  %328 = vmatmul.mubr.bf16.gmra.mrb[0].mxu0 %v125
  %v329 = vpop.f32.mrb[0].mxu0
  %v330 = vadd.f32 0.0, %v329
  %v331 = vpop.f32.mrb[0].mxu0
  %v332 = vpop.f32.mrb[0].mxu0
  %v333 = vadd.f32 0.0, %v332
  %v334 = vpop.f32.mrb[0].mxu0
  %335 = vdwg.mxu0
  %v336 = vpack.c.bf16 %v277, %v274
  %v337 = vpack.c.bf16 %v285, %v282
  %v338 = vpack.c.bf16 %v293, %v290
  %v339 = vpack.c.bf16 %v301, %v298
  %v340 = vpack.c.bf16 %v309, %v306
  %v341 = vpack.c.bf16 %v317, %v314
  %v342 = vpack.c.bf16 %v325, %v322
  %v343 = vpack.c.bf16 %v333, %v330
  %v352 = vunpack.c.l.b16 %v336
  %v353 = vunpack.c.h.b16 %v336
  %v354 = vunpack.c.l.b16 %v337
  %v355 = vunpack.c.h.b16 %v337
  %v356 = vunpack.c.l.b16 %v338
  %v357 = vunpack.c.h.b16 %v338
  %v358 = vunpack.c.l.b16 %v339
  %v359 = vunpack.c.h.b16 %v339
  %v360 = vunpack.c.l.b16 %v340
  %v361 = vunpack.c.h.b16 %v340
  %v362 = vunpack.c.l.b16 %v341
  %v363 = vunpack.c.h.b16 %v341
  %v364 = vunpack.c.l.b16 %v342
  %v365 = vunpack.c.h.b16 %v342
  %v366 = vunpack.c.l.b16 %v343
  %v367 = vunpack.c.h.b16 %v343
  %v368 = vpack.c.b16 %v352, %v352
  %v369 = vpack.c.b16 %v353, %v353
  %v370 = vpack.c.b16 %v354, %v354
  %v371 = vpack.c.b16 %v355, %v355
  %v372 = vpack.c.b16 %v356, %v356
  %v373 = vpack.c.b16 %v357, %v357
  %v374 = vpack.c.b16 %v358, %v358
  %v375 = vpack.c.b16 %v359, %v359
  %v376 = vpack.c.b16 %v360, %v360
  %v377 = vpack.c.b16 %v361, %v361
  %v378 = vpack.c.b16 %v362, %v362
  %v379 = vpack.c.b16 %v363, %v363
  %v380 = vpack.c.b16 %v364, %v364
  %v381 = vpack.c.b16 %v365, %v365
  %v382 = vpack.c.b16 %v366, %v366
  %v383 = vpack.c.b16 %v367, %v367
  %400 = vst [vmem:[%s2] sm:$0xf] %v368
  %401 = vst [vmem:[%s2 + $0x4] sm:$0xf] %v369
  %402 = vst [vmem:[%s2 + $0x8] sm:$0xf] %v370
  %403 = vst [vmem:[%s2 + $0xc] sm:$0xf] %v371
  %404 = vst [vmem:[%s2 + $0x10] sm:$0xf] %v372
  %405 = vst [vmem:[%s2 + $0x14] sm:$0xf] %v373
  %406 = vst [vmem:[%s2 + $0x18] sm:$0xf] %v374
  %407 = vst [vmem:[%s2 + $0x1c] sm:$0xf] %v375
  %408 = vst [vmem:[%s2 + $0x20] sm:$0xf] %v376
  %409 = vst [vmem:[%s2 + $0x24] sm:$0xf] %v377
  %410 = vst [vmem:[%s2 + $0x28] sm:$0xf] %v378
  %411 = vst [vmem:[%s2 + $0x2c] sm:$0xf] %v379
  %412 = vst [vmem:[%s2 + $0x30] sm:$0xf] %v380
  %413 = vst [vmem:[%s2 + $0x34] sm:$0xf] %v381
  %414 = vst [vmem:[%s2 + $0x38] sm:$0xf] %v382
  %415 = vst [vmem:[%s2 + $0x3c] sm:$0xf] %v383
  %v416 = vadd.f32 %v274, %v277
  %v417 = vadd.f32 %v416, %v282
  %v418 = vadd.f32 %v417, %v285
  %v419 = vadd.f32 %v418, %v290
  %v420 = vadd.f32 %v419, %v293
  %v421 = vadd.f32 %v420, %v298
  %v422 = vadd.f32 %v421, %v301
  %v423 = vadd.f32 %v422, %v306
  %v424 = vadd.f32 %v423, %v309
  %v425 = vadd.f32 %v424, %v314
  %v426 = vadd.f32 %v425, %v317
  %v427 = vadd.f32 %v426, %v322
  %v428 = vadd.f32 %v427, %v325
  %v429 = vadd.f32 %v428, %v330
  %v430 = vadd.f32 %v429, %v333
  %v431 = vrot.slane %v430, 4
  %v432 = vadd.f32 %v430, %v431
  %v433 = vrot.slane %v432, 2
  %v434 = vadd.f32 %v432, %v433
  %v435 = vrot.slane %v434, 1
  %v436 = vadd.f32 %v434, %v435
  %437 = vst [vmem:[%s3] sm:$0x1] %v436
  %v438 = vmul.f32 %v274, %v274
  %v439 = vmul.f32 %v277, %v277
  %v440 = vmul.f32 %v282, %v282
  %v441 = vmul.f32 %v285, %v285
  %v442 = vmul.f32 %v290, %v290
  %v443 = vmul.f32 %v293, %v293
  %v444 = vmul.f32 %v298, %v298
  %v445 = vmul.f32 %v301, %v301
  %v446 = vmul.f32 %v306, %v306
  %v447 = vmul.f32 %v309, %v309
  %v448 = vmul.f32 %v314, %v314
  %v449 = vmul.f32 %v317, %v317
  %v450 = vmul.f32 %v322, %v322
  %v451 = vmul.f32 %v325, %v325
  %v452 = vmul.f32 %v330, %v330
  %v453 = vmul.f32 %v333, %v333
  %v454 = vadd.f32 %v438, %v439
  %v455 = vadd.f32 %v454, %v440
  %v456 = vadd.f32 %v455, %v441
  %v457 = vadd.f32 %v456, %v442
  %v458 = vadd.f32 %v457, %v443
  %v459 = vadd.f32 %v458, %v444
  %v460 = vadd.f32 %v459, %v445
  %v461 = vadd.f32 %v460, %v446
  %v462 = vadd.f32 %v461, %v447
  %v463 = vadd.f32 %v462, %v448
  %v464 = vadd.f32 %v463, %v449
  %v465 = vadd.f32 %v464, %v450
  %v466 = vadd.f32 %v465, %v451
  %v467 = vadd.f32 %v466, %v452
  %v468 = vadd.f32 %v467, %v453
  %v469 = vrot.slane %v468, 4
  %v470 = vadd.f32 %v468, %v469
  %v471 = vrot.slane %v470, 2
  %v472 = vadd.f32 %v470, %v471
  %v473 = vrot.slane %v472, 1
  %v474 = vadd.f32 %v472, %v473
  %475 = vst [vmem:[%s4] sm:$0x1] %v474
  // Predicated region
  $region10: #{dcgan_discriminator.7} parent=0 // pred_check
    _
  $region11: #{dcgan_discriminator.7} parent=0 // pred_check_branch
    %477 = sbr.rel (0) target = $region13
  $region12: #{dcgan_discriminator.7} parent=0 // pred_region
    _
  $region13: #{dcgan_discriminator.7} parent=0 // pred_fallthru
    _
  // Predicated region
  $region14: #{dcgan_discriminator.7} parent=0 // pred_check
    _
  $region15: #{dcgan_discriminator.7} parent=0 // pred_check_branch
    %479 = sbr.rel (0) target = $region17
  $region16: #{dcgan_discriminator.7} parent=0 // pred_region
    _
  $region17: #{dcgan_discriminator.7} parent=0 // pred_fallthru
    _
  // Predicated region
  $region18: #{dcgan_discriminator.7} parent=0 // pred_check
    _
  $region19: #{dcgan_discriminator.7} parent=0 // pred_check_branch
    %481 = sbr.rel (0) target = $region21
  $region20: #{dcgan_discriminator.7} parent=0 // pred_region
    _
  $region21: #{dcgan_discriminator.7} parent=0 // pred_fallthru
    _
  // Predicated region
  $region22: #{dcgan_discriminator.7} parent=0 // pred_check
    _
  $region23: #{dcgan_discriminator.7} parent=0 // pred_check_branch
    %483 = sbr.rel (0) target = $region25
  $region24: #{dcgan_discriminator.7} parent=0 // pred_region
    _
  $region25: #{dcgan_discriminator.7} parent=0 // pred_fallthru
    _
  // Predicated region
  $region26: #{dcgan_discriminator.7} parent=0 // pred_check
    _
  $region27: #{dcgan_discriminator.7} parent=0 // pred_check_branch
    %485 = sbr.rel (0) target = $region29
  $region28: #{dcgan_discriminator.7} parent=0 // pred_region
    _
  $region29: #{dcgan_discriminator.7} parent=0 // pred_fallthru
    _
  // Predicated region
  $region30: #{dcgan_discriminator.7} parent=0 // pred_check
    _
  $region31: #{dcgan_discriminator.7} parent=0 // pred_check_branch
    %487 = sbr.rel (0) target = $region33
  $region32: #{dcgan_discriminator.7} parent=0 // pred_region
    _
  $region33: #{dcgan_discriminator.7} parent=0 // pred_fallthru
    _

// kernel: dcgan_discriminator.8
$region0: #{dcgan_discriminator.8}
  #allocation0 [shape = 'u32[]', space=smem, size = 0x4, offset = 0x4, fixed_abs, tag = 'smem constant byte address 0x4 - core index']
  #allocation1 [shape = 'u32[144,128]{1,0:T(1,128)}', space=vmem, size = 0x12000, scoped, tag = 'internal scratch']
  %s0 = inlined_call_operand.vmem [shape: bf16[32,512], index: 0, kind: input, shape index: {}]
  %s1 = inlined_call_operand.vmem [shape: bf16[512,128], index: 1, kind: input, shape index: {}]
  %s2 = inlined_call_operand.vmem [shape: bf16[32,128], index: 2, kind: output, shape index: {0}]
  %s3 = inlined_call_operand.vmem [shape: f32[8,128], index: 3, kind: output, shape index: {1}]
  %s4 = inlined_call_operand.vmem [shape: f32[8,128], index: 4, kind: output, shape index: {2}]
  %5 = xla_tuple %s2, %s3, %s4
  %s6 = sld [smem:[#allocation0]]
  $region34: #{dcgan_discriminator.8} parent=0
    _
  %s8 = ssub.s32 1, %s6
  %s9 = scalar_select 0, %s8, %s6
  // Predicated region
  $region2: #{dcgan_discriminator.8} parent=0 // pred_check
    _
  $region3: #{dcgan_discriminator.8} parent=0 // pred_check_branch
    %11 = sbr.rel (0) target = $region5
  $region4: #{dcgan_discriminator.8} parent=0 // pred_region
    _
  $region5: #{dcgan_discriminator.8} parent=0 // pred_fallthru
    _
  // Predicated region
  $region6: #{dcgan_discriminator.8} parent=0 // pred_check
    _
  $region7: #{dcgan_discriminator.8} parent=0 // pred_check_branch
    %13 = sbr.rel (0) target = $region9
  $region8: #{dcgan_discriminator.8} parent=0 // pred_region
    _
  $region9: #{dcgan_discriminator.8} parent=0 // pred_fallthru
    _
  %v15 = vld [vmem:[%s0] sm:$0xff]
  %v16 = vld [vmem:[%s0 + $0x8] sm:$0xff]
  %v17 = vld [vmem:[%s0 + $0x10] sm:$0xff]
  %v18 = vld [vmem:[%s0 + $0x18] sm:$0xff]
  %v19 = vld [vmem:[%s0 + $0x20] sm:$0xff]
  %v20 = vld [vmem:[%s0 + $0x28] sm:$0xff]
  %v21 = vld [vmem:[%s0 + $0x30] sm:$0xff]
  %v22 = vld [vmem:[%s0 + $0x38] sm:$0xff]
  %v23 = vld [vmem:[%s1] sm:$0xf]
  %v24 = vld [vmem:[%s1 + $0x4] sm:$0xf]
  %v25 = vld [vmem:[%s1 + $0x8] sm:$0xf]
  %v26 = vld [vmem:[%s1 + $0xc] sm:$0xf]
  %v27 = vld [vmem:[%s1 + $0x10] sm:$0xf]
  %v28 = vld [vmem:[%s1 + $0x14] sm:$0xf]
  %v29 = vld [vmem:[%s1 + $0x18] sm:$0xf]
  %v30 = vld [vmem:[%s1 + $0x1c] sm:$0xf]
  %v31 = vld [vmem:[%s1 + $0x20] sm:$0xf]
  %v32 = vld [vmem:[%s1 + $0x24] sm:$0xf]
  %v33 = vld [vmem:[%s1 + $0x28] sm:$0xf]
  %v34 = vld [vmem:[%s1 + $0x2c] sm:$0xf]
  %v35 = vld [vmem:[%s1 + $0x30] sm:$0xf]
  %v36 = vld [vmem:[%s1 + $0x34] sm:$0xf]
  %v37 = vld [vmem:[%s1 + $0x38] sm:$0xf]
  %v38 = vld [vmem:[%s1 + $0x3c] sm:$0xf]
  %v39 = vld [vmem:[%s1 + $0x40] sm:$0xf]
  %v40 = vld [vmem:[%s1 + $0x44] sm:$0xf]
  %v41 = vld [vmem:[%s1 + $0x48] sm:$0xf]
  %v42 = vld [vmem:[%s1 + $0x4c] sm:$0xf]
  %v43 = vld [vmem:[%s1 + $0x50] sm:$0xf]
  %v44 = vld [vmem:[%s1 + $0x54] sm:$0xf]
  %v45 = vld [vmem:[%s1 + $0x58] sm:$0xf]
  %v46 = vld [vmem:[%s1 + $0x5c] sm:$0xf]
  %v47 = vld [vmem:[%s1 + $0x60] sm:$0xf]
  %v48 = vld [vmem:[%s1 + $0x64] sm:$0xf]
  %v49 = vld [vmem:[%s1 + $0x68] sm:$0xf]
  %v50 = vld [vmem:[%s1 + $0x6c] sm:$0xf]
  %v51 = vld [vmem:[%s1 + $0x70] sm:$0xf]
  %v52 = vld [vmem:[%s1 + $0x74] sm:$0xf]
  %v53 = vld [vmem:[%s1 + $0x78] sm:$0xf]
  %v54 = vld [vmem:[%s1 + $0x7c] sm:$0xf]
  %v55 = vld [vmem:[%s1 + $0x80] sm:$0xf]
  %v56 = vld [vmem:[%s1 + $0x84] sm:$0xf]
  %v57 = vld [vmem:[%s1 + $0x88] sm:$0xf]
  %v58 = vld [vmem:[%s1 + $0x8c] sm:$0xf]
  %v59 = vld [vmem:[%s1 + $0x90] sm:$0xf]
  %v60 = vld [vmem:[%s1 + $0x94] sm:$0xf]
  %v61 = vld [vmem:[%s1 + $0x98] sm:$0xf]
  %v62 = vld [vmem:[%s1 + $0x9c] sm:$0xf]
  %v63 = vld [vmem:[%s1 + $0xa0] sm:$0xf]
  %v64 = vld [vmem:[%s1 + $0xa4] sm:$0xf]
  %v65 = vld [vmem:[%s1 + $0xa8] sm:$0xf]
  %v66 = vld [vmem:[%s1 + $0xac] sm:$0xf]
  %v67 = vld [vmem:[%s1 + $0xb0] sm:$0xf]
  %v68 = vld [vmem:[%s1 + $0xb4] sm:$0xf]
  %v69 = vld [vmem:[%s1 + $0xb8] sm:$0xf]
  %v70 = vld [vmem:[%s1 + $0xbc] sm:$0xf]
  %v71 = vld [vmem:[%s1 + $0xc0] sm:$0xf]
  %v72 = vld [vmem:[%s1 + $0xc4] sm:$0xf]
  %v73 = vld [vmem:[%s1 + $0xc8] sm:$0xf]
  %v74 = vld [vmem:[%s1 + $0xcc] sm:$0xf]
  %v75 = vld [vmem:[%s1 + $0xd0] sm:$0xf]
  %v76 = vld [vmem:[%s1 + $0xd4] sm:$0xf]
  %v77 = vld [vmem:[%s1 + $0xd8] sm:$0xf]
  %v78 = vld [vmem:[%s1 + $0xdc] sm:$0xf]
  %v79 = vld [vmem:[%s1 + $0xe0] sm:$0xf]
  %v80 = vld [vmem:[%s1 + $0xe4] sm:$0xf]
  %v81 = vld [vmem:[%s1 + $0xe8] sm:$0xf]
  %v82 = vld [vmem:[%s1 + $0xec] sm:$0xf]
  %v83 = vld [vmem:[%s1 + $0xf0] sm:$0xf]
  %v84 = vld [vmem:[%s1 + $0xf4] sm:$0xf]
  %v85 = vld [vmem:[%s1 + $0xf8] sm:$0xf]
  %v86 = vld [vmem:[%s1 + $0xfc] sm:$0xf]
  %v95 = vunpack.c.l.b16 %v15
  %v96 = vunpack.c.h.b16 %v15
  %v97 = vunpack.c.l.b16 %v16
  %v98 = vunpack.c.h.b16 %v16
  %v99 = vunpack.c.l.b16 %v17
  %v100 = vunpack.c.h.b16 %v17
  %v101 = vunpack.c.l.b16 %v18
  %v102 = vunpack.c.h.b16 %v18
  %v103 = vunpack.c.l.b16 %v19
  %v104 = vunpack.c.h.b16 %v19
  %v105 = vunpack.c.l.b16 %v20
  %v106 = vunpack.c.h.b16 %v20
  %v107 = vunpack.c.l.b16 %v21
  %v108 = vunpack.c.h.b16 %v21
  %v109 = vunpack.c.l.b16 %v22
  %v110 = vunpack.c.h.b16 %v22
  %v111 = vpack.c.b16 %v99, %v95
  %v112 = vpack.c.b16 %v100, %v96
  %v113 = vpack.c.b16 %v101, %v97
  %v114 = vpack.c.b16 %v102, %v98
  %v115 = vpack.c.b16 %v107, %v103
  %v116 = vpack.c.b16 %v108, %v104
  %v117 = vpack.c.b16 %v109, %v105
  %v118 = vpack.c.b16 %v110, %v106
  %v191 = vunpack.c.l.b16 %v23
  %v192 = vunpack.c.l.b16 %v24
  %v193 = vunpack.c.l.b16 %v25
  %v194 = vunpack.c.l.b16 %v26
  %v195 = vunpack.c.l.b16 %v27
  %v196 = vunpack.c.l.b16 %v28
  %v197 = vunpack.c.l.b16 %v29
  %v198 = vunpack.c.l.b16 %v30
  %v199 = vunpack.c.l.b16 %v31
  %v200 = vunpack.c.l.b16 %v32
  %v201 = vunpack.c.l.b16 %v33
  %v202 = vunpack.c.l.b16 %v34
  %v203 = vunpack.c.l.b16 %v35
  %v204 = vunpack.c.l.b16 %v36
  %v205 = vunpack.c.l.b16 %v37
  %v206 = vunpack.c.l.b16 %v38
  %v207 = vunpack.c.l.b16 %v39
  %v208 = vunpack.c.l.b16 %v40
  %v209 = vunpack.c.l.b16 %v41
  %v210 = vunpack.c.l.b16 %v42
  %v211 = vunpack.c.l.b16 %v43
  %v212 = vunpack.c.l.b16 %v44
  %v213 = vunpack.c.l.b16 %v45
  %v214 = vunpack.c.l.b16 %v46
  %v215 = vunpack.c.l.b16 %v47
  %v216 = vunpack.c.l.b16 %v48
  %v217 = vunpack.c.l.b16 %v49
  %v218 = vunpack.c.l.b16 %v50
  %v219 = vunpack.c.l.b16 %v51
  %v220 = vunpack.c.l.b16 %v52
  %v221 = vunpack.c.l.b16 %v53
  %v222 = vunpack.c.l.b16 %v54
  %v223 = vunpack.c.l.b16 %v55
  %v224 = vunpack.c.l.b16 %v56
  %v225 = vunpack.c.l.b16 %v57
  %v226 = vunpack.c.l.b16 %v58
  %v227 = vunpack.c.l.b16 %v59
  %v228 = vunpack.c.l.b16 %v60
  %v229 = vunpack.c.l.b16 %v61
  %v230 = vunpack.c.l.b16 %v62
  %v231 = vunpack.c.l.b16 %v63
  %v232 = vunpack.c.l.b16 %v64
  %v233 = vunpack.c.l.b16 %v65
  %v234 = vunpack.c.l.b16 %v66
  %v235 = vunpack.c.l.b16 %v67
  %v236 = vunpack.c.l.b16 %v68
  %v237 = vunpack.c.l.b16 %v69
  %v238 = vunpack.c.l.b16 %v70
  %v239 = vunpack.c.l.b16 %v71
  %v240 = vunpack.c.l.b16 %v72
  %v241 = vunpack.c.l.b16 %v73
  %v242 = vunpack.c.l.b16 %v74
  %v243 = vunpack.c.l.b16 %v75
  %v244 = vunpack.c.l.b16 %v76
  %v245 = vunpack.c.l.b16 %v77
  %v246 = vunpack.c.l.b16 %v78
  %v247 = vunpack.c.l.b16 %v79
  %v248 = vunpack.c.l.b16 %v80
  %v249 = vunpack.c.l.b16 %v81
  %v250 = vunpack.c.l.b16 %v82
  %v251 = vunpack.c.l.b16 %v83
  %v252 = vunpack.c.l.b16 %v84
  %v253 = vunpack.c.l.b16 %v85
  %v254 = vunpack.c.l.b16 %v86
  %v255 = vpack.c.b16 %v192, %v191
  %v256 = vpack.c.b16 %v194, %v193
  %v257 = vpack.c.b16 %v196, %v195
  %v258 = vpack.c.b16 %v198, %v197
  %v259 = vpack.c.b16 %v200, %v199
  %v260 = vpack.c.b16 %v202, %v201
  %v261 = vpack.c.b16 %v204, %v203
  %v262 = vpack.c.b16 %v206, %v205
  %v263 = vpack.c.b16 %v208, %v207
  %v264 = vpack.c.b16 %v210, %v209
  %v265 = vpack.c.b16 %v212, %v211
  %v266 = vpack.c.b16 %v214, %v213
  %v267 = vpack.c.b16 %v216, %v215
  %v268 = vpack.c.b16 %v218, %v217
  %v269 = vpack.c.b16 %v220, %v219
  %v270 = vpack.c.b16 %v222, %v221
  %v271 = vpack.c.b16 %v224, %v223
  %v272 = vpack.c.b16 %v226, %v225
  %v273 = vpack.c.b16 %v228, %v227
  %v274 = vpack.c.b16 %v230, %v229
  %v275 = vpack.c.b16 %v232, %v231
  %v276 = vpack.c.b16 %v234, %v233
  %v277 = vpack.c.b16 %v236, %v235
  %v278 = vpack.c.b16 %v238, %v237
  %v279 = vpack.c.b16 %v240, %v239
  %v280 = vpack.c.b16 %v242, %v241
  %v281 = vpack.c.b16 %v244, %v243
  %v282 = vpack.c.b16 %v246, %v245
  %v283 = vpack.c.b16 %v248, %v247
  %v284 = vpack.c.b16 %v250, %v249
  %v285 = vpack.c.b16 %v252, %v251
  %v286 = vpack.c.b16 %v254, %v253
  %319 = vmatprep.subr.bf16.mxu0 0
  %320 = vmatpush1.bf16.msra.mxu0 %v255
  %321 = vmatprep.subr.bf16.mxu0 0
  %322 = vmatpush1.bf16.msra.mxu0 %v256
  %323 = vmatprep.subr.bf16.mxu0 0
  %324 = vmatpush1.bf16.msra.mxu0 %v257
  %325 = vmatprep.subr.bf16.mxu0 0
  %326 = vmatpush1.bf16.msra.mxu0 %v258
  %327 = vmatprep.subr.bf16.mxu0 0
  %328 = vmatpush1.bf16.msra.mxu0 %v259
  %329 = vmatprep.subr.bf16.mxu0 0
  %330 = vmatpush1.bf16.msra.mxu0 %v260
  %331 = vmatprep.subr.bf16.mxu0 0
  %332 = vmatpush1.bf16.msra.mxu0 %v261
  %333 = vmatprep.subr.bf16.mxu0 0
  %334 = vmatpush1.bf16.msra.mxu0 %v262
  %335 = vmatprep.subr.bf16.mxu0 0
  %336 = vmatpush1.bf16.msra.mxu0 %v263
  %337 = vmatprep.subr.bf16.mxu0 0
  %338 = vmatpush1.bf16.msra.mxu0 %v264
  %339 = vmatprep.subr.bf16.mxu0 0
  %340 = vmatpush1.bf16.msra.mxu0 %v265
  %341 = vmatprep.subr.bf16.mxu0 0
  %342 = vmatpush1.bf16.msra.mxu0 %v266
  %343 = vmatprep.subr.bf16.mxu0 0
  %344 = vmatpush1.bf16.msra.mxu0 %v267
  %345 = vmatprep.subr.bf16.mxu0 0
  %346 = vmatpush1.bf16.msra.mxu0 %v268
  %347 = vmatprep.subr.bf16.mxu0 0
  %348 = vmatpush1.bf16.msra.mxu0 %v269
  %349 = vmatprep.subr.bf16.mxu0 0
  %350 = vmatpush1.bf16.msra.mxu0 %v270
  %351 = vmatprep.mubr.bf16.mxu0 %v112
  %352 = vmatmul.mubr.bf16.gmra.mrb[0].mxu0 %v111
  %v353 = vpop.f32.mrb[0].mxu0
  %v354 = vadd.f32 0.0, %v353
  %v355 = vpop.f32.mrb[0].mxu0
  %v356 = vpop.f32.mrb[0].mxu0
  %v357 = vadd.f32 0.0, %v356
  %v358 = vpop.f32.mrb[0].mxu0
  %359 = vmatprep.mubr.bf16.mxu0 %v116
  %360 = vmatmul.mubr.bf16.gmra.mrb[0].mxu0 %v115
  %v361 = vpop.f32.mrb[0].mxu0
  %v362 = vadd.f32 0.0, %v361
  %v363 = vpop.f32.mrb[0].mxu0
  %v364 = vpop.f32.mrb[0].mxu0
  %v365 = vadd.f32 0.0, %v364
  %v366 = vpop.f32.mrb[0].mxu0
  %367 = vdwg.mxu0
  %368 = vmatprep.subr.bf16.mxu0 0
  %369 = vmatpush1.bf16.msra.mxu0 %v271
  %370 = vmatprep.subr.bf16.mxu0 0
  %371 = vmatpush1.bf16.msra.mxu0 %v272
  %372 = vmatprep.subr.bf16.mxu0 0
  %373 = vmatpush1.bf16.msra.mxu0 %v273
  %374 = vmatprep.subr.bf16.mxu0 0
  %375 = vmatpush1.bf16.msra.mxu0 %v274
  %376 = vmatprep.subr.bf16.mxu0 0
  %377 = vmatpush1.bf16.msra.mxu0 %v275
  %378 = vmatprep.subr.bf16.mxu0 0
  %379 = vmatpush1.bf16.msra.mxu0 %v276
  %380 = vmatprep.subr.bf16.mxu0 0
  %381 = vmatpush1.bf16.msra.mxu0 %v277
  %382 = vmatprep.subr.bf16.mxu0 0
  %383 = vmatpush1.bf16.msra.mxu0 %v278
  %384 = vmatprep.subr.bf16.mxu0 0
  %385 = vmatpush1.bf16.msra.mxu0 %v279
  %386 = vmatprep.subr.bf16.mxu0 0
  %387 = vmatpush1.bf16.msra.mxu0 %v280
  %388 = vmatprep.subr.bf16.mxu0 0
  %389 = vmatpush1.bf16.msra.mxu0 %v281
  %390 = vmatprep.subr.bf16.mxu0 0
  %391 = vmatpush1.bf16.msra.mxu0 %v282
  %392 = vmatprep.subr.bf16.mxu0 0
  %393 = vmatpush1.bf16.msra.mxu0 %v283
  %394 = vmatprep.subr.bf16.mxu0 0
  %395 = vmatpush1.bf16.msra.mxu0 %v284
  %396 = vmatprep.subr.bf16.mxu0 0
  %397 = vmatpush1.bf16.msra.mxu0 %v285
  %398 = vmatprep.subr.bf16.mxu0 0
  %399 = vmatpush1.bf16.msra.mxu0 %v286
  %400 = vmatprep.mubr.bf16.mxu0 %v114
  %401 = vmatmul.mubr.bf16.gmra.mrb[0].mxu0 %v113
  %v402 = vpop.f32.mrb[0].mxu0
  %v403 = vadd.f32 %v354, %v402
  %v404 = vpop.f32.mrb[0].mxu0
  %v405 = vpop.f32.mrb[0].mxu0
  %v406 = vadd.f32 %v357, %v405
  %v407 = vpop.f32.mrb[0].mxu0
  %408 = vmatprep.mubr.bf16.mxu0 %v118
  %409 = vmatmul.mubr.bf16.gmra.mrb[0].mxu0 %v117
  %v410 = vpop.f32.mrb[0].mxu0
  %v411 = vadd.f32 %v362, %v410
  %v412 = vpop.f32.mrb[0].mxu0
  %v413 = vpop.f32.mrb[0].mxu0
  %v414 = vadd.f32 %v365, %v413
  %v415 = vpop.f32.mrb[0].mxu0
  %416 = vdwg.mxu0
  %v417 = vpack.c.bf16 %v406, %v403
  %v418 = vpack.c.bf16 %v414, %v411
  %v421 = vunpack.c.l.b16 %v417
  %v422 = vunpack.c.h.b16 %v417
  %v423 = vunpack.c.l.b16 %v418
  %v424 = vunpack.c.h.b16 %v418
  %v425 = vpack.c.b16 %v421, %v421
  %v426 = vpack.c.b16 %v422, %v422
  %v427 = vpack.c.b16 %v423, %v423
  %v428 = vpack.c.b16 %v424, %v424
  %433 = vst [vmem:[%s2] sm:$0xf] %v425
  %434 = vst [vmem:[%s2 + $0x4] sm:$0xf] %v426
  %435 = vst [vmem:[%s2 + $0x8] sm:$0xf] %v427
  %436 = vst [vmem:[%s2 + $0xc] sm:$0xf] %v428
  %v437 = vadd.f32 %v403, %v406
  %v438 = vadd.f32 %v437, %v411
  %v439 = vadd.f32 %v438, %v414
  %v440 = vrot.slane %v439, 4
  %v441 = vadd.f32 %v439, %v440
  %v442 = vrot.slane %v441, 2
  %v443 = vadd.f32 %v441, %v442
  %v444 = vrot.slane %v443, 1
  %v445 = vadd.f32 %v443, %v444
  %446 = vst [vmem:[%s3] sm:$0x1] %v445
  %v447 = vmul.f32 %v403, %v403
  %v448 = vmul.f32 %v406, %v406
  %v449 = vmul.f32 %v411, %v411
  %v450 = vmul.f32 %v414, %v414
  %v451 = vadd.f32 %v447, %v448
  %v452 = vadd.f32 %v451, %v449
  %v453 = vadd.f32 %v452, %v450
  %v454 = vrot.slane %v453, 4
  %v455 = vadd.f32 %v453, %v454
  %v456 = vrot.slane %v455, 2
  %v457 = vadd.f32 %v455, %v456
  %v458 = vrot.slane %v457, 1
  %v459 = vadd.f32 %v457, %v458
  %460 = vst [vmem:[%s4] sm:$0x1] %v459
  // Predicated region
  $region10: #{dcgan_discriminator.8} parent=0 // pred_check
    _
  $region11: #{dcgan_discriminator.8} parent=0 // pred_check_branch
    %462 = sbr.rel (0) target = $region13
  $region12: #{dcgan_discriminator.8} parent=0 // pred_region
    _
  $region13: #{dcgan_discriminator.8} parent=0 // pred_fallthru
    _
  // Predicated region
  $region14: #{dcgan_discriminator.8} parent=0 // pred_check
    _
  $region15: #{dcgan_discriminator.8} parent=0 // pred_check_branch
    %464 = sbr.rel (0) target = $region17
  $region16: #{dcgan_discriminator.8} parent=0 // pred_region
    _
  $region17: #{dcgan_discriminator.8} parent=0 // pred_fallthru
    _
  // Predicated region
  $region18: #{dcgan_discriminator.8} parent=0 // pred_check
    _
  $region19: #{dcgan_discriminator.8} parent=0 // pred_check_branch
    %466 = sbr.rel (0) target = $region21
  $region20: #{dcgan_discriminator.8} parent=0 // pred_region
    _
  $region21: #{dcgan_discriminator.8} parent=0 // pred_fallthru
    _
  // Predicated region
  $region22: #{dcgan_discriminator.8} parent=0 // pred_check
    _
  $region23: #{dcgan_discriminator.8} parent=0 // pred_check_branch
    %468 = sbr.rel (0) target = $region25
  $region24: #{dcgan_discriminator.8} parent=0 // pred_region
    _
  $region25: #{dcgan_discriminator.8} parent=0 // pred_fallthru
    _
  // Predicated region
  $region26: #{dcgan_discriminator.8} parent=0 // pred_check
    _
  $region27: #{dcgan_discriminator.8} parent=0 // pred_check_branch
    %470 = sbr.rel (0) target = $region29
  $region28: #{dcgan_discriminator.8} parent=0 // pred_region
    _
  $region29: #{dcgan_discriminator.8} parent=0 // pred_fallthru
    _
  // Predicated region
  $region30: #{dcgan_discriminator.8} parent=0 // pred_check
    _
  $region31: #{dcgan_discriminator.8} parent=0 // pred_check_branch
    %472 = sbr.rel (0) target = $region33
  $region32: #{dcgan_discriminator.8} parent=0 // pred_region
    _
  $region33: #{dcgan_discriminator.8} parent=0 // pred_fallthru
    _

// kernel: dcgan_discriminator.9
$region0: #{dcgan_discriminator.9}
  #allocation0 [shape = 'u32[]', space=smem, size = 0x4, offset = 0x4, fixed_abs, tag = 'smem constant byte address 0x4 - core index']
  #allocation1 [shape = 'u32[144,128]{1,0:T(1,128)}', space=vmem, size = 0x12000, scoped, tag = 'internal scratch']
  %s0 = inlined_call_operand.vmem [shape: bf16[8,1024], index: 0, kind: input, shape index: {}]
  %s1 = inlined_call_operand.vmem [shape: bf16[1024,128], index: 1, kind: input, shape index: {}]
  %s2 = inlined_call_operand.vmem [shape: f32[1,128], index: 2, kind: input, shape index: {}]
  %s3 = inlined_call_operand.vmem [shape: f32[8,128], index: 3, kind: output, shape index: {}]
  %s4 = sld [smem:[#allocation0]]
  $region22: #{dcgan_discriminator.9} parent=0
    _
  %s6 = ssub.s32 1, %s4
  %s7 = scalar_select 0, %s6, %s4
  // Predicated region
  $region2: #{dcgan_discriminator.9} parent=0 // pred_check
    _
  $region3: #{dcgan_discriminator.9} parent=0 // pred_check_branch
    %9 = sbr.rel (0) target = $region5
  $region4: #{dcgan_discriminator.9} parent=0 // pred_region
    _
  $region5: #{dcgan_discriminator.9} parent=0 // pred_fallthru
    _
  // Predicated region
  $region6: #{dcgan_discriminator.9} parent=0 // pred_check
    _
  $region7: #{dcgan_discriminator.9} parent=0 // pred_check_branch
    %11 = sbr.rel (0) target = $region9
  $region8: #{dcgan_discriminator.9} parent=0 // pred_region
    _
  $region9: #{dcgan_discriminator.9} parent=0 // pred_fallthru
    _
  // Predicated region
  $region10: #{dcgan_discriminator.9} parent=0 // pred_check
    _
  $region11: #{dcgan_discriminator.9} parent=0 // pred_check_branch
    %13 = sbr.rel (0) target = $region13
  $region12: #{dcgan_discriminator.9} parent=0 // pred_region
    _
  $region13: #{dcgan_discriminator.9} parent=0 // pred_fallthru
    _
  %v15 = vld [vmem:[%s0] sm:$0xff]
  %v16 = vld [vmem:[%s0 + $0x8] sm:$0xff]
  %v17 = vld [vmem:[%s0 + $0x10] sm:$0xff]
  %v18 = vld [vmem:[%s0 + $0x18] sm:$0xff]
  %v19 = vld [vmem:[%s1] sm:$0xf]
  %v20 = vld [vmem:[%s1 + $0x4] sm:$0xf]
  %v21 = vld [vmem:[%s1 + $0x8] sm:$0xf]
  %v22 = vld [vmem:[%s1 + $0xc] sm:$0xf]
  %v23 = vld [vmem:[%s1 + $0x10] sm:$0xf]
  %v24 = vld [vmem:[%s1 + $0x14] sm:$0xf]
  %v25 = vld [vmem:[%s1 + $0x18] sm:$0xf]
  %v26 = vld [vmem:[%s1 + $0x1c] sm:$0xf]
  %v27 = vld [vmem:[%s1 + $0x20] sm:$0xf]
  %v28 = vld [vmem:[%s1 + $0x24] sm:$0xf]
  %v29 = vld [vmem:[%s1 + $0x28] sm:$0xf]
  %v30 = vld [vmem:[%s1 + $0x2c] sm:$0xf]
  %v31 = vld [vmem:[%s1 + $0x30] sm:$0xf]
  %v32 = vld [vmem:[%s1 + $0x34] sm:$0xf]
  %v33 = vld [vmem:[%s1 + $0x38] sm:$0xf]
  %v34 = vld [vmem:[%s1 + $0x3c] sm:$0xf]
  %v35 = vld [vmem:[%s1 + $0x40] sm:$0xf]
  %v36 = vld [vmem:[%s1 + $0x44] sm:$0xf]
  %v37 = vld [vmem:[%s1 + $0x48] sm:$0xf]
  %v38 = vld [vmem:[%s1 + $0x4c] sm:$0xf]
  %v39 = vld [vmem:[%s1 + $0x50] sm:$0xf]
  %v40 = vld [vmem:[%s1 + $0x54] sm:$0xf]
  %v41 = vld [vmem:[%s1 + $0x58] sm:$0xf]
  %v42 = vld [vmem:[%s1 + $0x5c] sm:$0xf]
  %v43 = vld [vmem:[%s1 + $0x60] sm:$0xf]
  %v44 = vld [vmem:[%s1 + $0x64] sm:$0xf]
  %v45 = vld [vmem:[%s1 + $0x68] sm:$0xf]
  %v46 = vld [vmem:[%s1 + $0x6c] sm:$0xf]
  %v47 = vld [vmem:[%s1 + $0x70] sm:$0xf]
  %v48 = vld [vmem:[%s1 + $0x74] sm:$0xf]
  %v49 = vld [vmem:[%s1 + $0x78] sm:$0xf]
  %v50 = vld [vmem:[%s1 + $0x7c] sm:$0xf]
  %v51 = vld [vmem:[%s1 + $0x80] sm:$0xf]
  %v52 = vld [vmem:[%s1 + $0x84] sm:$0xf]
  %v53 = vld [vmem:[%s1 + $0x88] sm:$0xf]
  %v54 = vld [vmem:[%s1 + $0x8c] sm:$0xf]
  %v55 = vld [vmem:[%s1 + $0x90] sm:$0xf]
  %v56 = vld [vmem:[%s1 + $0x94] sm:$0xf]
  %v57 = vld [vmem:[%s1 + $0x98] sm:$0xf]
  %v58 = vld [vmem:[%s1 + $0x9c] sm:$0xf]
  %v59 = vld [vmem:[%s1 + $0xa0] sm:$0xf]
  %v60 = vld [vmem:[%s1 + $0xa4] sm:$0xf]
  %v61 = vld [vmem:[%s1 + $0xa8] sm:$0xf]
  %v62 = vld [vmem:[%s1 + $0xac] sm:$0xf]
  %v63 = vld [vmem:[%s1 + $0xb0] sm:$0xf]
  %v64 = vld [vmem:[%s1 + $0xb4] sm:$0xf]
  %v65 = vld [vmem:[%s1 + $0xb8] sm:$0xf]
  %v66 = vld [vmem:[%s1 + $0xbc] sm:$0xf]
  %v67 = vld [vmem:[%s1 + $0xc0] sm:$0xf]
  %v68 = vld [vmem:[%s1 + $0xc4] sm:$0xf]
  %v69 = vld [vmem:[%s1 + $0xc8] sm:$0xf]
  %v70 = vld [vmem:[%s1 + $0xcc] sm:$0xf]
  %v71 = vld [vmem:[%s1 + $0xd0] sm:$0xf]
  %v72 = vld [vmem:[%s1 + $0xd4] sm:$0xf]
  %v73 = vld [vmem:[%s1 + $0xd8] sm:$0xf]
  %v74 = vld [vmem:[%s1 + $0xdc] sm:$0xf]
  %v75 = vld [vmem:[%s1 + $0xe0] sm:$0xf]
  %v76 = vld [vmem:[%s1 + $0xe4] sm:$0xf]
  %v77 = vld [vmem:[%s1 + $0xe8] sm:$0xf]
  %v78 = vld [vmem:[%s1 + $0xec] sm:$0xf]
  %v79 = vld [vmem:[%s1 + $0xf0] sm:$0xf]
  %v80 = vld [vmem:[%s1 + $0xf4] sm:$0xf]
  %v81 = vld [vmem:[%s1 + $0xf8] sm:$0xf]
  %v82 = vld [vmem:[%s1 + $0xfc] sm:$0xf]
  %v83 = vld [vmem:[%s1 + $0x100] sm:$0xf]
  %v84 = vld [vmem:[%s1 + $0x104] sm:$0xf]
  %v85 = vld [vmem:[%s1 + $0x108] sm:$0xf]
  %v86 = vld [vmem:[%s1 + $0x10c] sm:$0xf]
  %v87 = vld [vmem:[%s1 + $0x110] sm:$0xf]
  %v88 = vld [vmem:[%s1 + $0x114] sm:$0xf]
  %v89 = vld [vmem:[%s1 + $0x118] sm:$0xf]
  %v90 = vld [vmem:[%s1 + $0x11c] sm:$0xf]
  %v91 = vld [vmem:[%s1 + $0x120] sm:$0xf]
  %v92 = vld [vmem:[%s1 + $0x124] sm:$0xf]
  %v93 = vld [vmem:[%s1 + $0x128] sm:$0xf]
  %v94 = vld [vmem:[%s1 + $0x12c] sm:$0xf]
  %v95 = vld [vmem:[%s1 + $0x130] sm:$0xf]
  %v96 = vld [vmem:[%s1 + $0x134] sm:$0xf]
  %v97 = vld [vmem:[%s1 + $0x138] sm:$0xf]
  %v98 = vld [vmem:[%s1 + $0x13c] sm:$0xf]
  %v99 = vld [vmem:[%s1 + $0x140] sm:$0xf]
  %v100 = vld [vmem:[%s1 + $0x144] sm:$0xf]
  %v101 = vld [vmem:[%s1 + $0x148] sm:$0xf]
  %v102 = vld [vmem:[%s1 + $0x14c] sm:$0xf]
  %v103 = vld [vmem:[%s1 + $0x150] sm:$0xf]
  %v104 = vld [vmem:[%s1 + $0x154] sm:$0xf]
  %v105 = vld [vmem:[%s1 + $0x158] sm:$0xf]
  %v106 = vld [vmem:[%s1 + $0x15c] sm:$0xf]
  %v107 = vld [vmem:[%s1 + $0x160] sm:$0xf]
  %v108 = vld [vmem:[%s1 + $0x164] sm:$0xf]
  %v109 = vld [vmem:[%s1 + $0x168] sm:$0xf]
  %v110 = vld [vmem:[%s1 + $0x16c] sm:$0xf]
  %v111 = vld [vmem:[%s1 + $0x170] sm:$0xf]
  %v112 = vld [vmem:[%s1 + $0x174] sm:$0xf]
  %v113 = vld [vmem:[%s1 + $0x178] sm:$0xf]
  %v114 = vld [vmem:[%s1 + $0x17c] sm:$0xf]
  %v115 = vld [vmem:[%s1 + $0x180] sm:$0xf]
  %v116 = vld [vmem:[%s1 + $0x184] sm:$0xf]
  %v117 = vld [vmem:[%s1 + $0x188] sm:$0xf]
  %v118 = vld [vmem:[%s1 + $0x18c] sm:$0xf]
  %v119 = vld [vmem:[%s1 + $0x190] sm:$0xf]
  %v120 = vld [vmem:[%s1 + $0x194] sm:$0xf]
  %v121 = vld [vmem:[%s1 + $0x198] sm:$0xf]
  %v122 = vld [vmem:[%s1 + $0x19c] sm:$0xf]
  %v123 = vld [vmem:[%s1 + $0x1a0] sm:$0xf]
  %v124 = vld [vmem:[%s1 + $0x1a4] sm:$0xf]
  %v125 = vld [vmem:[%s1 + $0x1a8] sm:$0xf]
  %v126 = vld [vmem:[%s1 + $0x1ac] sm:$0xf]
  %v127 = vld [vmem:[%s1 + $0x1b0] sm:$0xf]
  %v128 = vld [vmem:[%s1 + $0x1b4] sm:$0xf]
  %v129 = vld [vmem:[%s1 + $0x1b8] sm:$0xf]
  %v130 = vld [vmem:[%s1 + $0x1bc] sm:$0xf]
  %v131 = vld [vmem:[%s1 + $0x1c0] sm:$0xf]
  %v132 = vld [vmem:[%s1 + $0x1c4] sm:$0xf]
  %v133 = vld [vmem:[%s1 + $0x1c8] sm:$0xf]
  %v134 = vld [vmem:[%s1 + $0x1cc] sm:$0xf]
  %v135 = vld [vmem:[%s1 + $0x1d0] sm:$0xf]
  %v136 = vld [vmem:[%s1 + $0x1d4] sm:$0xf]
  %v137 = vld [vmem:[%s1 + $0x1d8] sm:$0xf]
  %v138 = vld [vmem:[%s1 + $0x1dc] sm:$0xf]
  %v139 = vld [vmem:[%s1 + $0x1e0] sm:$0xf]
  %v140 = vld [vmem:[%s1 + $0x1e4] sm:$0xf]
  %v141 = vld [vmem:[%s1 + $0x1e8] sm:$0xf]
  %v142 = vld [vmem:[%s1 + $0x1ec] sm:$0xf]
  %v143 = vld [vmem:[%s1 + $0x1f0] sm:$0xf]
  %v144 = vld [vmem:[%s1 + $0x1f4] sm:$0xf]
  %v145 = vld [vmem:[%s1 + $0x1f8] sm:$0xf]
  %v146 = vld [vmem:[%s1 + $0x1fc] sm:$0xf]
  %v147 = vld [vmem:[%s2] sm:$0x1]
  %v149 = vlaneseq
  %v150 = vshrl.u32 %v149, 7
  %v151 = vsub.s32 0, %v150
  %v152 = vrot.slane %v147, %v151
  %v158 = vunpack.c.l.b16 %v15
  %v159 = vunpack.c.h.b16 %v15
  %v160 = vunpack.c.l.b16 %v16
  %v161 = vunpack.c.h.b16 %v16
  %v162 = vunpack.c.l.b16 %v17
  %v163 = vunpack.c.h.b16 %v17
  %v164 = vunpack.c.l.b16 %v18
  %v165 = vunpack.c.h.b16 %v18
  %v166 = vpack.c.b16 %v158, %v158
  %v167 = vpack.c.b16 %v159, %v159
  %v168 = vpack.c.b16 %v160, %v160
  %v169 = vpack.c.b16 %v161, %v161
  %v170 = vpack.c.b16 %v162, %v162
  %v171 = vpack.c.b16 %v163, %v163
  %v172 = vpack.c.b16 %v164, %v164
  %v173 = vpack.c.b16 %v165, %v165
  %v310 = vunpack.c.l.b16 %v19
  %v311 = vunpack.c.l.b16 %v20
  %v312 = vunpack.c.l.b16 %v21
  %v313 = vunpack.c.l.b16 %v22
  %v314 = vunpack.c.l.b16 %v23
  %v315 = vunpack.c.l.b16 %v24
  %v316 = vunpack.c.l.b16 %v25
  %v317 = vunpack.c.l.b16 %v26
  %v318 = vunpack.c.l.b16 %v27
  %v319 = vunpack.c.l.b16 %v28
  %v320 = vunpack.c.l.b16 %v29
  %v321 = vunpack.c.l.b16 %v30
  %v322 = vunpack.c.l.b16 %v31
  %v323 = vunpack.c.l.b16 %v32
  %v324 = vunpack.c.l.b16 %v33
  %v325 = vunpack.c.l.b16 %v34
  %v326 = vunpack.c.l.b16 %v35
  %v327 = vunpack.c.l.b16 %v36
  %v328 = vunpack.c.l.b16 %v37
  %v329 = vunpack.c.l.b16 %v38
  %v330 = vunpack.c.l.b16 %v39
  %v331 = vunpack.c.l.b16 %v40
  %v332 = vunpack.c.l.b16 %v41
  %v333 = vunpack.c.l.b16 %v42
  %v334 = vunpack.c.l.b16 %v43
  %v335 = vunpack.c.l.b16 %v44
  %v336 = vunpack.c.l.b16 %v45
  %v337 = vunpack.c.l.b16 %v46
  %v338 = vunpack.c.l.b16 %v47
  %v339 = vunpack.c.l.b16 %v48
  %v340 = vunpack.c.l.b16 %v49
  %v341 = vunpack.c.l.b16 %v50
  %v342 = vunpack.c.l.b16 %v51
  %v343 = vunpack.c.l.b16 %v52
  %v344 = vunpack.c.l.b16 %v53
  %v345 = vunpack.c.l.b16 %v54
  %v346 = vunpack.c.l.b16 %v55
  %v347 = vunpack.c.l.b16 %v56
  %v348 = vunpack.c.l.b16 %v57
  %v349 = vunpack.c.l.b16 %v58
  %v350 = vunpack.c.l.b16 %v59
  %v351 = vunpack.c.l.b16 %v60
  %v352 = vunpack.c.l.b16 %v61
  %v353 = vunpack.c.l.b16 %v62
  %v354 = vunpack.c.l.b16 %v63
  %v355 = vunpack.c.l.b16 %v64
  %v356 = vunpack.c.l.b16 %v65
  %v357 = vunpack.c.l.b16 %v66
  %v358 = vunpack.c.l.b16 %v67
  %v359 = vunpack.c.l.b16 %v68
  %v360 = vunpack.c.l.b16 %v69
  %v361 = vunpack.c.l.b16 %v70
  %v362 = vunpack.c.l.b16 %v71
  %v363 = vunpack.c.l.b16 %v72
  %v364 = vunpack.c.l.b16 %v73
  %v365 = vunpack.c.l.b16 %v74
  %v366 = vunpack.c.l.b16 %v75
  %v367 = vunpack.c.l.b16 %v76
  %v368 = vunpack.c.l.b16 %v77
  %v369 = vunpack.c.l.b16 %v78
  %v370 = vunpack.c.l.b16 %v79
  %v371 = vunpack.c.l.b16 %v80
  %v372 = vunpack.c.l.b16 %v81
  %v373 = vunpack.c.l.b16 %v82
  %v374 = vunpack.c.l.b16 %v83
  %v375 = vunpack.c.l.b16 %v84
  %v376 = vunpack.c.l.b16 %v85
  %v377 = vunpack.c.l.b16 %v86
  %v378 = vunpack.c.l.b16 %v87
  %v379 = vunpack.c.l.b16 %v88
  %v380 = vunpack.c.l.b16 %v89
  %v381 = vunpack.c.l.b16 %v90
  %v382 = vunpack.c.l.b16 %v91
  %v383 = vunpack.c.l.b16 %v92
  %v384 = vunpack.c.l.b16 %v93
  %v385 = vunpack.c.l.b16 %v94
  %v386 = vunpack.c.l.b16 %v95
  %v387 = vunpack.c.l.b16 %v96
  %v388 = vunpack.c.l.b16 %v97
  %v389 = vunpack.c.l.b16 %v98
  %v390 = vunpack.c.l.b16 %v99
  %v391 = vunpack.c.l.b16 %v100
  %v392 = vunpack.c.l.b16 %v101
  %v393 = vunpack.c.l.b16 %v102
  %v394 = vunpack.c.l.b16 %v103
  %v395 = vunpack.c.l.b16 %v104
  %v396 = vunpack.c.l.b16 %v105
  %v397 = vunpack.c.l.b16 %v106
  %v398 = vunpack.c.l.b16 %v107
  %v399 = vunpack.c.l.b16 %v108
  %v400 = vunpack.c.l.b16 %v109
  %v401 = vunpack.c.l.b16 %v110
  %v402 = vunpack.c.l.b16 %v111
  %v403 = vunpack.c.l.b16 %v112
  %v404 = vunpack.c.l.b16 %v113
  %v405 = vunpack.c.l.b16 %v114
  %v406 = vunpack.c.l.b16 %v115
  %v407 = vunpack.c.l.b16 %v116
  %v408 = vunpack.c.l.b16 %v117
  %v409 = vunpack.c.l.b16 %v118
  %v410 = vunpack.c.l.b16 %v119
  %v411 = vunpack.c.l.b16 %v120
  %v412 = vunpack.c.l.b16 %v121
  %v413 = vunpack.c.l.b16 %v122
  %v414 = vunpack.c.l.b16 %v123
  %v415 = vunpack.c.l.b16 %v124
  %v416 = vunpack.c.l.b16 %v125
  %v417 = vunpack.c.l.b16 %v126
  %v418 = vunpack.c.l.b16 %v127
  %v419 = vunpack.c.l.b16 %v128
  %v420 = vunpack.c.l.b16 %v129
  %v421 = vunpack.c.l.b16 %v130
  %v422 = vunpack.c.l.b16 %v131
  %v423 = vunpack.c.l.b16 %v132
  %v424 = vunpack.c.l.b16 %v133
  %v425 = vunpack.c.l.b16 %v134
  %v426 = vunpack.c.l.b16 %v135
  %v427 = vunpack.c.l.b16 %v136
  %v428 = vunpack.c.l.b16 %v137
  %v429 = vunpack.c.l.b16 %v138
  %v430 = vunpack.c.l.b16 %v139
  %v431 = vunpack.c.l.b16 %v140
  %v432 = vunpack.c.l.b16 %v141
  %v433 = vunpack.c.l.b16 %v142
  %v434 = vunpack.c.l.b16 %v143
  %v435 = vunpack.c.l.b16 %v144
  %v436 = vunpack.c.l.b16 %v145
  %v437 = vunpack.c.l.b16 %v146
  %v438 = vpack.c.b16 %v311, %v310
  %v439 = vpack.c.b16 %v313, %v312
  %v440 = vpack.c.b16 %v315, %v314
  %v441 = vpack.c.b16 %v317, %v316
  %v442 = vpack.c.b16 %v319, %v318
  %v443 = vpack.c.b16 %v321, %v320
  %v444 = vpack.c.b16 %v323, %v322
  %v445 = vpack.c.b16 %v325, %v324
  %v446 = vpack.c.b16 %v327, %v326
  %v447 = vpack.c.b16 %v329, %v328
  %v448 = vpack.c.b16 %v331, %v330
  %v449 = vpack.c.b16 %v333, %v332
  %v450 = vpack.c.b16 %v335, %v334
  %v451 = vpack.c.b16 %v337, %v336
  %v452 = vpack.c.b16 %v339, %v338
  %v453 = vpack.c.b16 %v341, %v340
  %v454 = vpack.c.b16 %v343, %v342
  %v455 = vpack.c.b16 %v345, %v344
  %v456 = vpack.c.b16 %v347, %v346
  %v457 = vpack.c.b16 %v349, %v348
  %v458 = vpack.c.b16 %v351, %v350
  %v459 = vpack.c.b16 %v353, %v352
  %v460 = vpack.c.b16 %v355, %v354
  %v461 = vpack.c.b16 %v357, %v356
  %v462 = vpack.c.b16 %v359, %v358
  %v463 = vpack.c.b16 %v361, %v360
  %v464 = vpack.c.b16 %v363, %v362
  %v465 = vpack.c.b16 %v365, %v364
  %v466 = vpack.c.b16 %v367, %v366
  %v467 = vpack.c.b16 %v369, %v368
  %v468 = vpack.c.b16 %v371, %v370
  %v469 = vpack.c.b16 %v373, %v372
  %v470 = vpack.c.b16 %v375, %v374
  %v471 = vpack.c.b16 %v377, %v376
  %v472 = vpack.c.b16 %v379, %v378
  %v473 = vpack.c.b16 %v381, %v380
  %v474 = vpack.c.b16 %v383, %v382
  %v475 = vpack.c.b16 %v385, %v384
  %v476 = vpack.c.b16 %v387, %v386
  %v477 = vpack.c.b16 %v389, %v388
  %v478 = vpack.c.b16 %v391, %v390
  %v479 = vpack.c.b16 %v393, %v392
  %v480 = vpack.c.b16 %v395, %v394
  %v481 = vpack.c.b16 %v397, %v396
  %v482 = vpack.c.b16 %v399, %v398
  %v483 = vpack.c.b16 %v401, %v400
  %v484 = vpack.c.b16 %v403, %v402
  %v485 = vpack.c.b16 %v405, %v404
  %v486 = vpack.c.b16 %v407, %v406
  %v487 = vpack.c.b16 %v409, %v408
  %v488 = vpack.c.b16 %v411, %v410
  %v489 = vpack.c.b16 %v413, %v412
  %v490 = vpack.c.b16 %v415, %v414
  %v491 = vpack.c.b16 %v417, %v416
  %v492 = vpack.c.b16 %v419, %v418
  %v493 = vpack.c.b16 %v421, %v420
  %v494 = vpack.c.b16 %v423, %v422
  %v495 = vpack.c.b16 %v425, %v424
  %v496 = vpack.c.b16 %v427, %v426
  %v497 = vpack.c.b16 %v429, %v428
  %v498 = vpack.c.b16 %v431, %v430
  %v499 = vpack.c.b16 %v433, %v432
  %v500 = vpack.c.b16 %v435, %v434
  %v501 = vpack.c.b16 %v437, %v436
  %566 = vmatprep.subr.bf16.mxu0 0
  %567 = vmatpush1.bf16.msra.mxu0 %v438
  %568 = vmatprep.subr.bf16.mxu0 0
  %569 = vmatpush1.bf16.msra.mxu0 %v439
  %570 = vmatprep.subr.bf16.mxu0 0
  %571 = vmatpush1.bf16.msra.mxu0 %v440
  %572 = vmatprep.subr.bf16.mxu0 0
  %573 = vmatpush1.bf16.msra.mxu0 %v441
  %574 = vmatprep.subr.bf16.mxu0 0
  %575 = vmatpush1.bf16.msra.mxu0 %v442
  %576 = vmatprep.subr.bf16.mxu0 0
  %577 = vmatpush1.bf16.msra.mxu0 %v443
  %578 = vmatprep.subr.bf16.mxu0 0
  %579 = vmatpush1.bf16.msra.mxu0 %v444
  %580 = vmatprep.subr.bf16.mxu0 0
  %581 = vmatpush1.bf16.msra.mxu0 %v445
  %582 = vmatprep.subr.bf16.mxu0 0
  %583 = vmatpush1.bf16.msra.mxu0 %v446
  %584 = vmatprep.subr.bf16.mxu0 0
  %585 = vmatpush1.bf16.msra.mxu0 %v447
  %586 = vmatprep.subr.bf16.mxu0 0
  %587 = vmatpush1.bf16.msra.mxu0 %v448
  %588 = vmatprep.subr.bf16.mxu0 0
  %589 = vmatpush1.bf16.msra.mxu0 %v449
  %590 = vmatprep.subr.bf16.mxu0 0
  %591 = vmatpush1.bf16.msra.mxu0 %v450
  %592 = vmatprep.subr.bf16.mxu0 0
  %593 = vmatpush1.bf16.msra.mxu0 %v451
  %594 = vmatprep.subr.bf16.mxu0 0
  %595 = vmatpush1.bf16.msra.mxu0 %v452
  %596 = vmatprep.subr.bf16.mxu0 0
  %597 = vmatpush1.bf16.msra.mxu0 %v453
  %598 = vmatprep.mubr.bf16.mxu0 %v167
  %599 = vmatmul.mubr.bf16.gmra.mrb[0].mxu0 %v166
  %v600 = vpop.f32.mrb[0].mxu0
  %v601 = vadd.f32 %v152, %v600
  %v602 = vpop.f32.mrb[0].mxu0
  %v603 = vpop.f32.mrb[0].mxu0
  %v604 = vpop.f32.mrb[0].mxu0
  %605 = vdwg.mxu0
  %606 = vmatprep.subr.bf16.mxu0 0
  %607 = vmatpush1.bf16.msra.mxu0 %v454
  %608 = vmatprep.subr.bf16.mxu0 0
  %609 = vmatpush1.bf16.msra.mxu0 %v455
  %610 = vmatprep.subr.bf16.mxu0 0
  %611 = vmatpush1.bf16.msra.mxu0 %v456
  %612 = vmatprep.subr.bf16.mxu0 0
  %613 = vmatpush1.bf16.msra.mxu0 %v457
  %614 = vmatprep.subr.bf16.mxu0 0
  %615 = vmatpush1.bf16.msra.mxu0 %v458
  %616 = vmatprep.subr.bf16.mxu0 0
  %617 = vmatpush1.bf16.msra.mxu0 %v459
  %618 = vmatprep.subr.bf16.mxu0 0
  %619 = vmatpush1.bf16.msra.mxu0 %v460
  %620 = vmatprep.subr.bf16.mxu0 0
  %621 = vmatpush1.bf16.msra.mxu0 %v461
  %622 = vmatprep.subr.bf16.mxu0 0
  %623 = vmatpush1.bf16.msra.mxu0 %v462
  %624 = vmatprep.subr.bf16.mxu0 0
  %625 = vmatpush1.bf16.msra.mxu0 %v463
  %626 = vmatprep.subr.bf16.mxu0 0
  %627 = vmatpush1.bf16.msra.mxu0 %v464
  %628 = vmatprep.subr.bf16.mxu0 0
  %629 = vmatpush1.bf16.msra.mxu0 %v465
  %630 = vmatprep.subr.bf16.mxu0 0
  %631 = vmatpush1.bf16.msra.mxu0 %v466
  %632 = vmatprep.subr.bf16.mxu0 0
  %633 = vmatpush1.bf16.msra.mxu0 %v467
  %634 = vmatprep.subr.bf16.mxu0 0
  %635 = vmatpush1.bf16.msra.mxu0 %v468
  %636 = vmatprep.subr.bf16.mxu0 0
  %637 = vmatpush1.bf16.msra.mxu0 %v469
  %638 = vmatprep.mubr.bf16.mxu0 %v169
  %639 = vmatmul.mubr.bf16.gmra.mrb[0].mxu0 %v168
  %v640 = vpop.f32.mrb[0].mxu0
  %v641 = vadd.f32 %v601, %v640
  %v642 = vpop.f32.mrb[0].mxu0
  %v643 = vpop.f32.mrb[0].mxu0
  %v644 = vpop.f32.mrb[0].mxu0
  %645 = vdwg.mxu0
  %646 = vmatprep.subr.bf16.mxu0 0
  %647 = vmatpush1.bf16.msra.mxu0 %v470
  %648 = vmatprep.subr.bf16.mxu0 0
  %649 = vmatpush1.bf16.msra.mxu0 %v471
  %650 = vmatprep.subr.bf16.mxu0 0
  %651 = vmatpush1.bf16.msra.mxu0 %v472
  %652 = vmatprep.subr.bf16.mxu0 0
  %653 = vmatpush1.bf16.msra.mxu0 %v473
  %654 = vmatprep.subr.bf16.mxu0 0
  %655 = vmatpush1.bf16.msra.mxu0 %v474
  %656 = vmatprep.subr.bf16.mxu0 0
  %657 = vmatpush1.bf16.msra.mxu0 %v475
  %658 = vmatprep.subr.bf16.mxu0 0
  %659 = vmatpush1.bf16.msra.mxu0 %v476
  %660 = vmatprep.subr.bf16.mxu0 0
  %661 = vmatpush1.bf16.msra.mxu0 %v477
  %662 = vmatprep.subr.bf16.mxu0 0
  %663 = vmatpush1.bf16.msra.mxu0 %v478
  %664 = vmatprep.subr.bf16.mxu0 0
  %665 = vmatpush1.bf16.msra.mxu0 %v479
  %666 = vmatprep.subr.bf16.mxu0 0
  %667 = vmatpush1.bf16.msra.mxu0 %v480
  %668 = vmatprep.subr.bf16.mxu0 0
  %669 = vmatpush1.bf16.msra.mxu0 %v481
  %670 = vmatprep.subr.bf16.mxu0 0
  %671 = vmatpush1.bf16.msra.mxu0 %v482
  %672 = vmatprep.subr.bf16.mxu0 0
  %673 = vmatpush1.bf16.msra.mxu0 %v483
  %674 = vmatprep.subr.bf16.mxu0 0
  %675 = vmatpush1.bf16.msra.mxu0 %v484
  %676 = vmatprep.subr.bf16.mxu0 0
  %677 = vmatpush1.bf16.msra.mxu0 %v485
  %678 = vmatprep.mubr.bf16.mxu0 %v171
  %679 = vmatmul.mubr.bf16.gmra.mrb[0].mxu0 %v170
  %v680 = vpop.f32.mrb[0].mxu0
  %v681 = vadd.f32 %v641, %v680
  %v682 = vpop.f32.mrb[0].mxu0
  %v683 = vpop.f32.mrb[0].mxu0
  %v684 = vpop.f32.mrb[0].mxu0
  %685 = vdwg.mxu0
  %686 = vmatprep.subr.bf16.mxu0 0
  %687 = vmatpush1.bf16.msra.mxu0 %v486
  %688 = vmatprep.subr.bf16.mxu0 0
  %689 = vmatpush1.bf16.msra.mxu0 %v487
  %690 = vmatprep.subr.bf16.mxu0 0
  %691 = vmatpush1.bf16.msra.mxu0 %v488
  %692 = vmatprep.subr.bf16.mxu0 0
  %693 = vmatpush1.bf16.msra.mxu0 %v489
  %694 = vmatprep.subr.bf16.mxu0 0
  %695 = vmatpush1.bf16.msra.mxu0 %v490
  %696 = vmatprep.subr.bf16.mxu0 0
  %697 = vmatpush1.bf16.msra.mxu0 %v491
  %698 = vmatprep.subr.bf16.mxu0 0
  %699 = vmatpush1.bf16.msra.mxu0 %v492
  %700 = vmatprep.subr.bf16.mxu0 0
  %701 = vmatpush1.bf16.msra.mxu0 %v493
  %702 = vmatprep.subr.bf16.mxu0 0
  %703 = vmatpush1.bf16.msra.mxu0 %v494
  %704 = vmatprep.subr.bf16.mxu0 0
  %705 = vmatpush1.bf16.msra.mxu0 %v495
  %706 = vmatprep.subr.bf16.mxu0 0
  %707 = vmatpush1.bf16.msra.mxu0 %v496
  %708 = vmatprep.subr.bf16.mxu0 0
  %709 = vmatpush1.bf16.msra.mxu0 %v497
  %710 = vmatprep.subr.bf16.mxu0 0
  %711 = vmatpush1.bf16.msra.mxu0 %v498
  %712 = vmatprep.subr.bf16.mxu0 0
  %713 = vmatpush1.bf16.msra.mxu0 %v499
  %714 = vmatprep.subr.bf16.mxu0 0
  %715 = vmatpush1.bf16.msra.mxu0 %v500
  %716 = vmatprep.subr.bf16.mxu0 0
  %717 = vmatpush1.bf16.msra.mxu0 %v501
  %718 = vmatprep.mubr.bf16.mxu0 %v173
  %719 = vmatmul.mubr.bf16.gmra.mrb[0].mxu0 %v172
  %v720 = vpop.f32.mrb[0].mxu0
  %v721 = vadd.f32 %v681, %v720
  %v722 = vpop.f32.mrb[0].mxu0
  %v723 = vpop.f32.mrb[0].mxu0
  %v724 = vpop.f32.mrb[0].mxu0
  %725 = vdwg.mxu0
  %726 = vst [vmem:[%s3] sm:$0xff] %v721
  // Predicated region
  $region14: #{dcgan_discriminator.9} parent=0 // pred_check
    _
  $region15: #{dcgan_discriminator.9} parent=0 // pred_check_branch
    %728 = sbr.rel (0) target = $region17
  $region16: #{dcgan_discriminator.9} parent=0 // pred_region
    _
  $region17: #{dcgan_discriminator.9} parent=0 // pred_fallthru
    _
  // Predicated region
  $region18: #{dcgan_discriminator.9} parent=0 // pred_check
    _
  $region19: #{dcgan_discriminator.9} parent=0 // pred_check_branch
    %730 = sbr.rel (0) target = $region21
  $region20: #{dcgan_discriminator.9} parent=0 // pred_region
    _
  $region21: #{dcgan_discriminator.9} parent=0 // pred_fallthru
    _

</llo_original>
